<compile_context>
chip_gen: v7x
topology: tpu7x:2x2x1
jax: 0.10.0
libtpu: 0.0.40
codegen_flags: <defaults>
</compile_context>

<pallas_src>
import jax
import jax.numpy as jnp
from jax import lax
from jax.experimental import pallas as pl
from jax.experimental.pallas import tpu as pltpu

# ---------------------------------------------------------------------------
# LeNet geometry (fixed by the PyTorch module: 3x32x32 input).
# ---------------------------------------------------------------------------
H0, W0, C0 = 32, 32, 3
K = 5
C1 = 6                                   # conv1 output channels
H1, W1 = H0 - K + 1, W0 - K + 1          # 28, 28
HP1, WP1 = H1 // 2, W1 // 2              # 14, 14
C2 = 16                                  # conv2 output channels
H2, W2 = HP1 - K + 1, WP1 - K + 1        # 10, 10
HP2, WP2 = H2 // 2, W2 // 2              # 5, 5
F_IN = HP2 * WP2 * C2                    # 400
N1, N2, N3 = 120, 84, 10


# ---------------------------------------------------------------------------
# One-time parameter preprocessing (runs OUTSIDE the jitted forward).
# ---------------------------------------------------------------------------
def _banded_conv_weight(w, w_in):
    """PyTorch conv weight (Cout, Cin, K, K) -> banded (K, w_in*Cin, w_out*Cout).

    banded[di, x*Cin + c, j*Cout + o] = w[o, c, di, x - j]  if 0 <= x - j < K,
    so that with activations laid out as rows=H, lanes=(W, C):
        out_rows(i, :) = sum_di  act_rows(i + di, :) @ banded[di]
    is exactly the valid, stride-1 KxK convolution.
    """
    c_out, c_in, k, _ = w.shape
    w_out = w_in - k + 1
    # sel[j, dj, x] = 1  iff  x == j + dj
    sel = (jnp.arange(w_out)[:, None, None] + jnp.arange(k)[None, :, None]
           == jnp.arange(w_in)[None, None, :]).astype(w.dtype)
    banded = jnp.einsum("jdx,ocid->ixcjo", sel, w)   # (k, w_in, Cin, w_out, Cout)
    return banded.reshape(k, w_in * c_in, w_out * c_out)


def prepare_params(params):
    """Pre-transpose / pre-permute / band all weights once, outside jit."""
    return {
        "w1": _banded_conv_weight(params["conv1_w"], W0),          # (5,  96, 168)
        "b1": jnp.tile(params["conv1_b"], W1).reshape(1, W1 * C1), # (1, 168)
        "w2": _banded_conv_weight(params["conv2_w"], WP1),         # (5,  84, 160)
        "b2": jnp.tile(params["conv2_b"], W2).reshape(1, W2 * C2), # (1, 160)
        # torch flattens (c, h, w); our in-kernel flatten is (h, w, c):
        "wf1": params["fc1_w"].reshape(N1, C2, HP2, WP2)
                               .transpose(2, 3, 1, 0).reshape(F_IN, N1),
        "bf1": params["fc1_b"].reshape(1, N1),
        "wf2": params["fc2_w"].T,
        "bf2": params["fc2_b"].reshape(1, N2),
        "wf3": params["fc3_w"].T,
        "bf3": params["fc3_b"].reshape(1, N3),
    }


# ---------------------------------------------------------------------------
# The fused Pallas kernel: one grid step == one image, everything in VMEM.
# ---------------------------------------------------------------------------
def _lenet_kernel(x_ref, w1_ref, b1_ref, w2_ref, b2_ref,
                  wf1_ref, bf1_ref, wf2_ref, bf2_ref, wf3_ref, bf3_ref,
                  out_ref,
                  a1_ref, rp1_ref, m1_ref, a2_ref, rp2_ref, m2_ref, f_ref):
    # ----- conv1 (5x5 valid) + ReLU : (32, 32*3) -> (28, 28*6) ------------
    acc = jnp.zeros((H1, W1 * C1), jnp.float32)
    for di in range(K):
        acc = acc + jnp.dot(x_ref[0, di:di + H1, :], w1_ref[di],
                            preferred_element_type=jnp.float32)
    a1_ref[...] = jnp.maximum(acc + b1_ref[...], 0.0)

    # ----- 2x2 max-pool, stride 2 : (28, 28*6) -> (14, 14*6) --------------
    for p in range(HP1):                                   # pool rows
        rp1_ref[p:p + 1, :] = jnp.maximum(a1_ref[2 * p:2 * p + 1, :],
                                          a1_ref[2 * p + 1:2 * p + 2, :])
    for q in range(WP1):                                   # pool columns
        m1_ref[:, C1 * q:C1 * (q + 1)] = jnp.maximum(
            rp1_ref[:, 2 * C1 * q:2 * C1 * q + C1],
            rp1_ref[:, 2 * C1 * q + C1:2 * C1 * (q + 1)])

    # ----- conv2 (5x5 valid) + ReLU : (14, 14*6) -> (10, 10*16) -----------
    acc = jnp.zeros((H2, W2 * C2), jnp.float32)
    for di in range(K):
        acc = acc + jnp.dot(m1_ref[di:di + H2, :], w2_ref[di],
                            preferred_element_type=jnp.float32)
    a2_ref[...] = jnp.maximum(acc + b2_ref[...], 0.0)

    # ----- 2x2 max-pool + flatten to (h, w, c) : -> (1, 400) --------------
    for p in range(HP2):
        rp2_ref[p:p + 1, :] = jnp.maximum(a2_ref[2 * p:2 * p + 1, :],
                                          a2_ref[2 * p + 1:2 * p + 2, :])
    for q in range(WP2):
        m2_ref[:, C2 * q:C2 * (q + 1)] = jnp.maximum(
            rp2_ref[:, 2 * C2 * q:2 * C2 * q + C2],
            rp2_ref[:, 2 * C2 * q + C2:2 * C2 * (q + 1)])
    for p in range(HP2):
        f_ref[:, WP2 * C2 * p:WP2 * C2 * (p + 1)] = m2_ref[p:p + 1, :]

    # ----- fully-connected head : 400 -> 120 -> 84 -> 10 ------------------
    h = jnp.maximum(jnp.dot(f_ref[...], wf1_ref[...],
                            preferred_element_type=jnp.float32) + bf1_ref[...], 0.0)
    h = jnp.maximum(jnp.dot(h, wf2_ref[...],
                            preferred_element_type=jnp.float32) + bf2_ref[...], 0.0)
    out_ref[0] = (jnp.dot(h, wf3_ref[...],
                          preferred_element_type=jnp.float32) + bf3_ref[...])


# ---------------------------------------------------------------------------
# Forward wrapper.
# ---------------------------------------------------------------------------
def simple_cnn_forward(x, prep):
    """x: (B, 3, 32, 32) float32 NCHW -> (B, 10) logits (PyTorch semantics)."""
    B = x.shape[0]
    assert x.shape[1:] == (C0, H0, W0), x.shape
    # Only XLA-side layout op: fold (W, C) onto the lane axis -> (B, 32, 96).
    x3 = jnp.transpose(x, (0, 2, 3, 1)).reshape(B, H0, W0 * C0)

    const2 = lambda b: (0, 0)
    const3 = lambda b: (0, 0, 0)

    out = pl.pallas_call(
        _lenet_kernel,
        out_shape=jax.ShapeDtypeStruct((B, 1, N3), jnp.float32),
        grid=(B,),
        in_specs=[
            pl.BlockSpec((1, H0, W0 * C0), lambda b: (b, 0, 0)),   # image b
            pl.BlockSpec((K, W0 * C0, W1 * C1), const3),           # conv1 banded
            pl.BlockSpec((1, W1 * C1), const2),                    # conv1 bias
            pl.BlockSpec((K, WP1 * C1, W2 * C2), const3),          # conv2 banded
            pl.BlockSpec((1, W2 * C2), const2),                    # conv2 bias
            pl.BlockSpec((F_IN, N1), const2),                      # fc1 w
            pl.BlockSpec((1, N1), const2),                         # fc1 b
            pl.BlockSpec((N1, N2), const2),                        # fc2 w
            pl.BlockSpec((1, N2), const2),                         # fc2 b
            pl.BlockSpec((N2, N3), const2),                        # fc3 w
            pl.BlockSpec((1, N3), const2),                         # fc3 b
        ],
        out_specs=pl.BlockSpec((1, 1, N3), lambda b: (b, 0, 0)),
        scratch_shapes=[
            pltpu.VMEM((H1, W1 * C1), jnp.float32),     # conv1 activations
            pltpu.VMEM((HP1, W1 * C1), jnp.float32),    # row-pooled conv1
            pltpu.VMEM((HP1, WP1 * C1), jnp.float32),   # pooled conv1
            pltpu.VMEM((H2, W2 * C2), jnp.float32),     # conv2 activations
            pltpu.VMEM((HP2, W2 * C2), jnp.float32),    # row-pooled conv2
            pltpu.VMEM((HP2, WP2 * C2), jnp.float32),   # pooled conv2
            pltpu.VMEM((1, F_IN), jnp.float32),         # flattened features
        ],
        compiler_params=pltpu.CompilerParams(
            dimension_semantics=("parallel",)),          # v7x: 2 TCs over batch
    )(x3, prep["w1"], prep["b1"], prep["w2"], prep["b2"],
      prep["wf1"], prep["bf1"], prep["wf2"], prep["bf2"],
      prep["wf3"], prep["bf3"])
    return out.reshape(B, N3)


# ---------------------------------------------------------------------------
# Parameters (PyTorch layer shapes) and a pure-JAX reference for validation.
# ---------------------------------------------------------------------------
def init_params(key):
    ks = jax.random.split(key, 10)

    def w(k, shape, fan_in):
        return (jax.random.normal(k, shape, jnp.float32) / jnp.sqrt(fan_in))

    return {
        "conv1_w": w(ks[0], (C1, C0, K, K), C0 * K * K),
        "conv1_b": 0.01 * jax.random.normal(ks[1], (C1,), jnp.float32),
        "conv2_w": w(ks[2], (C2, C1, K, K), C1 * K * K),
        "conv2_b": 0.01 * jax.random.normal(ks[3], (C2,), jnp.float32),
        "fc1_w": w(ks[4], (N1, F_IN), F_IN),
        "fc1_b": 0.01 * jax.random.normal(ks[5], (N1,), jnp.float32),
        "fc2_w": w(ks[6], (N2, N1), N1),
        "fc2_b": 0.01 * jax.random.normal(ks[7], (N2,), jnp.float32),
        "fc3_w": w(ks[8], (N3, N2), N2),
        "fc3_b": 0.01 * jax.random.normal(ks[9], (N3,), jnp.float32),
    }


def simple_cnn_reference(x, params):
    """Plain XLA reference with PyTorch semantics (for correctness check)."""
    hp = lax.Precision.HIGHEST

    def conv(x, w, b):
        y = lax.conv_general_dilated(x, w, (1, 1), "VALID",
                                     dimension_numbers=("NCHW", "OIHW", "NCHW"),
                                     precision=hp)
        return y + b.reshape(1, -1, 1, 1)

    def pool(x):
        return lax.reduce_window(x, -jnp.inf, lax.max,
                                 (1, 1, 2, 2), (1, 1, 2, 2), "VALID")

    y = pool(jax.nn.relu(conv(x, params["conv1_w"], params["conv1_b"])))
    y = pool(jax.nn.relu(conv(y, params["conv2_w"], params["conv2_b"])))
    y = y.reshape(y.shape[0], -1)
    y = jax.nn.relu(jnp.dot(y, params["fc1_w"].T, precision=hp) + params["fc1_b"])
    y = jax.nn.relu(jnp.dot(y, params["fc2_w"].T, precision=hp) + params["fc2_b"])
    return jnp.dot(y, params["fc3_w"].T, precision=hp) + params["fc3_b"]


if __name__ == "__main__":
    key = jax.random.PRNGKey(0)
    pkey, xkey = jax.random.split(key)
    params = init_params(pkey)
    prep = prepare_params(params)        # one-time weight prep, outside jit

    x = jax.random.normal(xkey, (2, C0, H0, W0), jnp.float32)

    fwd = jax.jit(simple_cnn_forward)
    out = jax.block_until_ready(fwd(x, prep))
    assert out.shape == (2, N3), out.shape
    assert out.dtype == jnp.float32

    ref = jax.block_until_ready(simple_cnn_reference(x, params))
    max_err = float(jnp.max(jnp.abs(out - ref)))
    # Loose tolerance only to cover MXU pass-precision differences; layout /
    # index bugs would produce O(0.1+) errors and still be caught.
    assert jnp.allclose(out, ref, rtol=2e-2, atol=2e-2), f"max|err|={max_err}"
    print("KERNEL_OK")
</pallas_src>

<mosaic_0001>
module attributes {stable_mosaic.version = 11 : i64} {
  func.func @_lenet_kernel(%arg0: i32, %arg1: memref<1x32x96xf32, #tpu.memory_space<vmem>>, %arg2: memref<5x96x168xf32, #tpu.memory_space<vmem>>, %arg3: memref<1x168xf32, #tpu.memory_space<vmem>>, %arg4: memref<5x84x160xf32, #tpu.memory_space<vmem>>, %arg5: memref<1x160xf32, #tpu.memory_space<vmem>>, %arg6: memref<400x120xf32, #tpu.memory_space<vmem>>, %arg7: memref<1x120xf32, #tpu.memory_space<vmem>>, %arg8: memref<120x84xf32, #tpu.memory_space<vmem>>, %arg9: memref<1x84xf32, #tpu.memory_space<vmem>>, %arg10: memref<84x10xf32, #tpu.memory_space<vmem>>, %arg11: memref<1x10xf32, #tpu.memory_space<vmem>>, %arg12: memref<1x1x10xf32, #tpu.memory_space<vmem>>, %arg13: memref<28x168xf32, #tpu.memory_space<vmem>>, %arg14: memref<14x168xf32, #tpu.memory_space<vmem>>, %arg15: memref<14x84xf32, #tpu.memory_space<vmem>>, %arg16: memref<10x160xf32, #tpu.memory_space<vmem>>, %arg17: memref<5x160xf32, #tpu.memory_space<vmem>>, %arg18: memref<5x80xf32, #tpu.memory_space<vmem>>, %arg19: memref<1x400xf32, #tpu.memory_space<vmem>>) attributes {dimension_semantics = [#tpu.dimension_semantics<parallel>], iteration_bounds = array<i64: 2>, scalar_prefetch = 0 : i64, scratch_operands = 7 : i64, tpu.core_type = #tpu.core_type<tc>, window_params = [{transform_indices = @transform_0, window_bounds = array<i64: 1, 32, 96>}, {pipeline_mode = #tpu.pipeline_mode<synchronous>, transform_indices = @transform_1, window_bounds = array<i64: 5, 96, 168>}, {pipeline_mode = #tpu.pipeline_mode<synchronous>, transform_indices = @transform_2, window_bounds = array<i64: 1, 168>}, {pipeline_mode = #tpu.pipeline_mode<synchronous>, transform_indices = @transform_3, window_bounds = array<i64: 5, 84, 160>}, {pipeline_mode = #tpu.pipeline_mode<synchronous>, transform_indices = @transform_4, window_bounds = array<i64: 1, 160>}, {pipeline_mode = #tpu.pipeline_mode<synchronous>, transform_indices = @transform_5, window_bounds = array<i64: 400, 120>}, {pipeline_mode = #tpu.pipeline_mode<synchronous>, transform_indices = @transform_6, window_bounds = array<i64: 1, 120>}, {pipeline_mode = #tpu.pipeline_mode<synchronous>, transform_indices = @transform_7, window_bounds = array<i64: 120, 84>}, {pipeline_mode = #tpu.pipeline_mode<synchronous>, transform_indices = @transform_8, window_bounds = array<i64: 1, 84>}, {pipeline_mode = #tpu.pipeline_mode<synchronous>, transform_indices = @transform_9, window_bounds = array<i64: 84, 10>}, {pipeline_mode = #tpu.pipeline_mode<synchronous>, transform_indices = @transform_10, window_bounds = array<i64: 1, 10>}, {transform_indices = @transform_11, window_bounds = array<i64: 1, 1, 10>}]} {
    %cst = arith.constant 0.000000e+00 : f32
    %0 = vector.broadcast %cst : f32 to vector<28x168xf32>
    %c0 = arith.constant 0 : index
    %c0_0 = arith.constant 0 : index
    %c0_1 = arith.constant 0 : index
    %1 = vector.load %arg1[%c0, %c0_0, %c0_1] : memref<1x32x96xf32, #tpu.memory_space<vmem>>, vector<1x28x96xf32>
    %2 = vector.shape_cast %1 : vector<1x28x96xf32> to vector<28x96xf32>
    %c0_2 = arith.constant 0 : index
    %c0_3 = arith.constant 0 : index
    %c0_4 = arith.constant 0 : index
    %3 = vector.load %arg2[%c0_2, %c0_3, %c0_4] : memref<5x96x168xf32, #tpu.memory_space<vmem>>, vector<1x96x168xf32>
    %4 = vector.shape_cast %3 : vector<1x96x168xf32> to vector<96x168xf32>
    %cst_5 = arith.constant dense<0.000000e+00> : vector<28x168xf32>
    %5 = tpu.matmul %2, %4, %cst_5 {dimension_numbers = #tpu.dot_dimension_numbers<[1], [0], [0], [1], [0, 0, 1, 1], [], []>} : vector<28x96xf32>, vector<96x168xf32>, vector<28x168xf32> -> vector<28x168xf32>
    %6 = arith.addf %0, %5 : vector<28x168xf32>
    %c0_6 = arith.constant 0 : index
    %c1 = arith.constant 1 : index
    %c0_7 = arith.constant 0 : index
    %7 = vector.load %arg1[%c0_6, %c1, %c0_7] : memref<1x32x96xf32, #tpu.memory_space<vmem>>, vector<1x28x96xf32>
    %8 = vector.shape_cast %7 : vector<1x28x96xf32> to vector<28x96xf32>
    %c1_8 = arith.constant 1 : index
    %c0_9 = arith.constant 0 : index
    %c0_10 = arith.constant 0 : index
    %9 = vector.load %arg2[%c1_8, %c0_9, %c0_10] : memref<5x96x168xf32, #tpu.memory_space<vmem>>, vector<1x96x168xf32>
    %10 = vector.shape_cast %9 : vector<1x96x168xf32> to vector<96x168xf32>
    %cst_11 = arith.constant dense<0.000000e+00> : vector<28x168xf32>
    %11 = tpu.matmul %8, %10, %cst_11 {dimension_numbers = #tpu.dot_dimension_numbers<[1], [0], [0], [1], [0, 0, 1, 1], [], []>} : vector<28x96xf32>, vector<96x168xf32>, vector<28x168xf32> -> vector<28x168xf32>
    %12 = arith.addf %6, %11 : vector<28x168xf32>
    %c0_12 = arith.constant 0 : index
    %c2 = arith.constant 2 : index
    %c0_13 = arith.constant 0 : index
    %13 = vector.load %arg1[%c0_12, %c2, %c0_13] : memref<1x32x96xf32, #tpu.memory_space<vmem>>, vector<1x28x96xf32>
    %14 = vector.shape_cast %13 : vector<1x28x96xf32> to vector<28x96xf32>
    %c2_14 = arith.constant 2 : index
    %c0_15 = arith.constant 0 : index
    %c0_16 = arith.constant 0 : index
    %15 = vector.load %arg2[%c2_14, %c0_15, %c0_16] : memref<5x96x168xf32, #tpu.memory_space<vmem>>, vector<1x96x168xf32>
    %16 = vector.shape_cast %15 : vector<1x96x168xf32> to vector<96x168xf32>
    %cst_17 = arith.constant dense<0.000000e+00> : vector<28x168xf32>
    %17 = tpu.matmul %14, %16, %cst_17 {dimension_numbers = #tpu.dot_dimension_numbers<[1], [0], [0], [1], [0, 0, 1, 1], [], []>} : vector<28x96xf32>, vector<96x168xf32>, vector<28x168xf32> -> vector<28x168xf32>
    %18 = arith.addf %12, %17 : vector<28x168xf32>
    %c0_18 = arith.constant 0 : index
    %c3 = arith.constant 3 : index
    %c0_19 = arith.constant 0 : index
    %19 = vector.load %arg1[%c0_18, %c3, %c0_19] : memref<1x32x96xf32, #tpu.memory_space<vmem>>, vector<1x28x96xf32>
    %20 = vector.shape_cast %19 : vector<1x28x96xf32> to vector<28x96xf32>
    %c3_20 = arith.constant 3 : index
    %c0_21 = arith.constant 0 : index
    %c0_22 = arith.constant 0 : index
    %21 = vector.load %arg2[%c3_20, %c0_21, %c0_22] : memref<5x96x168xf32, #tpu.memory_space<vmem>>, vector<1x96x168xf32>
    %22 = vector.shape_cast %21 : vector<1x96x168xf32> to vector<96x168xf32>
    %cst_23 = arith.constant dense<0.000000e+00> : vector<28x168xf32>
    %23 = tpu.matmul %20, %22, %cst_23 {dimension_numbers = #tpu.dot_dimension_numbers<[1], [0], [0], [1], [0, 0, 1, 1], [], []>} : vector<28x96xf32>, vector<96x168xf32>, vector<28x168xf32> -> vector<28x168xf32>
    %24 = arith.addf %18, %23 : vector<28x168xf32>
    %c0_24 = arith.constant 0 : index
    %c4 = arith.constant 4 : index
    %c0_25 = arith.constant 0 : index
    %25 = vector.load %arg1[%c0_24, %c4, %c0_25] : memref<1x32x96xf32, #tpu.memory_space<vmem>>, vector<1x28x96xf32>
    %26 = vector.shape_cast %25 : vector<1x28x96xf32> to vector<28x96xf32>
    %c4_26 = arith.constant 4 : index
    %c0_27 = arith.constant 0 : index
    %c0_28 = arith.constant 0 : index
    %27 = vector.load %arg2[%c4_26, %c0_27, %c0_28] : memref<5x96x168xf32, #tpu.memory_space<vmem>>, vector<1x96x168xf32>
    %28 = vector.shape_cast %27 : vector<1x96x168xf32> to vector<96x168xf32>
    %cst_29 = arith.constant dense<0.000000e+00> : vector<28x168xf32>
    %29 = tpu.matmul %26, %28, %cst_29 {dimension_numbers = #tpu.dot_dimension_numbers<[1], [0], [0], [1], [0, 0, 1, 1], [], []>} : vector<28x96xf32>, vector<96x168xf32>, vector<28x168xf32> -> vector<28x168xf32>
    %30 = arith.addf %24, %29 : vector<28x168xf32>
    %c0_30 = arith.constant 0 : index
    %c0_31 = arith.constant 0 : index
    %31 = vector.load %arg3[%c0_30, %c0_31] : memref<1x168xf32, #tpu.memory_space<vmem>>, vector<1x168xf32>
    %32 = vector.broadcast %31 : vector<1x168xf32> to vector<28x168xf32>
    %33 = arith.addf %30, %32 : vector<28x168xf32>
    %cst_32 = arith.constant 0.000000e+00 : f32
    %34 = vector.broadcast %cst_32 : f32 to vector<28x168xf32>
    %35 = arith.maximumf %33, %34 : vector<28x168xf32>
    %c0_33 = arith.constant 0 : index
    %c0_34 = arith.constant 0 : index
    %36 = vector.load %arg13[%c0_33, %c0_34] : memref<28x168xf32, #tpu.memory_space<vmem>>, vector<28x168xf32>
    tpu.vector_store %arg13[%c0_33, %c0_34], %35 {strides = array<i32>} : memref<28x168xf32, #tpu.memory_space<vmem>>, vector<28x168xf32>,
    %c0_35 = arith.constant 0 : index
    %c0_36 = arith.constant 0 : index
    %37 = vector.load %arg13[%c0_35, %c0_36] : memref<28x168xf32, #tpu.memory_space<vmem>>, vector<1x168xf32>
    %c1_37 = arith.constant 1 : index
    %c0_38 = arith.constant 0 : index
    %38 = vector.load %arg13[%c1_37, %c0_38] : memref<28x168xf32, #tpu.memory_space<vmem>>, vector<1x168xf32>
    %39 = arith.maximumf %37, %38 : vector<1x168xf32>
    %c0_39 = arith.constant 0 : index
    %c0_40 = arith.constant 0 : index
    %40 = vector.load %arg14[%c0_39, %c0_40] : memref<14x168xf32, #tpu.memory_space<vmem>>, vector<1x168xf32>
    tpu.vector_store %arg14[%c0_39, %c0_40], %39 {strides = array<i32>} : memref<14x168xf32, #tpu.memory_space<vmem>>, vector<1x168xf32>,
    %c2_41 = arith.constant 2 : index
    %c0_42 = arith.constant 0 : index
    %41 = vector.load %arg13[%c2_41, %c0_42] : memref<28x168xf32, #tpu.memory_space<vmem>>, vector<1x168xf32>
    %c3_43 = arith.constant 3 : index
    %c0_44 = arith.constant 0 : index
    %42 = vector.load %arg13[%c3_43, %c0_44] : memref<28x168xf32, #tpu.memory_space<vmem>>, vector<1x168xf32>
    %43 = arith.maximumf %41, %42 : vector<1x168xf32>
    %c1_45 = arith.constant 1 : index
    %c0_46 = arith.constant 0 : index
    %44 = vector.load %arg14[%c1_45, %c0_46] : memref<14x168xf32, #tpu.memory_space<vmem>>, vector<1x168xf32>
    tpu.vector_store %arg14[%c1_45, %c0_46], %43 {strides = array<i32>} : memref<14x168xf32, #tpu.memory_space<vmem>>, vector<1x168xf32>,
    %c4_47 = arith.constant 4 : index
    %c0_48 = arith.constant 0 : index
    %45 = vector.load %arg13[%c4_47, %c0_48] : memref<28x168xf32, #tpu.memory_space<vmem>>, vector<1x168xf32>
    %c5 = arith.constant 5 : index
    %c0_49 = arith.constant 0 : index
    %46 = vector.load %arg13[%c5, %c0_49] : memref<28x168xf32, #tpu.memory_space<vmem>>, vector<1x168xf32>
    %47 = arith.maximumf %45, %46 : vector<1x168xf32>
    %c2_50 = arith.constant 2 : index
    %c0_51 = arith.constant 0 : index
    %48 = vector.load %arg14[%c2_50, %c0_51] : memref<14x168xf32, #tpu.memory_space<vmem>>, vector<1x168xf32>
    tpu.vector_store %arg14[%c2_50, %c0_51], %47 {strides = array<i32>} : memref<14x168xf32, #tpu.memory_space<vmem>>, vector<1x168xf32>,
    %c6 = arith.constant 6 : index
    %c0_52 = arith.constant 0 : index
    %49 = vector.load %arg13[%c6, %c0_52] : memref<28x168xf32, #tpu.memory_space<vmem>>, vector<1x168xf32>
    %c7 = arith.constant 7 : index
    %c0_53 = arith.constant 0 : index
    %50 = vector.load %arg13[%c7, %c0_53] : memref<28x168xf32, #tpu.memory_space<vmem>>, vector<1x168xf32>
    %51 = arith.maximumf %49, %50 : vector<1x168xf32>
    %c3_54 = arith.constant 3 : index
    %c0_55 = arith.constant 0 : index
    %52 = vector.load %arg14[%c3_54, %c0_55] : memref<14x168xf32, #tpu.memory_space<vmem>>, vector<1x168xf32>
    tpu.vector_store %arg14[%c3_54, %c0_55], %51 {strides = array<i32>} : memref<14x168xf32, #tpu.memory_space<vmem>>, vector<1x168xf32>,
    %c8 = arith.constant 8 : index
    %c0_56 = arith.constant 0 : index
    %53 = vector.load %arg13[%c8, %c0_56] : memref<28x168xf32, #tpu.memory_space<vmem>>, vector<1x168xf32>
    %c9 = arith.constant 9 : index
    %c0_57 = arith.constant 0 : index
    %54 = vector.load %arg13[%c9, %c0_57] : memref<28x168xf32, #tpu.memory_space<vmem>>, vector<1x168xf32>
    %55 = arith.maximumf %53, %54 : vector<1x168xf32>
    %c4_58 = arith.constant 4 : index
    %c0_59 = arith.constant 0 : index
    %56 = vector.load %arg14[%c4_58, %c0_59] : memref<14x168xf32, #tpu.memory_space<vmem>>, vector<1x168xf32>
    tpu.vector_store %arg14[%c4_58, %c0_59], %55 {strides = array<i32>} : memref<14x168xf32, #tpu.memory_space<vmem>>, vector<1x168xf32>,
    %c10 = arith.constant 10 : index
    %c0_60 = arith.constant 0 : index
    %57 = vector.load %arg13[%c10, %c0_60] : memref<28x168xf32, #tpu.memory_space<vmem>>, vector<1x168xf32>
    %c11 = arith.constant 11 : index
    %c0_61 = arith.constant 0 : index
    %58 = vector.load %arg13[%c11, %c0_61] : memref<28x168xf32, #tpu.memory_space<vmem>>, vector<1x168xf32>
    %59 = arith.maximumf %57, %58 : vector<1x168xf32>
    %c5_62 = arith.constant 5 : index
    %c0_63 = arith.constant 0 : index
    %60 = vector.load %arg14[%c5_62, %c0_63] : memref<14x168xf32, #tpu.memory_space<vmem>>, vector<1x168xf32>
    tpu.vector_store %arg14[%c5_62, %c0_63], %59 {strides = array<i32>} : memref<14x168xf32, #tpu.memory_space<vmem>>, vector<1x168xf32>,
    %c12 = arith.constant 12 : index
    %c0_64 = arith.constant 0 : index
    %61 = vector.load %arg13[%c12, %c0_64] : memref<28x168xf32, #tpu.memory_space<vmem>>, vector<1x168xf32>
    %c13 = arith.constant 13 : index
    %c0_65 = arith.constant 0 : index
    %62 = vector.load %arg13[%c13, %c0_65] : memref<28x168xf32, #tpu.memory_space<vmem>>, vector<1x168xf32>
    %63 = arith.maximumf %61, %62 : vector<1x168xf32>
    %c6_66 = arith.constant 6 : index
    %c0_67 = arith.constant 0 : index
    %64 = vector.load %arg14[%c6_66, %c0_67] : memref<14x168xf32, #tpu.memory_space<vmem>>, vector<1x168xf32>
    tpu.vector_store %arg14[%c6_66, %c0_67], %63 {strides = array<i32>} : memref<14x168xf32, #tpu.memory_space<vmem>>, vector<1x168xf32>,
    %c14 = arith.constant 14 : index
    %c0_68 = arith.constant 0 : index
    %65 = vector.load %arg13[%c14, %c0_68] : memref<28x168xf32, #tpu.memory_space<vmem>>, vector<1x168xf32>
    %c15 = arith.constant 15 : index
    %c0_69 = arith.constant 0 : index
    %66 = vector.load %arg13[%c15, %c0_69] : memref<28x168xf32, #tpu.memory_space<vmem>>, vector<1x168xf32>
    %67 = arith.maximumf %65, %66 : vector<1x168xf32>
    %c7_70 = arith.constant 7 : index
    %c0_71 = arith.constant 0 : index
    %68 = vector.load %arg14[%c7_70, %c0_71] : memref<14x168xf32, #tpu.memory_space<vmem>>, vector<1x168xf32>
    tpu.vector_store %arg14[%c7_70, %c0_71], %67 {strides = array<i32>} : memref<14x168xf32, #tpu.memory_space<vmem>>, vector<1x168xf32>,
    %c16 = arith.constant 16 : index
    %c0_72 = arith.constant 0 : index
    %69 = vector.load %arg13[%c16, %c0_72] : memref<28x168xf32, #tpu.memory_space<vmem>>, vector<1x168xf32>
    %c17 = arith.constant 17 : index
    %c0_73 = arith.constant 0 : index
    %70 = vector.load %arg13[%c17, %c0_73] : memref<28x168xf32, #tpu.memory_space<vmem>>, vector<1x168xf32>
    %71 = arith.maximumf %69, %70 : vector<1x168xf32>
    %c8_74 = arith.constant 8 : index
    %c0_75 = arith.constant 0 : index
    %72 = vector.load %arg14[%c8_74, %c0_75] : memref<14x168xf32, #tpu.memory_space<vmem>>, vector<1x168xf32>
    tpu.vector_store %arg14[%c8_74, %c0_75], %71 {strides = array<i32>} : memref<14x168xf32, #tpu.memory_space<vmem>>, vector<1x168xf32>,
    %c18 = arith.constant 18 : index
    %c0_76 = arith.constant 0 : index
    %73 = vector.load %arg13[%c18, %c0_76] : memref<28x168xf32, #tpu.memory_space<vmem>>, vector<1x168xf32>
    %c19 = arith.constant 19 : index
    %c0_77 = arith.constant 0 : index
    %74 = vector.load %arg13[%c19, %c0_77] : memref<28x168xf32, #tpu.memory_space<vmem>>, vector<1x168xf32>
    %75 = arith.maximumf %73, %74 : vector<1x168xf32>
    %c9_78 = arith.constant 9 : index
    %c0_79 = arith.constant 0 : index
    %76 = vector.load %arg14[%c9_78, %c0_79] : memref<14x168xf32, #tpu.memory_space<vmem>>, vector<1x168xf32>
    tpu.vector_store %arg14[%c9_78, %c0_79], %75 {strides = array<i32>} : memref<14x168xf32, #tpu.memory_space<vmem>>, vector<1x168xf32>,
    %c20 = arith.constant 20 : index
    %c0_80 = arith.constant 0 : index
    %77 = vector.load %arg13[%c20, %c0_80] : memref<28x168xf32, #tpu.memory_space<vmem>>, vector<1x168xf32>
    %c21 = arith.constant 21 : index
    %c0_81 = arith.constant 0 : index
    %78 = vector.load %arg13[%c21, %c0_81] : memref<28x168xf32, #tpu.memory_space<vmem>>, vector<1x168xf32>
    %79 = arith.maximumf %77, %78 : vector<1x168xf32>
    %c10_82 = arith.constant 10 : index
    %c0_83 = arith.constant 0 : index
    %80 = vector.load %arg14[%c10_82, %c0_83] : memref<14x168xf32, #tpu.memory_space<vmem>>, vector<1x168xf32>
    tpu.vector_store %arg14[%c10_82, %c0_83], %79 {strides = array<i32>} : memref<14x168xf32, #tpu.memory_space<vmem>>, vector<1x168xf32>,
    %c22 = arith.constant 22 : index
    %c0_84 = arith.constant 0 : index
    %81 = vector.load %arg13[%c22, %c0_84] : memref<28x168xf32, #tpu.memory_space<vmem>>, vector<1x168xf32>
    %c23 = arith.constant 23 : index
    %c0_85 = arith.constant 0 : index
    %82 = vector.load %arg13[%c23, %c0_85] : memref<28x168xf32, #tpu.memory_space<vmem>>, vector<1x168xf32>
    %83 = arith.maximumf %81, %82 : vector<1x168xf32>
    %c11_86 = arith.constant 11 : index
    %c0_87 = arith.constant 0 : index
    %84 = vector.load %arg14[%c11_86, %c0_87] : memref<14x168xf32, #tpu.memory_space<vmem>>, vector<1x168xf32>
    tpu.vector_store %arg14[%c11_86, %c0_87], %83 {strides = array<i32>} : memref<14x168xf32, #tpu.memory_space<vmem>>, vector<1x168xf32>,
    %c24 = arith.constant 24 : index
    %c0_88 = arith.constant 0 : index
    %85 = vector.load %arg13[%c24, %c0_88] : memref<28x168xf32, #tpu.memory_space<vmem>>, vector<1x168xf32>
    %c25 = arith.constant 25 : index
    %c0_89 = arith.constant 0 : index
    %86 = vector.load %arg13[%c25, %c0_89] : memref<28x168xf32, #tpu.memory_space<vmem>>, vector<1x168xf32>
    %87 = arith.maximumf %85, %86 : vector<1x168xf32>
    %c12_90 = arith.constant 12 : index
    %c0_91 = arith.constant 0 : index
    %88 = vector.load %arg14[%c12_90, %c0_91] : memref<14x168xf32, #tpu.memory_space<vmem>>, vector<1x168xf32>
    tpu.vector_store %arg14[%c12_90, %c0_91], %87 {strides = array<i32>} : memref<14x168xf32, #tpu.memory_space<vmem>>, vector<1x168xf32>,
    %c26 = arith.constant 26 : index
    %c0_92 = arith.constant 0 : index
    %89 = vector.load %arg13[%c26, %c0_92] : memref<28x168xf32, #tpu.memory_space<vmem>>, vector<1x168xf32>
    %c27 = arith.constant 27 : index
    %c0_93 = arith.constant 0 : index
    %90 = vector.load %arg13[%c27, %c0_93] : memref<28x168xf32, #tpu.memory_space<vmem>>, vector<1x168xf32>
    %91 = arith.maximumf %89, %90 : vector<1x168xf32>
    %c13_94 = arith.constant 13 : index
    %c0_95 = arith.constant 0 : index
    %92 = vector.load %arg14[%c13_94, %c0_95] : memref<14x168xf32, #tpu.memory_space<vmem>>, vector<1x168xf32>
    tpu.vector_store %arg14[%c13_94, %c0_95], %91 {strides = array<i32>} : memref<14x168xf32, #tpu.memory_space<vmem>>, vector<1x168xf32>,
    %c0_96 = arith.constant 0 : index
    %c0_97 = arith.constant 0 : index
    %93 = vector.load %arg14[%c0_96, %c0_97] : memref<14x168xf32, #tpu.memory_space<vmem>>, vector<14x6xf32>
    %c0_98 = arith.constant 0 : index
    %c6_99 = arith.constant 6 : index
    %94 = vector.load %arg14[%c0_98, %c6_99] : memref<14x168xf32, #tpu.memory_space<vmem>>, vector<14x6xf32>
    %95 = arith.maximumf %93, %94 : vector<14x6xf32>
    %c0_100 = arith.constant 0 : index
    %c0_101 = arith.constant 0 : index
    %96 = vector.load %arg15[%c0_100, %c0_101] : memref<14x84xf32, #tpu.memory_space<vmem>>, vector<14x6xf32>
    tpu.vector_store %arg15[%c0_100, %c0_101], %95 {strides = array<i32>} : memref<14x84xf32, #tpu.memory_space<vmem>>, vector<14x6xf32>,
    %c0_102 = arith.constant 0 : index
    %c12_103 = arith.constant 12 : index
    %97 = vector.load %arg14[%c0_102, %c12_103] : memref<14x168xf32, #tpu.memory_space<vmem>>, vector<14x6xf32>
    %c0_104 = arith.constant 0 : index
    %c18_105 = arith.constant 18 : index
    %98 = vector.load %arg14[%c0_104, %c18_105] : memref<14x168xf32, #tpu.memory_space<vmem>>, vector<14x6xf32>
    %99 = arith.maximumf %97, %98 : vector<14x6xf32>
    %c0_106 = arith.constant 0 : index
    %c6_107 = arith.constant 6 : index
    %100 = vector.load %arg15[%c0_106, %c6_107] : memref<14x84xf32, #tpu.memory_space<vmem>>, vector<14x6xf32>
    tpu.vector_store %arg15[%c0_106, %c6_107], %99 {strides = array<i32>} : memref<14x84xf32, #tpu.memory_space<vmem>>, vector<14x6xf32>,
    %c0_108 = arith.constant 0 : index
    %c24_109 = arith.constant 24 : index
    %101 = vector.load %arg14[%c0_108, %c24_109] : memref<14x168xf32, #tpu.memory_space<vmem>>, vector<14x6xf32>
    %c0_110 = arith.constant 0 : index
    %c30 = arith.constant 30 : index
    %102 = vector.load %arg14[%c0_110, %c30] : memref<14x168xf32, #tpu.memory_space<vmem>>, vector<14x6xf32>
    %103 = arith.maximumf %101, %102 : vector<14x6xf32>
    %c0_111 = arith.constant 0 : index
    %c12_112 = arith.constant 12 : index
    %104 = vector.load %arg15[%c0_111, %c12_112] : memref<14x84xf32, #tpu.memory_space<vmem>>, vector<14x6xf32>
    tpu.vector_store %arg15[%c0_111, %c12_112], %103 {strides = array<i32>} : memref<14x84xf32, #tpu.memory_space<vmem>>, vector<14x6xf32>,
    %c0_113 = arith.constant 0 : index
    %c36 = arith.constant 36 : index
    %105 = vector.load %arg14[%c0_113, %c36] : memref<14x168xf32, #tpu.memory_space<vmem>>, vector<14x6xf32>
    %c0_114 = arith.constant 0 : index
    %c42 = arith.constant 42 : index
    %106 = vector.load %arg14[%c0_114, %c42] : memref<14x168xf32, #tpu.memory_space<vmem>>, vector<14x6xf32>
    %107 = arith.maximumf %105, %106 : vector<14x6xf32>
    %c0_115 = arith.constant 0 : index
    %c18_116 = arith.constant 18 : index
    %108 = vector.load %arg15[%c0_115, %c18_116] : memref<14x84xf32, #tpu.memory_space<vmem>>, vector<14x6xf32>
    tpu.vector_store %arg15[%c0_115, %c18_116], %107 {strides = array<i32>} : memref<14x84xf32, #tpu.memory_space<vmem>>, vector<14x6xf32>,
    %c0_117 = arith.constant 0 : index
    %c48 = arith.constant 48 : index
    %109 = vector.load %arg14[%c0_117, %c48] : memref<14x168xf32, #tpu.memory_space<vmem>>, vector<14x6xf32>
    %c0_118 = arith.constant 0 : index
    %c54 = arith.constant 54 : index
    %110 = vector.load %arg14[%c0_118, %c54] : memref<14x168xf32, #tpu.memory_space<vmem>>, vector<14x6xf32>
    %111 = arith.maximumf %109, %110 : vector<14x6xf32>
    %c0_119 = arith.constant 0 : index
    %c24_120 = arith.constant 24 : index
    %112 = vector.load %arg15[%c0_119, %c24_120] : memref<14x84xf32, #tpu.memory_space<vmem>>, vector<14x6xf32>
    tpu.vector_store %arg15[%c0_119, %c24_120], %111 {strides = array<i32>} : memref<14x84xf32, #tpu.memory_space<vmem>>, vector<14x6xf32>,
    %c0_121 = arith.constant 0 : index
    %c60 = arith.constant 60 : index
    %113 = vector.load %arg14[%c0_121, %c60] : memref<14x168xf32, #tpu.memory_space<vmem>>, vector<14x6xf32>
    %c0_122 = arith.constant 0 : index
    %c66 = arith.constant 66 : index
    %114 = vector.load %arg14[%c0_122, %c66] : memref<14x168xf32, #tpu.memory_space<vmem>>, vector<14x6xf32>
    %115 = arith.maximumf %113, %114 : vector<14x6xf32>
    %c0_123 = arith.constant 0 : index
    %c30_124 = arith.constant 30 : index
    %116 = vector.load %arg15[%c0_123, %c30_124] : memref<14x84xf32, #tpu.memory_space<vmem>>, vector<14x6xf32>
    tpu.vector_store %arg15[%c0_123, %c30_124], %115 {strides = array<i32>} : memref<14x84xf32, #tpu.memory_space<vmem>>, vector<14x6xf32>,
    %c0_125 = arith.constant 0 : index
    %c72 = arith.constant 72 : index
    %117 = vector.load %arg14[%c0_125, %c72] : memref<14x168xf32, #tpu.memory_space<vmem>>, vector<14x6xf32>
    %c0_126 = arith.constant 0 : index
    %c78 = arith.constant 78 : index
    %118 = vector.load %arg14[%c0_126, %c78] : memref<14x168xf32, #tpu.memory_space<vmem>>, vector<14x6xf32>
    %119 = arith.maximumf %117, %118 : vector<14x6xf32>
    %c0_127 = arith.constant 0 : index
    %c36_128 = arith.constant 36 : index
    %120 = vector.load %arg15[%c0_127, %c36_128] : memref<14x84xf32, #tpu.memory_space<vmem>>, vector<14x6xf32>
    tpu.vector_store %arg15[%c0_127, %c36_128], %119 {strides = array<i32>} : memref<14x84xf32, #tpu.memory_space<vmem>>, vector<14x6xf32>,
    %c0_129 = arith.constant 0 : index
    %c84 = arith.constant 84 : index
    %121 = vector.load %arg14[%c0_129, %c84] : memref<14x168xf32, #tpu.memory_space<vmem>>, vector<14x6xf32>
    %c0_130 = arith.constant 0 : index
    %c90 = arith.constant 90 : index
    %122 = vector.load %arg14[%c0_130, %c90] : memref<14x168xf32, #tpu.memory_space<vmem>>, vector<14x6xf32>
    %123 = arith.maximumf %121, %122 : vector<14x6xf32>
    %c0_131 = arith.constant 0 : index
    %c42_132 = arith.constant 42 : index
    %124 = vector.load %arg15[%c0_131, %c42_132] : memref<14x84xf32, #tpu.memory_space<vmem>>, vector<14x6xf32>
    tpu.vector_store %arg15[%c0_131, %c42_132], %123 {strides = array<i32>} : memref<14x84xf32, #tpu.memory_space<vmem>>, vector<14x6xf32>,
    %c0_133 = arith.constant 0 : index
    %c96 = arith.constant 96 : index
    %125 = vector.load %arg14[%c0_133, %c96] : memref<14x168xf32, #tpu.memory_space<vmem>>, vector<14x6xf32>
    %c0_134 = arith.constant 0 : index
    %c102 = arith.constant 102 : index
    %126 = vector.load %arg14[%c0_134, %c102] : memref<14x168xf32, #tpu.memory_space<vmem>>, vector<14x6xf32>
    %127 = arith.maximumf %125, %126 : vector<14x6xf32>
    %c0_135 = arith.constant 0 : index
    %c48_136 = arith.constant 48 : index
    %128 = vector.load %arg15[%c0_135, %c48_136] : memref<14x84xf32, #tpu.memory_space<vmem>>, vector<14x6xf32>
    tpu.vector_store %arg15[%c0_135, %c48_136], %127 {strides = array<i32>} : memref<14x84xf32, #tpu.memory_space<vmem>>, vector<14x6xf32>,
    %c0_137 = arith.constant 0 : index
    %c108 = arith.constant 108 : index
    %129 = vector.load %arg14[%c0_137, %c108] : memref<14x168xf32, #tpu.memory_space<vmem>>, vector<14x6xf32>
    %c0_138 = arith.constant 0 : index
    %c114 = arith.constant 114 : index
    %130 = vector.load %arg14[%c0_138, %c114] : memref<14x168xf32, #tpu.memory_space<vmem>>, vector<14x6xf32>
    %131 = arith.maximumf %129, %130 : vector<14x6xf32>
    %c0_139 = arith.constant 0 : index
    %c54_140 = arith.constant 54 : index
    %132 = vector.load %arg15[%c0_139, %c54_140] : memref<14x84xf32, #tpu.memory_space<vmem>>, vector<14x6xf32>
    tpu.vector_store %arg15[%c0_139, %c54_140], %131 {strides = array<i32>} : memref<14x84xf32, #tpu.memory_space<vmem>>, vector<14x6xf32>,
    %c0_141 = arith.constant 0 : index
    %c120 = arith.constant 120 : index
    %133 = vector.load %arg14[%c0_141, %c120] : memref<14x168xf32, #tpu.memory_space<vmem>>, vector<14x6xf32>
    %c0_142 = arith.constant 0 : index
    %c126 = arith.constant 126 : index
    %134 = vector.load %arg14[%c0_142, %c126] : memref<14x168xf32, #tpu.memory_space<vmem>>, vector<14x6xf32>
    %135 = arith.maximumf %133, %134 : vector<14x6xf32>
    %c0_143 = arith.constant 0 : index
    %c60_144 = arith.constant 60 : index
    %136 = vector.load %arg15[%c0_143, %c60_144] : memref<14x84xf32, #tpu.memory_space<vmem>>, vector<14x6xf32>
    tpu.vector_store %arg15[%c0_143, %c60_144], %135 {strides = array<i32>} : memref<14x84xf32, #tpu.memory_space<vmem>>, vector<14x6xf32>,
    %c0_145 = arith.constant 0 : index
    %c132 = arith.constant 132 : index
    %137 = vector.load %arg14[%c0_145, %c132] : memref<14x168xf32, #tpu.memory_space<vmem>>, vector<14x6xf32>
    %c0_146 = arith.constant 0 : index
    %c138 = arith.constant 138 : index
    %138 = vector.load %arg14[%c0_146, %c138] : memref<14x168xf32, #tpu.memory_space<vmem>>, vector<14x6xf32>
    %139 = arith.maximumf %137, %138 : vector<14x6xf32>
    %c0_147 = arith.constant 0 : index
    %c66_148 = arith.constant 66 : index
    %140 = vector.load %arg15[%c0_147, %c66_148] : memref<14x84xf32, #tpu.memory_space<vmem>>, vector<14x6xf32>
    tpu.vector_store %arg15[%c0_147, %c66_148], %139 {strides = array<i32>} : memref<14x84xf32, #tpu.memory_space<vmem>>, vector<14x6xf32>,
    %c0_149 = arith.constant 0 : index
    %c144 = arith.constant 144 : index
    %141 = vector.load %arg14[%c0_149, %c144] : memref<14x168xf32, #tpu.memory_space<vmem>>, vector<14x6xf32>
    %c0_150 = arith.constant 0 : index
    %c150 = arith.constant 150 : index
    %142 = vector.load %arg14[%c0_150, %c150] : memref<14x168xf32, #tpu.memory_space<vmem>>, vector<14x6xf32>
    %143 = arith.maximumf %141, %142 : vector<14x6xf32>
    %c0_151 = arith.constant 0 : index
    %c72_152 = arith.constant 72 : index
    %144 = vector.load %arg15[%c0_151, %c72_152] : memref<14x84xf32, #tpu.memory_space<vmem>>, vector<14x6xf32>
    tpu.vector_store %arg15[%c0_151, %c72_152], %143 {strides = array<i32>} : memref<14x84xf32, #tpu.memory_space<vmem>>, vector<14x6xf32>,
    %c0_153 = arith.constant 0 : index
    %c156 = arith.constant 156 : index
    %145 = vector.load %arg14[%c0_153, %c156] : memref<14x168xf32, #tpu.memory_space<vmem>>, vector<14x6xf32>
    %c0_154 = arith.constant 0 : index
    %c162 = arith.constant 162 : index
    %146 = vector.load %arg14[%c0_154, %c162] : memref<14x168xf32, #tpu.memory_space<vmem>>, vector<14x6xf32>
    %147 = arith.maximumf %145, %146 : vector<14x6xf32>
    %c0_155 = arith.constant 0 : index
    %c78_156 = arith.constant 78 : index
    %148 = vector.load %arg15[%c0_155, %c78_156] : memref<14x84xf32, #tpu.memory_space<vmem>>, vector<14x6xf32>
    tpu.vector_store %arg15[%c0_155, %c78_156], %147 {strides = array<i32>} : memref<14x84xf32, #tpu.memory_space<vmem>>, vector<14x6xf32>,
    %cst_157 = arith.constant 0.000000e+00 : f32
    %149 = vector.broadcast %cst_157 : f32 to vector<10x160xf32>
    %c0_158 = arith.constant 0 : index
    %c0_159 = arith.constant 0 : index
    %150 = vector.load %arg15[%c0_158, %c0_159] : memref<14x84xf32, #tpu.memory_space<vmem>>, vector<10x84xf32>
    %c0_160 = arith.constant 0 : index
    %c0_161 = arith.constant 0 : index
    %c0_162 = arith.constant 0 : index
    %151 = vector.load %arg4[%c0_160, %c0_161, %c0_162] : memref<5x84x160xf32, #tpu.memory_space<vmem>>, vector<1x84x160xf32>
    %152 = vector.shape_cast %151 : vector<1x84x160xf32> to vector<84x160xf32>
    %cst_163 = arith.constant dense<0.000000e+00> : vector<10x160xf32>
    %153 = tpu.matmul %150, %152, %cst_163 {dimension_numbers = #tpu.dot_dimension_numbers<[1], [0], [0], [1], [0, 0, 1, 1], [], []>} : vector<10x84xf32>, vector<84x160xf32>, vector<10x160xf32> -> vector<10x160xf32>
    %154 = arith.addf %149, %153 : vector<10x160xf32>
    %c1_164 = arith.constant 1 : index
    %c0_165 = arith.constant 0 : index
    %155 = vector.load %arg15[%c1_164, %c0_165] : memref<14x84xf32, #tpu.memory_space<vmem>>, vector<10x84xf32>
    %c1_166 = arith.constant 1 : index
    %c0_167 = arith.constant 0 : index
    %c0_168 = arith.constant 0 : index
    %156 = vector.load %arg4[%c1_166, %c0_167, %c0_168] : memref<5x84x160xf32, #tpu.memory_space<vmem>>, vector<1x84x160xf32>
    %157 = vector.shape_cast %156 : vector<1x84x160xf32> to vector<84x160xf32>
    %cst_169 = arith.constant dense<0.000000e+00> : vector<10x160xf32>
    %158 = tpu.matmul %155, %157, %cst_169 {dimension_numbers = #tpu.dot_dimension_numbers<[1], [0], [0], [1], [0, 0, 1, 1], [], []>} : vector<10x84xf32>, vector<84x160xf32>, vector<10x160xf32> -> vector<10x160xf32>
    %159 = arith.addf %154, %158 : vector<10x160xf32>
    %c2_170 = arith.constant 2 : index
    %c0_171 = arith.constant 0 : index
    %160 = vector.load %arg15[%c2_170, %c0_171] : memref<14x84xf32, #tpu.memory_space<vmem>>, vector<10x84xf32>
    %c2_172 = arith.constant 2 : index
    %c0_173 = arith.constant 0 : index
    %c0_174 = arith.constant 0 : index
    %161 = vector.load %arg4[%c2_172, %c0_173, %c0_174] : memref<5x84x160xf32, #tpu.memory_space<vmem>>, vector<1x84x160xf32>
    %162 = vector.shape_cast %161 : vector<1x84x160xf32> to vector<84x160xf32>
    %cst_175 = arith.constant dense<0.000000e+00> : vector<10x160xf32>
    %163 = tpu.matmul %160, %162, %cst_175 {dimension_numbers = #tpu.dot_dimension_numbers<[1], [0], [0], [1], [0, 0, 1, 1], [], []>} : vector<10x84xf32>, vector<84x160xf32>, vector<10x160xf32> -> vector<10x160xf32>
    %164 = arith.addf %159, %163 : vector<10x160xf32>
    %c3_176 = arith.constant 3 : index
    %c0_177 = arith.constant 0 : index
    %165 = vector.load %arg15[%c3_176, %c0_177] : memref<14x84xf32, #tpu.memory_space<vmem>>, vector<10x84xf32>
    %c3_178 = arith.constant 3 : index
    %c0_179 = arith.constant 0 : index
    %c0_180 = arith.constant 0 : index
    %166 = vector.load %arg4[%c3_178, %c0_179, %c0_180] : memref<5x84x160xf32, #tpu.memory_space<vmem>>, vector<1x84x160xf32>
    %167 = vector.shape_cast %166 : vector<1x84x160xf32> to vector<84x160xf32>
    %cst_181 = arith.constant dense<0.000000e+00> : vector<10x160xf32>
    %168 = tpu.matmul %165, %167, %cst_181 {dimension_numbers = #tpu.dot_dimension_numbers<[1], [0], [0], [1], [0, 0, 1, 1], [], []>} : vector<10x84xf32>, vector<84x160xf32>, vector<10x160xf32> -> vector<10x160xf32>
    %169 = arith.addf %164, %168 : vector<10x160xf32>
    %c4_182 = arith.constant 4 : index
    %c0_183 = arith.constant 0 : index
    %170 = vector.load %arg15[%c4_182, %c0_183] : memref<14x84xf32, #tpu.memory_space<vmem>>, vector<10x84xf32>
    %c4_184 = arith.constant 4 : index
    %c0_185 = arith.constant 0 : index
    %c0_186 = arith.constant 0 : index
    %171 = vector.load %arg4[%c4_184, %c0_185, %c0_186] : memref<5x84x160xf32, #tpu.memory_space<vmem>>, vector<1x84x160xf32>
    %172 = vector.shape_cast %171 : vector<1x84x160xf32> to vector<84x160xf32>
    %cst_187 = arith.constant dense<0.000000e+00> : vector<10x160xf32>
    %173 = tpu.matmul %170, %172, %cst_187 {dimension_numbers = #tpu.dot_dimension_numbers<[1], [0], [0], [1], [0, 0, 1, 1], [], []>} : vector<10x84xf32>, vector<84x160xf32>, vector<10x160xf32> -> vector<10x160xf32>
    %174 = arith.addf %169, %173 : vector<10x160xf32>
    %c0_188 = arith.constant 0 : index
    %c0_189 = arith.constant 0 : index
    %175 = vector.load %arg5[%c0_188, %c0_189] : memref<1x160xf32, #tpu.memory_space<vmem>>, vector<1x160xf32>
    %176 = vector.broadcast %175 : vector<1x160xf32> to vector<10x160xf32>
    %177 = arith.addf %174, %176 : vector<10x160xf32>
    %cst_190 = arith.constant 0.000000e+00 : f32
    %178 = vector.broadcast %cst_190 : f32 to vector<10x160xf32>
    %179 = arith.maximumf %177, %178 : vector<10x160xf32>
    %c0_191 = arith.constant 0 : index
    %c0_192 = arith.constant 0 : index
    %180 = vector.load %arg16[%c0_191, %c0_192] : memref<10x160xf32, #tpu.memory_space<vmem>>, vector<10x160xf32>
    tpu.vector_store %arg16[%c0_191, %c0_192], %179 {strides = array<i32>} : memref<10x160xf32, #tpu.memory_space<vmem>>, vector<10x160xf32>,
    %c0_193 = arith.constant 0 : index
    %c0_194 = arith.constant 0 : index
    %181 = vector.load %arg16[%c0_193, %c0_194] : memref<10x160xf32, #tpu.memory_space<vmem>>, vector<1x160xf32>
    %c1_195 = arith.constant 1 : index
    %c0_196 = arith.constant 0 : index
    %182 = vector.load %arg16[%c1_195, %c0_196] : memref<10x160xf32, #tpu.memory_space<vmem>>, vector<1x160xf32>
    %183 = arith.maximumf %181, %182 : vector<1x160xf32>
    %c0_197 = arith.constant 0 : index
    %c0_198 = arith.constant 0 : index
    %184 = vector.load %arg17[%c0_197, %c0_198] : memref<5x160xf32, #tpu.memory_space<vmem>>, vector<1x160xf32>
    tpu.vector_store %arg17[%c0_197, %c0_198], %183 {strides = array<i32>} : memref<5x160xf32, #tpu.memory_space<vmem>>, vector<1x160xf32>,
    %c2_199 = arith.constant 2 : index
    %c0_200 = arith.constant 0 : index
    %185 = vector.load %arg16[%c2_199, %c0_200] : memref<10x160xf32, #tpu.memory_space<vmem>>, vector<1x160xf32>
    %c3_201 = arith.constant 3 : index
    %c0_202 = arith.constant 0 : index
    %186 = vector.load %arg16[%c3_201, %c0_202] : memref<10x160xf32, #tpu.memory_space<vmem>>, vector<1x160xf32>
    %187 = arith.maximumf %185, %186 : vector<1x160xf32>
    %c1_203 = arith.constant 1 : index
    %c0_204 = arith.constant 0 : index
    %188 = vector.load %arg17[%c1_203, %c0_204] : memref<5x160xf32, #tpu.memory_space<vmem>>, vector<1x160xf32>
    tpu.vector_store %arg17[%c1_203, %c0_204], %187 {strides = array<i32>} : memref<5x160xf32, #tpu.memory_space<vmem>>, vector<1x160xf32>,
    %c4_205 = arith.constant 4 : index
    %c0_206 = arith.constant 0 : index
    %189 = vector.load %arg16[%c4_205, %c0_206] : memref<10x160xf32, #tpu.memory_space<vmem>>, vector<1x160xf32>
    %c5_207 = arith.constant 5 : index
    %c0_208 = arith.constant 0 : index
    %190 = vector.load %arg16[%c5_207, %c0_208] : memref<10x160xf32, #tpu.memory_space<vmem>>, vector<1x160xf32>
    %191 = arith.maximumf %189, %190 : vector<1x160xf32>
    %c2_209 = arith.constant 2 : index
    %c0_210 = arith.constant 0 : index
    %192 = vector.load %arg17[%c2_209, %c0_210] : memref<5x160xf32, #tpu.memory_space<vmem>>, vector<1x160xf32>
    tpu.vector_store %arg17[%c2_209, %c0_210], %191 {strides = array<i32>} : memref<5x160xf32, #tpu.memory_space<vmem>>, vector<1x160xf32>,
    %c6_211 = arith.constant 6 : index
    %c0_212 = arith.constant 0 : index
    %193 = vector.load %arg16[%c6_211, %c0_212] : memref<10x160xf32, #tpu.memory_space<vmem>>, vector<1x160xf32>
    %c7_213 = arith.constant 7 : index
    %c0_214 = arith.constant 0 : index
    %194 = vector.load %arg16[%c7_213, %c0_214] : memref<10x160xf32, #tpu.memory_space<vmem>>, vector<1x160xf32>
    %195 = arith.maximumf %193, %194 : vector<1x160xf32>
    %c3_215 = arith.constant 3 : index
    %c0_216 = arith.constant 0 : index
    %196 = vector.load %arg17[%c3_215, %c0_216] : memref<5x160xf32, #tpu.memory_space<vmem>>, vector<1x160xf32>
    tpu.vector_store %arg17[%c3_215, %c0_216], %195 {strides = array<i32>} : memref<5x160xf32, #tpu.memory_space<vmem>>, vector<1x160xf32>,
    %c8_217 = arith.constant 8 : index
    %c0_218 = arith.constant 0 : index
    %197 = vector.load %arg16[%c8_217, %c0_218] : memref<10x160xf32, #tpu.memory_space<vmem>>, vector<1x160xf32>
    %c9_219 = arith.constant 9 : index
    %c0_220 = arith.constant 0 : index
    %198 = vector.load %arg16[%c9_219, %c0_220] : memref<10x160xf32, #tpu.memory_space<vmem>>, vector<1x160xf32>
    %199 = arith.maximumf %197, %198 : vector<1x160xf32>
    %c4_221 = arith.constant 4 : index
    %c0_222 = arith.constant 0 : index
    %200 = vector.load %arg17[%c4_221, %c0_222] : memref<5x160xf32, #tpu.memory_space<vmem>>, vector<1x160xf32>
    tpu.vector_store %arg17[%c4_221, %c0_222], %199 {strides = array<i32>} : memref<5x160xf32, #tpu.memory_space<vmem>>, vector<1x160xf32>,
    %c0_223 = arith.constant 0 : index
    %c0_224 = arith.constant 0 : index
    %201 = vector.load %arg17[%c0_223, %c0_224] : memref<5x160xf32, #tpu.memory_space<vmem>>, vector<5x16xf32>
    %c0_225 = arith.constant 0 : index
    %c16_226 = arith.constant 16 : index
    %202 = vector.load %arg17[%c0_225, %c16_226] : memref<5x160xf32, #tpu.memory_space<vmem>>, vector<5x16xf32>
    %203 = arith.maximumf %201, %202 : vector<5x16xf32>
    %c0_227 = arith.constant 0 : index
    %c0_228 = arith.constant 0 : index
    %204 = vector.load %arg18[%c0_227, %c0_228] : memref<5x80xf32, #tpu.memory_space<vmem>>, vector<5x16xf32>
    tpu.vector_store %arg18[%c0_227, %c0_228], %203 {strides = array<i32>} : memref<5x80xf32, #tpu.memory_space<vmem>>, vector<5x16xf32>,
    %c0_229 = arith.constant 0 : index
    %c32 = arith.constant 32 : index
    %205 = vector.load %arg17[%c0_229, %c32] : memref<5x160xf32, #tpu.memory_space<vmem>>, vector<5x16xf32>
    %c0_230 = arith.constant 0 : index
    %c48_231 = arith.constant 48 : index
    %206 = vector.load %arg17[%c0_230, %c48_231] : memref<5x160xf32, #tpu.memory_space<vmem>>, vector<5x16xf32>
    %207 = arith.maximumf %205, %206 : vector<5x16xf32>
    %c0_232 = arith.constant 0 : index
    %c16_233 = arith.constant 16 : index
    %208 = vector.load %arg18[%c0_232, %c16_233] : memref<5x80xf32, #tpu.memory_space<vmem>>, vector<5x16xf32>
    tpu.vector_store %arg18[%c0_232, %c16_233], %207 {strides = array<i32>} : memref<5x80xf32, #tpu.memory_space<vmem>>, vector<5x16xf32>,
    %c0_234 = arith.constant 0 : index
    %c64 = arith.constant 64 : index
    %209 = vector.load %arg17[%c0_234, %c64] : memref<5x160xf32, #tpu.memory_space<vmem>>, vector<5x16xf32>
    %c0_235 = arith.constant 0 : index
    %c80 = arith.constant 80 : index
    %210 = vector.load %arg17[%c0_235, %c80] : memref<5x160xf32, #tpu.memory_space<vmem>>, vector<5x16xf32>
    %211 = arith.maximumf %209, %210 : vector<5x16xf32>
    %c0_236 = arith.constant 0 : index
    %c32_237 = arith.constant 32 : index
    %212 = vector.load %arg18[%c0_236, %c32_237] : memref<5x80xf32, #tpu.memory_space<vmem>>, vector<5x16xf32>
    tpu.vector_store %arg18[%c0_236, %c32_237], %211 {strides = array<i32>} : memref<5x80xf32, #tpu.memory_space<vmem>>, vector<5x16xf32>,
    %c0_238 = arith.constant 0 : index
    %c96_239 = arith.constant 96 : index
    %213 = vector.load %arg17[%c0_238, %c96_239] : memref<5x160xf32, #tpu.memory_space<vmem>>, vector<5x16xf32>
    %c0_240 = arith.constant 0 : index
    %c112 = arith.constant 112 : index
    %214 = vector.load %arg17[%c0_240, %c112] : memref<5x160xf32, #tpu.memory_space<vmem>>, vector<5x16xf32>
    %215 = arith.maximumf %213, %214 : vector<5x16xf32>
    %c0_241 = arith.constant 0 : index
    %c48_242 = arith.constant 48 : index
    %216 = vector.load %arg18[%c0_241, %c48_242] : memref<5x80xf32, #tpu.memory_space<vmem>>, vector<5x16xf32>
    tpu.vector_store %arg18[%c0_241, %c48_242], %215 {strides = array<i32>} : memref<5x80xf32, #tpu.memory_space<vmem>>, vector<5x16xf32>,
    %c0_243 = arith.constant 0 : index
    %c128 = arith.constant 128 : index
    %217 = vector.load %arg17[%c0_243, %c128] : memref<5x160xf32, #tpu.memory_space<vmem>>, vector<5x16xf32>
    %c0_244 = arith.constant 0 : index
    %c144_245 = arith.constant 144 : index
    %218 = vector.load %arg17[%c0_244, %c144_245] : memref<5x160xf32, #tpu.memory_space<vmem>>, vector<5x16xf32>
    %219 = arith.maximumf %217, %218 : vector<5x16xf32>
    %c0_246 = arith.constant 0 : index
    %c64_247 = arith.constant 64 : index
    %220 = vector.load %arg18[%c0_246, %c64_247] : memref<5x80xf32, #tpu.memory_space<vmem>>, vector<5x16xf32>
    tpu.vector_store %arg18[%c0_246, %c64_247], %219 {strides = array<i32>} : memref<5x80xf32, #tpu.memory_space<vmem>>, vector<5x16xf32>,
    %c0_248 = arith.constant 0 : index
    %c0_249 = arith.constant 0 : index
    %221 = vector.load %arg18[%c0_248, %c0_249] : memref<5x80xf32, #tpu.memory_space<vmem>>, vector<1x80xf32>
    %c0_250 = arith.constant 0 : index
    %c0_251 = arith.constant 0 : index
    %222 = vector.load %arg19[%c0_250, %c0_251] : memref<1x400xf32, #tpu.memory_space<vmem>>, vector<1x80xf32>
    tpu.vector_store %arg19[%c0_250, %c0_251], %221 {strides = array<i32>} : memref<1x400xf32, #tpu.memory_space<vmem>>, vector<1x80xf32>,
    %c1_252 = arith.constant 1 : index
    %c0_253 = arith.constant 0 : index
    %223 = vector.load %arg18[%c1_252, %c0_253] : memref<5x80xf32, #tpu.memory_space<vmem>>, vector<1x80xf32>
    %c0_254 = arith.constant 0 : index
    %c80_255 = arith.constant 80 : index
    %224 = vector.load %arg19[%c0_254, %c80_255] : memref<1x400xf32, #tpu.memory_space<vmem>>, vector<1x80xf32>
    tpu.vector_store %arg19[%c0_254, %c80_255], %223 {strides = array<i32>} : memref<1x400xf32, #tpu.memory_space<vmem>>, vector<1x80xf32>,
    %c2_256 = arith.constant 2 : index
    %c0_257 = arith.constant 0 : index
    %225 = vector.load %arg18[%c2_256, %c0_257] : memref<5x80xf32, #tpu.memory_space<vmem>>, vector<1x80xf32>
    %c0_258 = arith.constant 0 : index
    %c160 = arith.constant 160 : index
    %226 = vector.load %arg19[%c0_258, %c160] : memref<1x400xf32, #tpu.memory_space<vmem>>, vector<1x80xf32>
    tpu.vector_store %arg19[%c0_258, %c160], %225 {strides = array<i32>} : memref<1x400xf32, #tpu.memory_space<vmem>>, vector<1x80xf32>,
    %c3_259 = arith.constant 3 : index
    %c0_260 = arith.constant 0 : index
    %227 = vector.load %arg18[%c3_259, %c0_260] : memref<5x80xf32, #tpu.memory_space<vmem>>, vector<1x80xf32>
    %c0_261 = arith.constant 0 : index
    %c240 = arith.constant 240 : index
    %228 = vector.load %arg19[%c0_261, %c240] : memref<1x400xf32, #tpu.memory_space<vmem>>, vector<1x80xf32>
    tpu.vector_store %arg19[%c0_261, %c240], %227 {strides = array<i32>} : memref<1x400xf32, #tpu.memory_space<vmem>>, vector<1x80xf32>,
    %c4_262 = arith.constant 4 : index
    %c0_263 = arith.constant 0 : index
    %229 = vector.load %arg18[%c4_262, %c0_263] : memref<5x80xf32, #tpu.memory_space<vmem>>, vector<1x80xf32>
    %c0_264 = arith.constant 0 : index
    %c320 = arith.constant 320 : index
    %230 = vector.load %arg19[%c0_264, %c320] : memref<1x400xf32, #tpu.memory_space<vmem>>, vector<1x80xf32>
    tpu.vector_store %arg19[%c0_264, %c320], %229 {strides = array<i32>} : memref<1x400xf32, #tpu.memory_space<vmem>>, vector<1x80xf32>,
    %c0_265 = arith.constant 0 : index
    %c0_266 = arith.constant 0 : index
    %231 = vector.load %arg19[%c0_265, %c0_266] : memref<1x400xf32, #tpu.memory_space<vmem>>, vector<1x400xf32>
    %c0_267 = arith.constant 0 : index
    %c0_268 = arith.constant 0 : index
    %232 = vector.load %arg6[%c0_267, %c0_268] : memref<400x120xf32, #tpu.memory_space<vmem>>, vector<400x120xf32>
    %cst_269 = arith.constant dense<0.000000e+00> : vector<1x120xf32>
    %233 = tpu.matmul %231, %232, %cst_269 {dimension_numbers = #tpu.dot_dimension_numbers<[1], [0], [0], [1], [0, 0, 1, 1], [], []>} : vector<1x400xf32>, vector<400x120xf32>, vector<1x120xf32> -> vector<1x120xf32>
    %c0_270 = arith.constant 0 : index
    %c0_271 = arith.constant 0 : index
    %234 = vector.load %arg7[%c0_270, %c0_271] : memref<1x120xf32, #tpu.memory_space<vmem>>, vector<1x120xf32>
    %235 = arith.addf %233, %234 : vector<1x120xf32>
    %cst_272 = arith.constant 0.000000e+00 : f32
    %236 = vector.broadcast %cst_272 : f32 to vector<1x120xf32>
    %237 = arith.maximumf %235, %236 : vector<1x120xf32>
    %c0_273 = arith.constant 0 : index
    %c0_274 = arith.constant 0 : index
    %238 = vector.load %arg8[%c0_273, %c0_274] : memref<120x84xf32, #tpu.memory_space<vmem>>, vector<120x84xf32>
    %cst_275 = arith.constant dense<0.000000e+00> : vector<1x84xf32>
    %239 = tpu.matmul %237, %238, %cst_275 {dimension_numbers = #tpu.dot_dimension_numbers<[1], [0], [0], [1], [0, 0, 1, 1], [], []>} : vector<1x120xf32>, vector<120x84xf32>, vector<1x84xf32> -> vector<1x84xf32>
    %c0_276 = arith.constant 0 : index
    %c0_277 = arith.constant 0 : index
    %240 = vector.load %arg9[%c0_276, %c0_277] : memref<1x84xf32, #tpu.memory_space<vmem>>, vector<1x84xf32>
    %241 = arith.addf %239, %240 : vector<1x84xf32>
    %cst_278 = arith.constant 0.000000e+00 : f32
    %242 = vector.broadcast %cst_278 : f32 to vector<1x84xf32>
    %243 = arith.maximumf %241, %242 : vector<1x84xf32>
    %c0_279 = arith.constant 0 : index
    %c0_280 = arith.constant 0 : index
    %244 = vector.load %arg10[%c0_279, %c0_280] : memref<84x10xf32, #tpu.memory_space<vmem>>, vector<84x10xf32>
    %cst_281 = arith.constant dense<0.000000e+00> : vector<1x10xf32>
    %245 = tpu.matmul %243, %244, %cst_281 {dimension_numbers = #tpu.dot_dimension_numbers<[1], [0], [0], [1], [0, 0, 1, 1], [], []>} : vector<1x84xf32>, vector<84x10xf32>, vector<1x10xf32> -> vector<1x10xf32>
    %c0_282 = arith.constant 0 : index
    %c0_283 = arith.constant 0 : index
    %246 = vector.load %arg11[%c0_282, %c0_283] : memref<1x10xf32, #tpu.memory_space<vmem>>, vector<1x10xf32>
    %247 = arith.addf %245, %246 : vector<1x10xf32>
    %c0_284 = arith.constant 0 : index
    %c0_285 = arith.constant 0 : index
    %c0_286 = arith.constant 0 : index
    %248 = vector.load %arg12[%c0_284, %c0_285, %c0_286] : memref<1x1x10xf32, #tpu.memory_space<vmem>>, vector<1x1x10xf32>
    %249 = vector.shape_cast %248 : vector<1x1x10xf32> to vector<1x10xf32>
    %250 = vector.shape_cast %247 : vector<1x10xf32> to vector<1x1x10xf32>
    tpu.vector_store %arg12[%c0_284, %c0_285, %c0_286], %250 {strides = array<i32>} : memref<1x1x10xf32, #tpu.memory_space<vmem>>, vector<1x1x10xf32>,
    return
  }
  func.func @transform_0(%arg0: i32) -> (i32, i32, i32) {
    %c0_i32 = arith.constant 0 : i32
    %c0_i32_0 = arith.constant 0 : i32
    %c0_i32_1 = arith.constant 0 : i32
    return %arg0, %c0_i32, %c0_i32_0 : i32, i32, i32
  }
  func.func @transform_1(%arg0: i32) -> (i32, i32, i32) {
    %c0_i32 = arith.constant 0 : i32
    %c0_i32_0 = arith.constant 0 : i32
    %c0_i32_1 = arith.constant 0 : i32
    %c0_i32_2 = arith.constant 0 : i32
    return %c0_i32, %c0_i32_0, %c0_i32_1 : i32, i32, i32
  }
  func.func @transform_2(%arg0: i32) -> (i32, i32) {
    %c0_i32 = arith.constant 0 : i32
    %c0_i32_0 = arith.constant 0 : i32
    %c0_i32_1 = arith.constant 0 : i32
    return %c0_i32, %c0_i32_0 : i32, i32
  }
  func.func @transform_3(%arg0: i32) -> (i32, i32, i32) {
    %c0_i32 = arith.constant 0 : i32
    %c0_i32_0 = arith.constant 0 : i32
    %c0_i32_1 = arith.constant 0 : i32
    %c0_i32_2 = arith.constant 0 : i32
    return %c0_i32, %c0_i32_0, %c0_i32_1 : i32, i32, i32
  }
  func.func @transform_4(%arg0: i32) -> (i32, i32) {
    %c0_i32 = arith.constant 0 : i32
    %c0_i32_0 = arith.constant 0 : i32
    %c0_i32_1 = arith.constant 0 : i32
    return %c0_i32, %c0_i32_0 : i32, i32
  }
  func.func @transform_5(%arg0: i32) -> (i32, i32) {
    %c0_i32 = arith.constant 0 : i32
    %c0_i32_0 = arith.constant 0 : i32
    %c0_i32_1 = arith.constant 0 : i32
    return %c0_i32, %c0_i32_0 : i32, i32
  }
  func.func @transform_6(%arg0: i32) -> (i32, i32) {
    %c0_i32 = arith.constant 0 : i32
    %c0_i32_0 = arith.constant 0 : i32
    %c0_i32_1 = arith.constant 0 : i32
    return %c0_i32, %c0_i32_0 : i32, i32
  }
  func.func @transform_7(%arg0: i32) -> (i32, i32) {
    %c0_i32 = arith.constant 0 : i32
    %c0_i32_0 = arith.constant 0 : i32
    %c0_i32_1 = arith.constant 0 : i32
    return %c0_i32, %c0_i32_0 : i32, i32
  }
  func.func @transform_8(%arg0: i32) -> (i32, i32) {
    %c0_i32 = arith.constant 0 : i32
    %c0_i32_0 = arith.constant 0 : i32
    %c0_i32_1 = arith.constant 0 : i32
    return %c0_i32, %c0_i32_0 : i32, i32
  }
  func.func @transform_9(%arg0: i32) -> (i32, i32) {
    %c0_i32 = arith.constant 0 : i32
    %c0_i32_0 = arith.constant 0 : i32
    %c0_i32_1 = arith.constant 0 : i32
    return %c0_i32, %c0_i32_0 : i32, i32
  }
  func.func @transform_10(%arg0: i32) -> (i32, i32) {
    %c0_i32 = arith.constant 0 : i32
    %c0_i32_0 = arith.constant 0 : i32
    %c0_i32_1 = arith.constant 0 : i32
    return %c0_i32, %c0_i32_0 : i32, i32
  }
  func.func @transform_11(%arg0: i32) -> (i32, i32, i32) {
    %c0_i32 = arith.constant 0 : i32
    %c0_i32_0 = arith.constant 0 : i32
    %c0_i32_1 = arith.constant 0 : i32
    return %arg0, %c0_i32, %c0_i32_0 : i32, i32, i32
  }
}

</mosaic_0001>

<llo_original>
// kernel: simple_cnn_forward.1
$region0: #{simple_cnn_forward.1}
  #allocation0 [shape = 'u32[]', space=smem, size = 0x4, offset = 0x4, fixed_abs, tag = 'smem constant byte address 0x4 - core index']
  #allocation1 [shape = 'u32[144,128]{1,0:T(1,128)}', space=vmem, size = 0x12000, scoped, tag = 'internal scratch']
  #allocation2 [shape = 'f32[28,168]{1,0:T(8,128)}', space=vmem, size = 0x8000, scoped, tag = 'scratch operand']
  #allocation3 [shape = 'f32[14,168]{1,0:T(8,128)}', space=vmem, size = 0x4000, scoped, tag = 'scratch operand']
  #allocation4 [shape = 'f32[14,84]{1,0:T(8,128)}', space=vmem, size = 0x2000, scoped, tag = 'scratch operand']
  #allocation5 [shape = 'f32[10,160]{1,0:T(8,128)}', space=vmem, size = 0x4000, scoped, tag = 'scratch operand']
  #allocation6 [shape = 'f32[5,160]{1,0:T(8,128)}', space=vmem, size = 0x2000, scoped, tag = 'scratch operand']
  #allocation7 [shape = 'f32[5,80]{1,0:T(8,128)}', space=vmem, size = 0x1000, scoped, tag = 'scratch operand']
  #allocation8 [shape = 'f32[1,400]{1,0:T(1,128)}', space=vmem, size = 0x800, scoped, tag = 'scratch operand']
  %s0 = inlined_call_operand.vmem [shape: f32[2,32,96], index: 0, kind: input, shape index: {}]
  %s1 = inlined_call_operand.vmem [shape: f32[5,96,168], index: 1, kind: input, shape index: {}]
  %s2 = inlined_call_operand.vmem [shape: f32[1,168], index: 2, kind: input, shape index: {}]
  %s3 = inlined_call_operand.vmem [shape: f32[5,84,160], index: 3, kind: input, shape index: {}]
  %s4 = inlined_call_operand.vmem [shape: f32[1,160], index: 4, kind: input, shape index: {}]
  %s5 = inlined_call_operand.vmem [shape: f32[400,120], index: 5, kind: input, shape index: {}]
  %s6 = inlined_call_operand.vmem [shape: f32[1,120], index: 6, kind: input, shape index: {}]
  %s7 = inlined_call_operand.vmem [shape: f32[120,84], index: 7, kind: input, shape index: {}]
  %s8 = inlined_call_operand.vmem [shape: f32[1,84], index: 8, kind: input, shape index: {}]
  %s9 = inlined_call_operand.vmem [shape: f32[84,10], index: 9, kind: input, shape index: {}]
  %s10 = inlined_call_operand.vmem [shape: f32[1,10], index: 10, kind: input, shape index: {}]
  %s11 = inlined_call_operand.hbm [shape: f32[2,1,10], index: 11, kind: output, shape index: {}]
  %s12 = sld [smem:[#allocation0]]
  $region77: #{simple_cnn_forward.1} parent=0
    _
  %s14 = ssub.s32 1, %s12
  %s15 = scalar_select 0, %s14, %s12
  $region1: #{simple_cnn_forward.1} parent=0
    #allocation9 [shape = 'u8[1024]{0}', space=vmem, size = 0x400, scoped, tag = 'output window, operand 0']
    #allocation10 [shape = 's32[2]{0}', space=sflag, size = 0x8, scoped, tag = 'scoped memory for simple_cnn_forward.1']
    %16 = vsyncpa [#allocation10], 0
    %s17 = scalar_lea.sflag [#allocation10], 1
    %18 = vsyncpa %s17, 0
    loop: start=0, step=1, limit=4
    $region2: #{simple_cnn_forward.1} parent=1 // loop_pre_header
      _
    $region3: #{simple_cnn_forward.1} parent=1 // loop_header
      %s20 = sphi 0, %s24
      %p21 = scmp.ge.s32.totalorder %s20, 4
      %s30 = sphi 0, %s32
      %s33 = sphi 0, %s30
      %s34 = sphi 0, %s33
      %s50 = sphi 0, %s34
      %s54 = sphi 0, %s54
      %s56 = sphi 0, %s54
      %s57 = sphi 0, %s56
      %s71 = sphi 0, %s57
      %s75 = sphi 0, %s75
      %s77 = sphi 0, %s75
      %s78 = sphi 0, %s77
      %s92 = sphi 0, %s78
      %s96 = sphi 0, %s96
      %s98 = sphi 0, %s96
      %s99 = sphi 0, %s98
      %s113 = sphi 0, %s99
      %s117 = sphi 0, %s117
      %s119 = sphi 0, %s117
      %s120 = sphi 0, %s119
      %s134 = sphi 0, %s120
      %s138 = sphi 0, %s138
      %s140 = sphi 0, %s138
      %s141 = sphi 0, %s140
      %s155 = sphi 0, %s141
      %s159 = sphi 0, %s159
      %s161 = sphi 0, %s159
      %s162 = sphi 0, %s161
      %s176 = sphi 0, %s162
      %s180 = sphi 0, %s180
      %s182 = sphi 0, %s180
      %s183 = sphi 0, %s182
      %s197 = sphi 0, %s183
      %s201 = sphi 0, %s201
      %s203 = sphi 0, %s201
      %s204 = sphi 0, %s203
      %s218 = sphi 0, %s204
      %s222 = sphi 0, %s222
      %s224 = sphi 0, %s222
      %s225 = sphi 0, %s224
      %s239 = sphi 0, %s225
      %s243 = sphi 0, %s243
      %s245 = sphi 0, %s243
      %s246 = sphi 0, %s245
      %s260 = sphi 0, %s246
      %s266 = sphi 0, %s268
      %s269 = sphi 0, %s266
      %s270 = sphi 0, %s269
      %s286 = sphi 0, %s270
    $region4: #{simple_cnn_forward.1} parent=1 // loop_header_branch
      %23 = sbr.rel (%p21) target = $region8
    $region5: #{simple_cnn_forward.1} parent=1 // loop_body
      %s25 = ssub.s32 %s20, 1
      %s26 = ssub.s32 %s20, 2
      %s27 = sadd.s32 %s20, 1
      %s28 = ssub.s32 %s20, %s27
      %p29 = scmp.eq.s32.totalorder %s28, 0
      %s31 = sadd.s32 %s30, 1
      %s32 = scalar_select %p29, %s30, %s31
      %p35 = pneg %p29
      %p36 = scmp.eq.s32.totalorder %s20, 1
      %p37 = por %p35, %p36
      %p38 = scmp.ne.s32.totalorder %s30, %s33
      %p39 = scmp.eq.s32.totalorder %s20, 0
      %p40 = por %p38, %p39
      %p41 = scmp.ne.s32.totalorder %s30, %s33
      %p42 = scmp.eq.s32.totalorder %s25, 1
      %p43 = por %p41, %p42
      %p44 = scmp.ne.s32.totalorder %s33, %s34
      %p45 = scmp.eq.s32.totalorder %s25, 0
      %p46 = por %p44, %p45
      %p47 = scmp.ne.s32.totalorder %s33, %s34
      %p48 = scmp.eq.s32.totalorder %s26, 1
      %p49 = por %p47, %p48
      %p51 = scmp.ne.s32.totalorder %s34, %s50
      %p52 = scmp.eq.s32.totalorder %s26, 0
      %p53 = por %p51, %p52
      %s55 = sadd.s32 %s54, 1
      %p58 = scmp.eq.s32.totalorder %s20, 1
      %p59 = scmp.ne.s32.totalorder %s54, %s56
      %p60 = scmp.eq.s32.totalorder %s20, 0
      %p61 = por %p59, %p60
      %p62 = scmp.ne.s32.totalorder %s54, %s56
      %p63 = scmp.eq.s32.totalorder %s25, 1
      %p64 = por %p62, %p63
      %p65 = scmp.ne.s32.totalorder %s56, %s57
      %p66 = scmp.eq.s32.totalorder %s25, 0
      %p67 = por %p65, %p66
      %p68 = scmp.ne.s32.totalorder %s56, %s57
      %p69 = scmp.eq.s32.totalorder %s26, 1
      %p70 = por %p68, %p69
      %p72 = scmp.ne.s32.totalorder %s57, %s71
      %p73 = scmp.eq.s32.totalorder %s26, 0
      %p74 = por %p72, %p73
      %s76 = sadd.s32 %s75, 1
      %p79 = scmp.eq.s32.totalorder %s20, 1
      %p80 = scmp.ne.s32.totalorder %s75, %s77
      %p81 = scmp.eq.s32.totalorder %s20, 0
      %p82 = por %p80, %p81
      %p83 = scmp.ne.s32.totalorder %s75, %s77
      %p84 = scmp.eq.s32.totalorder %s25, 1
      %p85 = por %p83, %p84
      %p86 = scmp.ne.s32.totalorder %s77, %s78
      %p87 = scmp.eq.s32.totalorder %s25, 0
      %p88 = por %p86, %p87
      %p89 = scmp.ne.s32.totalorder %s77, %s78
      %p90 = scmp.eq.s32.totalorder %s26, 1
      %p91 = por %p89, %p90
      %p93 = scmp.ne.s32.totalorder %s78, %s92
      %p94 = scmp.eq.s32.totalorder %s26, 0
      %p95 = por %p93, %p94
      %s97 = sadd.s32 %s96, 1
      %p100 = scmp.eq.s32.totalorder %s20, 1
      %p101 = scmp.ne.s32.totalorder %s96, %s98
      %p102 = scmp.eq.s32.totalorder %s20, 0
      %p103 = por %p101, %p102
      %p104 = scmp.ne.s32.totalorder %s96, %s98
      %p105 = scmp.eq.s32.totalorder %s25, 1
      %p106 = por %p104, %p105
      %p107 = scmp.ne.s32.totalorder %s98, %s99
      %p108 = scmp.eq.s32.totalorder %s25, 0
      %p109 = por %p107, %p108
      %p110 = scmp.ne.s32.totalorder %s98, %s99
      %p111 = scmp.eq.s32.totalorder %s26, 1
      %p112 = por %p110, %p111
      %p114 = scmp.ne.s32.totalorder %s99, %s113
      %p115 = scmp.eq.s32.totalorder %s26, 0
      %p116 = por %p114, %p115
      %s118 = sadd.s32 %s117, 1
      %p121 = scmp.eq.s32.totalorder %s20, 1
      %p122 = scmp.ne.s32.totalorder %s117, %s119
      %p123 = scmp.eq.s32.totalorder %s20, 0
      %p124 = por %p122, %p123
      %p125 = scmp.ne.s32.totalorder %s117, %s119
      %p126 = scmp.eq.s32.totalorder %s25, 1
      %p127 = por %p125, %p126
      %p128 = scmp.ne.s32.totalorder %s119, %s120
      %p129 = scmp.eq.s32.totalorder %s25, 0
      %p130 = por %p128, %p129
      %p131 = scmp.ne.s32.totalorder %s119, %s120
      %p132 = scmp.eq.s32.totalorder %s26, 1
      %p133 = por %p131, %p132
      %p135 = scmp.ne.s32.totalorder %s120, %s134
      %p136 = scmp.eq.s32.totalorder %s26, 0
      %p137 = por %p135, %p136
      %s139 = sadd.s32 %s138, 1
      %p142 = scmp.eq.s32.totalorder %s20, 1
      %p143 = scmp.ne.s32.totalorder %s138, %s140
      %p144 = scmp.eq.s32.totalorder %s20, 0
      %p145 = por %p143, %p144
      %p146 = scmp.ne.s32.totalorder %s138, %s140
      %p147 = scmp.eq.s32.totalorder %s25, 1
      %p148 = por %p146, %p147
      %p149 = scmp.ne.s32.totalorder %s140, %s141
      %p150 = scmp.eq.s32.totalorder %s25, 0
      %p151 = por %p149, %p150
      %p152 = scmp.ne.s32.totalorder %s140, %s141
      %p153 = scmp.eq.s32.totalorder %s26, 1
      %p154 = por %p152, %p153
      %p156 = scmp.ne.s32.totalorder %s141, %s155
      %p157 = scmp.eq.s32.totalorder %s26, 0
      %p158 = por %p156, %p157
      %s160 = sadd.s32 %s159, 1
      %p163 = scmp.eq.s32.totalorder %s20, 1
      %p164 = scmp.ne.s32.totalorder %s159, %s161
      %p165 = scmp.eq.s32.totalorder %s20, 0
      %p166 = por %p164, %p165
      %p167 = scmp.ne.s32.totalorder %s159, %s161
      %p168 = scmp.eq.s32.totalorder %s25, 1
      %p169 = por %p167, %p168
      %p170 = scmp.ne.s32.totalorder %s161, %s162
      %p171 = scmp.eq.s32.totalorder %s25, 0
      %p172 = por %p170, %p171
      %p173 = scmp.ne.s32.totalorder %s161, %s162
      %p174 = scmp.eq.s32.totalorder %s26, 1
      %p175 = por %p173, %p174
      %p177 = scmp.ne.s32.totalorder %s162, %s176
      %p178 = scmp.eq.s32.totalorder %s26, 0
      %p179 = por %p177, %p178
      %s181 = sadd.s32 %s180, 1
      %p184 = scmp.eq.s32.totalorder %s20, 1
      %p185 = scmp.ne.s32.totalorder %s180, %s182
      %p186 = scmp.eq.s32.totalorder %s20, 0
      %p187 = por %p185, %p186
      %p188 = scmp.ne.s32.totalorder %s180, %s182
      %p189 = scmp.eq.s32.totalorder %s25, 1
      %p190 = por %p188, %p189
      %p191 = scmp.ne.s32.totalorder %s182, %s183
      %p192 = scmp.eq.s32.totalorder %s25, 0
      %p193 = por %p191, %p192
      %p194 = scmp.ne.s32.totalorder %s182, %s183
      %p195 = scmp.eq.s32.totalorder %s26, 1
      %p196 = por %p194, %p195
      %p198 = scmp.ne.s32.totalorder %s183, %s197
      %p199 = scmp.eq.s32.totalorder %s26, 0
      %p200 = por %p198, %p199
      %s202 = sadd.s32 %s201, 1
      %p205 = scmp.eq.s32.totalorder %s20, 1
      %p206 = scmp.ne.s32.totalorder %s201, %s203
      %p207 = scmp.eq.s32.totalorder %s20, 0
      %p208 = por %p206, %p207
      %p209 = scmp.ne.s32.totalorder %s201, %s203
      %p210 = scmp.eq.s32.totalorder %s25, 1
      %p211 = por %p209, %p210
      %p212 = scmp.ne.s32.totalorder %s203, %s204
      %p213 = scmp.eq.s32.totalorder %s25, 0
      %p214 = por %p212, %p213
      %p215 = scmp.ne.s32.totalorder %s203, %s204
      %p216 = scmp.eq.s32.totalorder %s26, 1
      %p217 = por %p215, %p216
      %p219 = scmp.ne.s32.totalorder %s204, %s218
      %p220 = scmp.eq.s32.totalorder %s26, 0
      %p221 = por %p219, %p220
      %s223 = sadd.s32 %s222, 1
      %p226 = scmp.eq.s32.totalorder %s20, 1
      %p227 = scmp.ne.s32.totalorder %s222, %s224
      %p228 = scmp.eq.s32.totalorder %s20, 0
      %p229 = por %p227, %p228
      %p230 = scmp.ne.s32.totalorder %s222, %s224
      %p231 = scmp.eq.s32.totalorder %s25, 1
      %p232 = por %p230, %p231
      %p233 = scmp.ne.s32.totalorder %s224, %s225
      %p234 = scmp.eq.s32.totalorder %s25, 0
      %p235 = por %p233, %p234
      %p236 = scmp.ne.s32.totalorder %s224, %s225
      %p237 = scmp.eq.s32.totalorder %s26, 1
      %p238 = por %p236, %p237
      %p240 = scmp.ne.s32.totalorder %s225, %s239
      %p241 = scmp.eq.s32.totalorder %s26, 0
      %p242 = por %p240, %p241
      %s244 = sadd.s32 %s243, 1
      %p247 = scmp.eq.s32.totalorder %s20, 1
      %p248 = scmp.ne.s32.totalorder %s243, %s245
      %p249 = scmp.eq.s32.totalorder %s20, 0
      %p250 = por %p248, %p249
      %p251 = scmp.ne.s32.totalorder %s243, %s245
      %p252 = scmp.eq.s32.totalorder %s25, 1
      %p253 = por %p251, %p252
      %p254 = scmp.ne.s32.totalorder %s245, %s246
      %p255 = scmp.eq.s32.totalorder %s25, 0
      %p256 = por %p254, %p255
      %p257 = scmp.ne.s32.totalorder %s245, %s246
      %p258 = scmp.eq.s32.totalorder %s26, 1
      %p259 = por %p257, %p258
      %p261 = scmp.ne.s32.totalorder %s246, %s260
      %p262 = scmp.eq.s32.totalorder %s26, 0
      %p263 = por %p261, %p262
      %s264 = ssub.s32 %s20, %s27
      %p265 = scmp.eq.s32.totalorder %s264, 0
      %s267 = sadd.s32 %s266, 1
      %s268 = scalar_select %p265, %s266, %s267
      %p271 = pneg %p265
      %p272 = scmp.eq.s32.totalorder %s20, 1
      %p273 = por %p271, %p272
      %p274 = scmp.ne.s32.totalorder %s266, %s269
      %p275 = scmp.eq.s32.totalorder %s20, 0
      %p276 = por %p274, %p275
      %p277 = scmp.ne.s32.totalorder %s266, %s269
      %p278 = scmp.eq.s32.totalorder %s25, 1
      %p279 = por %p277, %p278
      %p280 = scmp.ne.s32.totalorder %s269, %s270
      %p281 = scmp.eq.s32.totalorder %s25, 0
      %p282 = por %p280, %p281
      %p283 = scmp.ne.s32.totalorder %s269, %s270
      %p284 = scmp.eq.s32.totalorder %s26, 1
      %p285 = por %p283, %p284
      %p287 = scmp.ne.s32.totalorder %s270, %s286
      %p288 = scmp.eq.s32.totalorder %s26, 0
      %p289 = por %p287, %p288
      %p290 = scmp.le.s32.totalorder 1, %s20
      %p291 = scmp.lt.s32.totalorder %s20, 3
      %p292 = pnand %p290, %p291
      %p293 = pneg %p292
      // Predicated region
      $region9: #{simple_cnn_forward.1} parent=5 // pred_check
        _
      $region10: #{simple_cnn_forward.1} parent=5 // pred_check_branch
        %295 = sbr.rel (%p292) target = $region12
      $region11: #{simple_cnn_forward.1} parent=5 // pred_region
        %s296 = ssub.s32 %s20, 1
        // Predicated region
        $region13: #{simple_cnn_forward.1} parent=11 // pred_check
          %p297 = pneg %p67
        $region14: #{simple_cnn_forward.1} parent=11 // pred_check_branch
          %299 = sbr.rel (%p297) target = $region16
        $region15: #{simple_cnn_forward.1} parent=11 // pred_region
          _
        $region16: #{simple_cnn_forward.1} parent=11 // pred_fallthru
          _
        // Predicated region
        $region17: #{simple_cnn_forward.1} parent=11 // pred_check
          %p300 = pneg %p88
        $region18: #{simple_cnn_forward.1} parent=11 // pred_check_branch
          %302 = sbr.rel (%p300) target = $region20
        $region19: #{simple_cnn_forward.1} parent=11 // pred_region
          _
        $region20: #{simple_cnn_forward.1} parent=11 // pred_fallthru
          _
        // Predicated region
        $region21: #{simple_cnn_forward.1} parent=11 // pred_check
          %p303 = pneg %p109
        $region22: #{simple_cnn_forward.1} parent=11 // pred_check_branch
          %305 = sbr.rel (%p303) target = $region24
        $region23: #{simple_cnn_forward.1} parent=11 // pred_region
          _
        $region24: #{simple_cnn_forward.1} parent=11 // pred_fallthru
          _
        // Predicated region
        $region25: #{simple_cnn_forward.1} parent=11 // pred_check
          %p306 = pneg %p130
        $region26: #{simple_cnn_forward.1} parent=11 // pred_check_branch
          %308 = sbr.rel (%p306) target = $region28
        $region27: #{simple_cnn_forward.1} parent=11 // pred_region
          _
        $region28: #{simple_cnn_forward.1} parent=11 // pred_fallthru
          _
        // Predicated region
        $region29: #{simple_cnn_forward.1} parent=11 // pred_check
          %p309 = pneg %p151
        $region30: #{simple_cnn_forward.1} parent=11 // pred_check_branch
          %311 = sbr.rel (%p309) target = $region32
        $region31: #{simple_cnn_forward.1} parent=11 // pred_region
          _
        $region32: #{simple_cnn_forward.1} parent=11 // pred_fallthru
          _
        // Predicated region
        $region33: #{simple_cnn_forward.1} parent=11 // pred_check
          %p312 = pneg %p172
        $region34: #{simple_cnn_forward.1} parent=11 // pred_check_branch
          %314 = sbr.rel (%p312) target = $region36
        $region35: #{simple_cnn_forward.1} parent=11 // pred_region
          _
        $region36: #{simple_cnn_forward.1} parent=11 // pred_fallthru
          _
        // Predicated region
        $region37: #{simple_cnn_forward.1} parent=11 // pred_check
          %p315 = pneg %p193
        $region38: #{simple_cnn_forward.1} parent=11 // pred_check_branch
          %317 = sbr.rel (%p315) target = $region40
        $region39: #{simple_cnn_forward.1} parent=11 // pred_region
          _
        $region40: #{simple_cnn_forward.1} parent=11 // pred_fallthru
          _
        // Predicated region
        $region41: #{simple_cnn_forward.1} parent=11 // pred_check
          %p318 = pneg %p214
        $region42: #{simple_cnn_forward.1} parent=11 // pred_check_branch
          %320 = sbr.rel (%p318) target = $region44
        $region43: #{simple_cnn_forward.1} parent=11 // pred_region
          _
        $region44: #{simple_cnn_forward.1} parent=11 // pred_fallthru
          _
        // Predicated region
        $region45: #{simple_cnn_forward.1} parent=11 // pred_check
          %p321 = pneg %p235
        $region46: #{simple_cnn_forward.1} parent=11 // pred_check_branch
          %323 = sbr.rel (%p321) target = $region48
        $region47: #{simple_cnn_forward.1} parent=11 // pred_region
          _
        $region48: #{simple_cnn_forward.1} parent=11 // pred_fallthru
          _
        // Predicated region
        $region49: #{simple_cnn_forward.1} parent=11 // pred_check
          %p324 = pneg %p256
        $region50: #{simple_cnn_forward.1} parent=11 // pred_check_branch
          %326 = sbr.rel (%p324) target = $region52
        $region51: #{simple_cnn_forward.1} parent=11 // pred_region
          _
        $region52: #{simple_cnn_forward.1} parent=11 // pred_fallthru
          _
      $region12: #{simple_cnn_forward.1} parent=5 // pred_fallthru
        _
      %p327 = scmp.lt.s32.totalorder %s20, 2
      // Predicated region
      $region53: #{simple_cnn_forward.1} parent=5 // pred_check
        %p328 = pneg %p327
      $region54: #{simple_cnn_forward.1} parent=5 // pred_check_branch
        %330 = sbr.rel (%p328) target = $region56
      $region55: #{simple_cnn_forward.1} parent=5 // pred_region
        // Predicated region
        $region57: #{simple_cnn_forward.1} parent=55 // pred_check
          %p331 = pneg %p40
        $region58: #{simple_cnn_forward.1} parent=55 // pred_check_branch
          %333 = sbr.rel (%p331) target = $region60
        $region59: #{simple_cnn_forward.1} parent=55 // pred_region
          %p334 = scmp.lt.s32.totalorder %s20, 1
          %s335 = scalar_select %p334, %s20, 1
          %s336 = smul.addr %s335, 4
          %s337 = smul.addr %s336, 8
          %s338 = scalar_lea.vmem %s0, %s337
        $region60: #{simple_cnn_forward.1} parent=55 // pred_fallthru
          _
      $region56: #{simple_cnn_forward.1} parent=5 // pred_fallthru
        _
      %p339 = scmp.le.s32.totalorder 1, %s20
      %p340 = scmp.lt.s32.totalorder %s20, 3
      %p341 = pnand %p339, %p340
      %p342 = pneg %p341
      // Predicated region
      $region61: #{simple_cnn_forward.1} parent=5 // pred_check
        _
      $region62: #{simple_cnn_forward.1} parent=5 // pred_check_branch
        %344 = sbr.rel (%p341) target = $region64
      $region63: #{simple_cnn_forward.1} parent=5 // pred_region
        %s345 = ssub.s32 %s20, 1
        %p346 = scmp.lt.s32.totalorder %s25, 1
        %s347 = scalar_select %p346, %s25, 1
        %s348 = smul.addr %s347, 4
        %s349 = smul.addr %s348, 8
        %s350 = scalar_lea.vmem %s0, %s349
        %p351 = pneg %p46
        %p352 = pneg %p43
        %p353 = pneg %p67
        %p354 = pneg %p64
        %p355 = pneg %p88
        %p356 = pneg %p85
        %p357 = pneg %p109
        %p358 = pneg %p106
        %p359 = pneg %p130
        %p360 = pneg %p127
        %p361 = pneg %p151
        %p362 = pneg %p148
        %p363 = pneg %p172
        %p364 = pneg %p169
        %p365 = pneg %p193
        %p366 = pneg %p190
        %p367 = pneg %p214
        %p368 = pneg %p211
        %p369 = pneg %p235
        %p370 = pneg %p232
        %p371 = pneg %p256
        %p372 = pneg %p253
        %p373 = pneg %p282
        %p374 = pneg %p279
        %s375 = sand.u32 %s269, 1
        %s376 = scalar_lea.sflag [#allocation10], %s375
        %s377 = sand.u32 %s269, 1
        %s378 = scalar_lea.vmem [#allocation9], %s377
        %p379 = scmp.lt.s32.totalorder %s25, 1
        %s380 = scalar_select %p379, %s25, 1
        %s381 = smul.addr %s380, 4
        %s382 = smul.addr %s381, 8
        %s383 = scalar_lea.vmem %s0, %s382
        %v384 = vld [vmem:[%s383] sm:$0xff]
        %v385 = vld [vmem:[%s383 + $0x8] sm:$0xff]
        %v386 = vld [vmem:[%s383 + $0x10] sm:$0xff]
        %v387 = vld [vmem:[%s383 + $0x18] sm:$0xf]
        %v388 = vld [vmem:[%s1] sm:$0xff]
        %v389 = vld [vmem:[%s1 + $0x8] sm:$0xff]
        %v390 = vld [vmem:[%s1 + $0x10] sm:$0xff]
        %v391 = vld [vmem:[%s1 + $0x18] sm:$0xff]
        %v392 = vld [vmem:[%s1 + $0x20] sm:$0xff]
        %v393 = vld [vmem:[%s1 + $0x28] sm:$0xff]
        %v394 = vld [vmem:[%s1 + $0x30] sm:$0xff]
        %v395 = vld [vmem:[%s1 + $0x38] sm:$0xff]
        %v396 = vld [vmem:[%s1 + $0x40] sm:$0xff]
        %v397 = vld [vmem:[%s1 + $0x48] sm:$0xff]
        %v398 = vld [vmem:[%s1 + $0x50] sm:$0xff]
        %v399 = vld [vmem:[%s1 + $0x58] sm:$0xff]
        %v400 = vld [vmem:[%s1 + $0x60] sm:$0xff]
        %v401 = vld [vmem:[%s1 + $0x68] sm:$0xff]
        %v402 = vld [vmem:[%s1 + $0x70] sm:$0xff]
        %v403 = vld [vmem:[%s1 + $0x78] sm:$0xff]
        %v404 = vld [vmem:[%s1 + $0x80] sm:$0xff]
        %v405 = vld [vmem:[%s1 + $0x88] sm:$0xff]
        %v406 = vld [vmem:[%s1 + $0x90] sm:$0xff]
        %v407 = vld [vmem:[%s1 + $0x98] sm:$0xff]
        %v408 = vld [vmem:[%s1 + $0xa0] sm:$0xff]
        %v409 = vld [vmem:[%s1 + $0xa8] sm:$0xff]
        %v410 = vld [vmem:[%s1 + $0xb0] sm:$0xff]
        %v411 = vld [vmem:[%s1 + $0xb8] sm:$0xff]
        %v412 = vld [vmem:[%s383 + $0x1] sm:$0xff]
        %v413 = vld [vmem:[%s383 + $0x9] sm:$0xff]
        %v414 = vld [vmem:[%s383 + $0x11] sm:$0xff]
        %v415 = vld [vmem:[%s383 + $0x19] sm:$0xf]
        %s416 = scalar_lea.vmem %s1, 192
        %v417 = vld [vmem:[%s416] sm:$0xff]
        %v418 = vld [vmem:[%s416 + $0x8] sm:$0xff]
        %v419 = vld [vmem:[%s416 + $0x10] sm:$0xff]
        %v420 = vld [vmem:[%s416 + $0x18] sm:$0xff]
        %v421 = vld [vmem:[%s416 + $0x20] sm:$0xff]
        %v422 = vld [vmem:[%s416 + $0x28] sm:$0xff]
        %v423 = vld [vmem:[%s416 + $0x30] sm:$0xff]
        %v424 = vld [vmem:[%s416 + $0x38] sm:$0xff]
        %v425 = vld [vmem:[%s416 + $0x40] sm:$0xff]
        %v426 = vld [vmem:[%s416 + $0x48] sm:$0xff]
        %v427 = vld [vmem:[%s416 + $0x50] sm:$0xff]
        %v428 = vld [vmem:[%s416 + $0x58] sm:$0xff]
        %v429 = vld [vmem:[%s416 + $0x60] sm:$0xff]
        %v430 = vld [vmem:[%s416 + $0x68] sm:$0xff]
        %v431 = vld [vmem:[%s416 + $0x70] sm:$0xff]
        %v432 = vld [vmem:[%s416 + $0x78] sm:$0xff]
        %v433 = vld [vmem:[%s416 + $0x80] sm:$0xff]
        %v434 = vld [vmem:[%s416 + $0x88] sm:$0xff]
        %v435 = vld [vmem:[%s416 + $0x90] sm:$0xff]
        %v436 = vld [vmem:[%s416 + $0x98] sm:$0xff]
        %v437 = vld [vmem:[%s416 + $0xa0] sm:$0xff]
        %v438 = vld [vmem:[%s416 + $0xa8] sm:$0xff]
        %v439 = vld [vmem:[%s416 + $0xb0] sm:$0xff]
        %v440 = vld [vmem:[%s416 + $0xb8] sm:$0xff]
        %vm441 = vcmask 785408
        %v443 = vsel %vm441, %v412, 0
        %v446 = vsel %vm441, %v413, 0
        %v449 = vsel %vm441, %v414, 0
        %v452 = vsel %vm441, %v415, 0
        %454 = vmatprep.subr.mxu0 %v418
        %455 = vmatpush1.msra.mxu0 %v417
        %456 = vmatprep.subr.mxu0 %v420
        %457 = vmatpush1.msra.mxu0 %v419
        %458 = vmatprep.subr.mxu0 %v422
        %459 = vmatpush1.msra.mxu0 %v421
        %460 = vmatprep.subr.mxu0 %v424
        %461 = vmatpush1.msra.mxu0 %v423
        %462 = vmatprep.subr.mxu0 %v426
        %463 = vmatpush1.msra.mxu0 %v425
        %464 = vmatprep.subr.mxu0 %v428
        %465 = vmatpush1.msra.mxu0 %v427
        %466 = vmatprep.subr.mxu0 %v430
        %467 = vmatpush1.msra.mxu0 %v429
        %468 = vmatprep.subr.mxu0 %v432
        %469 = vmatpush1.msra.mxu0 %v431
        %470 = vmatprep.subr.mxu0 %v434
        %471 = vmatpush1.msra.mxu0 %v433
        %472 = vmatprep.subr.mxu0 %v436
        %473 = vmatpush1.msra.mxu0 %v435
        %474 = vmatprep.subr.mxu0 %v438
        %475 = vmatpush1.msra.mxu0 %v437
        %476 = vmatprep.subr.mxu0 %v440
        %477 = vmatpush1.msra.mxu0 %v439
        %478 = vmatprep.subr.mxu0 0.0
        %479 = vmatpush1.msra.mxu0 0.0
        %480 = vmatprep.subr.mxu0 0.0
        %481 = vmatpush1.msra.mxu0 0.0
        %482 = vmatprep.subr.mxu0 0.0
        %483 = vmatpush1.msra.mxu0 0.0
        %484 = vmatprep.subr.mxu0 0.0
        %485 = vmatpush1.msra.mxu0 0.0
        %486 = vmatprep.subr.mxu0 0.0
        %487 = vmatpush1.msra.mxu0 0.0
        %488 = vmatprep.subr.mxu0 0.0
        %489 = vmatpush1.msra.mxu0 0.0
        %490 = vmatprep.subr.mxu0 0.0
        %491 = vmatpush1.msra.mxu0 0.0
        %492 = vmatprep.subr.mxu0 0.0
        %493 = vmatpush1.msra.mxu0 0.0
        %494 = vmatprep.subr.mxu0 0.0
        %495 = vmatpush1.msra.mxu0 0.0
        %496 = vmatprep.subr.mxu0 0.0
        %497 = vmatpush1.msra.mxu0 0.0
        %498 = vmatprep.subr.mxu0 0.0
        %499 = vmatpush1.msra.mxu0 0.0
        %500 = vmatprep.subr.mxu0 0.0
        %501 = vmatpush1.msra.mxu0 0.0
        %502 = vmatprep.subr.mxu0 0.0
        %503 = vmatpush1.msra.mxu0 0.0
        %504 = vmatprep.subr.mxu0 0.0
        %505 = vmatpush1.msra.mxu0 0.0
        %506 = vmatprep.subr.mxu0 0.0
        %507 = vmatpush1.msra.mxu0 0.0
        %508 = vmatprep.subr.mxu0 0.0
        %509 = vmatpush1.msra.mxu0 0.0
        %510 = vmatprep.subr.mxu0 0.0
        %511 = vmatpush1.msra.mxu0 0.0
        %512 = vmatprep.subr.mxu0 0.0
        %513 = vmatpush1.msra.mxu0 0.0
        %514 = vmatprep.subr.mxu0 0.0
        %515 = vmatpush1.msra.mxu0 0.0
        %516 = vmatprep.subr.mxu0 0.0
        %517 = vmatpush1.msra.mxu0 0.0
        %518 = vmatprep.mubr.f32.mxu0 0.0
        %519 = vmatmul.mubr.f32.gmra.mrb[0].mxu0 %v443
        %v520 = vpop.f32.mrb[0].mxu0
        %v521 = vadd.f32 0.0, %v520
        %v522 = vpop.f32.mrb[0].mxu0
        %v523 = vadd.f32 0.0, %v522
        %524 = vmatprep.mubr.f32.mxu0 0.0
        %525 = vmatmul.mubr.f32.gmra.mrb[0].mxu0 %v446
        %v526 = vpop.f32.mrb[0].mxu0
        %v527 = vadd.f32 0.0, %v526
        %v528 = vpop.f32.mrb[0].mxu0
        %v529 = vadd.f32 0.0, %v528
        %530 = vmatprep.mubr.f32.mxu0 0.0
        %531 = vmatmul.mubr.f32.gmra.mrb[0].mxu0 %v449
        %v532 = vpop.f32.mrb[0].mxu0
        %v533 = vadd.f32 0.0, %v532
        %v534 = vpop.f32.mrb[0].mxu0
        %v535 = vadd.f32 0.0, %v534
        %536 = vmatprep.mubr.f32.mxu0 0.0
        %537 = vmatmul.mubr.f32.gmra.mrb[0].mxu0 %v452
        %v538 = vpop.f32.mrb[0].mxu0
        %v539 = vadd.f32 0.0, %v538
        %v540 = vpop.f32.mrb[0].mxu0
        %v541 = vadd.f32 0.0, %v540
        %542 = vdwg.mxu0
        %v544 = vsel %vm441, %v384, 0
        %v547 = vsel %vm441, %v385, 0
        %v550 = vsel %vm441, %v386, 0
        %v553 = vsel %vm441, %v387, 0
        %555 = vmatprep.subr.mxu0 %v389
        %556 = vmatpush1.msra.mxu0 %v388
        %557 = vmatprep.subr.mxu0 %v391
        %558 = vmatpush1.msra.mxu0 %v390
        %559 = vmatprep.subr.mxu0 %v393
        %560 = vmatpush1.msra.mxu0 %v392
        %561 = vmatprep.subr.mxu0 %v395
        %562 = vmatpush1.msra.mxu0 %v394
        %563 = vmatprep.subr.mxu0 %v397
        %564 = vmatpush1.msra.mxu0 %v396
        %565 = vmatprep.subr.mxu0 %v399
        %566 = vmatpush1.msra.mxu0 %v398
        %567 = vmatprep.subr.mxu0 %v401
        %568 = vmatpush1.msra.mxu0 %v400
        %569 = vmatprep.subr.mxu0 %v403
        %570 = vmatpush1.msra.mxu0 %v402
        %571 = vmatprep.subr.mxu0 %v405
        %572 = vmatpush1.msra.mxu0 %v404
        %573 = vmatprep.subr.mxu0 %v407
        %574 = vmatpush1.msra.mxu0 %v406
        %575 = vmatprep.subr.mxu0 %v409
        %576 = vmatpush1.msra.mxu0 %v408
        %577 = vmatprep.subr.mxu0 %v411
        %578 = vmatpush1.msra.mxu0 %v410
        %579 = vmatprep.subr.mxu0 0.0
        %580 = vmatpush1.msra.mxu0 0.0
        %581 = vmatprep.subr.mxu0 0.0
        %582 = vmatpush1.msra.mxu0 0.0
        %583 = vmatprep.subr.mxu0 0.0
        %584 = vmatpush1.msra.mxu0 0.0
        %585 = vmatprep.subr.mxu0 0.0
        %586 = vmatpush1.msra.mxu0 0.0
        %587 = vmatprep.subr.mxu0 0.0
        %588 = vmatpush1.msra.mxu0 0.0
        %589 = vmatprep.subr.mxu0 0.0
        %590 = vmatpush1.msra.mxu0 0.0
        %591 = vmatprep.subr.mxu0 0.0
        %592 = vmatpush1.msra.mxu0 0.0
        %593 = vmatprep.subr.mxu0 0.0
        %594 = vmatpush1.msra.mxu0 0.0
        %595 = vmatprep.subr.mxu0 0.0
        %596 = vmatpush1.msra.mxu0 0.0
        %597 = vmatprep.subr.mxu0 0.0
        %598 = vmatpush1.msra.mxu0 0.0
        %599 = vmatprep.subr.mxu0 0.0
        %600 = vmatpush1.msra.mxu0 0.0
        %601 = vmatprep.subr.mxu0 0.0
        %602 = vmatpush1.msra.mxu0 0.0
        %603 = vmatprep.subr.mxu0 0.0
        %604 = vmatpush1.msra.mxu0 0.0
        %605 = vmatprep.subr.mxu0 0.0
        %606 = vmatpush1.msra.mxu0 0.0
        %607 = vmatprep.subr.mxu0 0.0
        %608 = vmatpush1.msra.mxu0 0.0
        %609 = vmatprep.subr.mxu0 0.0
        %610 = vmatpush1.msra.mxu0 0.0
        %611 = vmatprep.subr.mxu0 0.0
        %612 = vmatpush1.msra.mxu0 0.0
        %613 = vmatprep.subr.mxu0 0.0
        %614 = vmatpush1.msra.mxu0 0.0
        %615 = vmatprep.subr.mxu0 0.0
        %616 = vmatpush1.msra.mxu0 0.0
        %617 = vmatprep.subr.mxu0 0.0
        %618 = vmatpush1.msra.mxu0 0.0
        %619 = vmatprep.mubr.f32.mxu0 0.0
        %620 = vmatmul.mubr.f32.gmra.mrb[0].mxu0 %v544
        %v621 = vpop.f32.mrb[0].mxu0
        %v622 = vadd.f32 %v521, %v621
        %v623 = vpop.f32.mrb[0].mxu0
        %v624 = vadd.f32 %v523, %v623
        %625 = vmatprep.mubr.f32.mxu0 0.0
        %626 = vmatmul.mubr.f32.gmra.mrb[0].mxu0 %v547
        %v627 = vpop.f32.mrb[0].mxu0
        %v628 = vadd.f32 %v527, %v627
        %v629 = vpop.f32.mrb[0].mxu0
        %v630 = vadd.f32 %v529, %v629
        %631 = vmatprep.mubr.f32.mxu0 0.0
        %632 = vmatmul.mubr.f32.gmra.mrb[0].mxu0 %v550
        %v633 = vpop.f32.mrb[0].mxu0
        %v634 = vadd.f32 %v533, %v633
        %v635 = vpop.f32.mrb[0].mxu0
        %v636 = vadd.f32 %v535, %v635
        %637 = vmatprep.mubr.f32.mxu0 0.0
        %638 = vmatmul.mubr.f32.gmra.mrb[0].mxu0 %v553
        %v639 = vpop.f32.mrb[0].mxu0
        %v640 = vadd.f32 %v539, %v639
        %v641 = vpop.f32.mrb[0].mxu0
        %v642 = vadd.f32 %v541, %v641
        %643 = vdwg.mxu0
        %v644 = vld [vmem:[%s383 + $0x2] sm:$0xff]
        %v645 = vld [vmem:[%s383 + $0xa] sm:$0xff]
        %v646 = vld [vmem:[%s383 + $0x12] sm:$0xff]
        %v647 = vld [vmem:[%s383 + $0x1a] sm:$0xf]
        %s648 = scalar_lea.vmem %s1, 384
        %v649 = vld [vmem:[%s648] sm:$0xff]
        %v650 = vld [vmem:[%s648 + $0x8] sm:$0xff]
        %v651 = vld [vmem:[%s648 + $0x10] sm:$0xff]
        %v652 = vld [vmem:[%s648 + $0x18] sm:$0xff]
        %v653 = vld [vmem:[%s648 + $0x20] sm:$0xff]
        %v654 = vld [vmem:[%s648 + $0x28] sm:$0xff]
        %v655 = vld [vmem:[%s648 + $0x30] sm:$0xff]
        %v656 = vld [vmem:[%s648 + $0x38] sm:$0xff]
        %v657 = vld [vmem:[%s648 + $0x40] sm:$0xff]
        %v658 = vld [vmem:[%s648 + $0x48] sm:$0xff]
        %v659 = vld [vmem:[%s648 + $0x50] sm:$0xff]
        %v660 = vld [vmem:[%s648 + $0x58] sm:$0xff]
        %v661 = vld [vmem:[%s648 + $0x60] sm:$0xff]
        %v662 = vld [vmem:[%s648 + $0x68] sm:$0xff]
        %v663 = vld [vmem:[%s648 + $0x70] sm:$0xff]
        %v664 = vld [vmem:[%s648 + $0x78] sm:$0xff]
        %v665 = vld [vmem:[%s648 + $0x80] sm:$0xff]
        %v666 = vld [vmem:[%s648 + $0x88] sm:$0xff]
        %v667 = vld [vmem:[%s648 + $0x90] sm:$0xff]
        %v668 = vld [vmem:[%s648 + $0x98] sm:$0xff]
        %v669 = vld [vmem:[%s648 + $0xa0] sm:$0xff]
        %v670 = vld [vmem:[%s648 + $0xa8] sm:$0xff]
        %v671 = vld [vmem:[%s648 + $0xb0] sm:$0xff]
        %v672 = vld [vmem:[%s648 + $0xb8] sm:$0xff]
        %v674 = vsel %vm441, %v644, 0
        %v677 = vsel %vm441, %v645, 0
        %v680 = vsel %vm441, %v646, 0
        %v683 = vsel %vm441, %v647, 0
        %685 = vmatprep.subr.mxu0 %v650
        %686 = vmatpush1.msra.mxu0 %v649
        %687 = vmatprep.subr.mxu0 %v652
        %688 = vmatpush1.msra.mxu0 %v651
        %689 = vmatprep.subr.mxu0 %v654
        %690 = vmatpush1.msra.mxu0 %v653
        %691 = vmatprep.subr.mxu0 %v656
        %692 = vmatpush1.msra.mxu0 %v655
        %693 = vmatprep.subr.mxu0 %v658
        %694 = vmatpush1.msra.mxu0 %v657
        %695 = vmatprep.subr.mxu0 %v660
        %696 = vmatpush1.msra.mxu0 %v659
        %697 = vmatprep.subr.mxu0 %v662
        %698 = vmatpush1.msra.mxu0 %v661
        %699 = vmatprep.subr.mxu0 %v664
        %700 = vmatpush1.msra.mxu0 %v663
        %701 = vmatprep.subr.mxu0 %v666
        %702 = vmatpush1.msra.mxu0 %v665
        %703 = vmatprep.subr.mxu0 %v668
        %704 = vmatpush1.msra.mxu0 %v667
        %705 = vmatprep.subr.mxu0 %v670
        %706 = vmatpush1.msra.mxu0 %v669
        %707 = vmatprep.subr.mxu0 %v672
        %708 = vmatpush1.msra.mxu0 %v671
        %709 = vmatprep.subr.mxu0 0.0
        %710 = vmatpush1.msra.mxu0 0.0
        %711 = vmatprep.subr.mxu0 0.0
        %712 = vmatpush1.msra.mxu0 0.0
        %713 = vmatprep.subr.mxu0 0.0
        %714 = vmatpush1.msra.mxu0 0.0
        %715 = vmatprep.subr.mxu0 0.0
        %716 = vmatpush1.msra.mxu0 0.0
        %717 = vmatprep.subr.mxu0 0.0
        %718 = vmatpush1.msra.mxu0 0.0
        %719 = vmatprep.subr.mxu0 0.0
        %720 = vmatpush1.msra.mxu0 0.0
        %721 = vmatprep.subr.mxu0 0.0
        %722 = vmatpush1.msra.mxu0 0.0
        %723 = vmatprep.subr.mxu0 0.0
        %724 = vmatpush1.msra.mxu0 0.0
        %725 = vmatprep.subr.mxu0 0.0
        %726 = vmatpush1.msra.mxu0 0.0
        %727 = vmatprep.subr.mxu0 0.0
        %728 = vmatpush1.msra.mxu0 0.0
        %729 = vmatprep.subr.mxu0 0.0
        %730 = vmatpush1.msra.mxu0 0.0
        %731 = vmatprep.subr.mxu0 0.0
        %732 = vmatpush1.msra.mxu0 0.0
        %733 = vmatprep.subr.mxu0 0.0
        %734 = vmatpush1.msra.mxu0 0.0
        %735 = vmatprep.subr.mxu0 0.0
        %736 = vmatpush1.msra.mxu0 0.0
        %737 = vmatprep.subr.mxu0 0.0
        %738 = vmatpush1.msra.mxu0 0.0
        %739 = vmatprep.subr.mxu0 0.0
        %740 = vmatpush1.msra.mxu0 0.0
        %741 = vmatprep.subr.mxu0 0.0
        %742 = vmatpush1.msra.mxu0 0.0
        %743 = vmatprep.subr.mxu0 0.0
        %744 = vmatpush1.msra.mxu0 0.0
        %745 = vmatprep.subr.mxu0 0.0
        %746 = vmatpush1.msra.mxu0 0.0
        %747 = vmatprep.subr.mxu0 0.0
        %748 = vmatpush1.msra.mxu0 0.0
        %749 = vmatprep.mubr.f32.mxu0 0.0
        %750 = vmatmul.mubr.f32.gmra.mrb[0].mxu0 %v674
        %v751 = vpop.f32.mrb[0].mxu0
        %v752 = vadd.f32 0.0, %v751
        %v753 = vpop.f32.mrb[0].mxu0
        %v754 = vadd.f32 0.0, %v753
        %755 = vmatprep.mubr.f32.mxu0 0.0
        %756 = vmatmul.mubr.f32.gmra.mrb[0].mxu0 %v677
        %v757 = vpop.f32.mrb[0].mxu0
        %v758 = vadd.f32 0.0, %v757
        %v759 = vpop.f32.mrb[0].mxu0
        %v760 = vadd.f32 0.0, %v759
        %761 = vmatprep.mubr.f32.mxu0 0.0
        %762 = vmatmul.mubr.f32.gmra.mrb[0].mxu0 %v680
        %v763 = vpop.f32.mrb[0].mxu0
        %v764 = vadd.f32 0.0, %v763
        %v765 = vpop.f32.mrb[0].mxu0
        %v766 = vadd.f32 0.0, %v765
        %767 = vmatprep.mubr.f32.mxu0 0.0
        %768 = vmatmul.mubr.f32.gmra.mrb[0].mxu0 %v683
        %v769 = vpop.f32.mrb[0].mxu0
        %v770 = vadd.f32 0.0, %v769
        %v771 = vpop.f32.mrb[0].mxu0
        %v772 = vadd.f32 0.0, %v771
        %773 = vdwg.mxu0
        %v774 = vadd.f32 %v622, %v752
        %v775 = vadd.f32 %v624, %v754
        %v776 = vadd.f32 %v628, %v758
        %v777 = vadd.f32 %v630, %v760
        %v778 = vadd.f32 %v634, %v764
        %v779 = vadd.f32 %v636, %v766
        %v780 = vadd.f32 %v640, %v770
        %v781 = vadd.f32 %v642, %v772
        %v782 = vld [vmem:[%s383 + $0x3] sm:$0xff]
        %v783 = vld [vmem:[%s383 + $0xb] sm:$0xff]
        %v784 = vld [vmem:[%s383 + $0x13] sm:$0xff]
        %v785 = vld [vmem:[%s383 + $0x1b] sm:$0xf]
        %s786 = scalar_lea.vmem %s1, 576
        %v787 = vld [vmem:[%s786] sm:$0xff]
        %v788 = vld [vmem:[%s786 + $0x8] sm:$0xff]
        %v789 = vld [vmem:[%s786 + $0x10] sm:$0xff]
        %v790 = vld [vmem:[%s786 + $0x18] sm:$0xff]
        %v791 = vld [vmem:[%s786 + $0x20] sm:$0xff]
        %v792 = vld [vmem:[%s786 + $0x28] sm:$0xff]
        %v793 = vld [vmem:[%s786 + $0x30] sm:$0xff]
        %v794 = vld [vmem:[%s786 + $0x38] sm:$0xff]
        %v795 = vld [vmem:[%s786 + $0x40] sm:$0xff]
        %v796 = vld [vmem:[%s786 + $0x48] sm:$0xff]
        %v797 = vld [vmem:[%s786 + $0x50] sm:$0xff]
        %v798 = vld [vmem:[%s786 + $0x58] sm:$0xff]
        %v799 = vld [vmem:[%s786 + $0x60] sm:$0xff]
        %v800 = vld [vmem:[%s786 + $0x68] sm:$0xff]
        %v801 = vld [vmem:[%s786 + $0x70] sm:$0xff]
        %v802 = vld [vmem:[%s786 + $0x78] sm:$0xff]
        %v803 = vld [vmem:[%s786 + $0x80] sm:$0xff]
        %v804 = vld [vmem:[%s786 + $0x88] sm:$0xff]
        %v805 = vld [vmem:[%s786 + $0x90] sm:$0xff]
        %v806 = vld [vmem:[%s786 + $0x98] sm:$0xff]
        %v807 = vld [vmem:[%s786 + $0xa0] sm:$0xff]
        %v808 = vld [vmem:[%s786 + $0xa8] sm:$0xff]
        %v809 = vld [vmem:[%s786 + $0xb0] sm:$0xff]
        %v810 = vld [vmem:[%s786 + $0xb8] sm:$0xff]
        %v812 = vsel %vm441, %v782, 0
        %v815 = vsel %vm441, %v783, 0
        %v818 = vsel %vm441, %v784, 0
        %v821 = vsel %vm441, %v785, 0
        %823 = vmatprep.subr.mxu0 %v788
        %824 = vmatpush1.msra.mxu0 %v787
        %825 = vmatprep.subr.mxu0 %v790
        %826 = vmatpush1.msra.mxu0 %v789
        %827 = vmatprep.subr.mxu0 %v792
        %828 = vmatpush1.msra.mxu0 %v791
        %829 = vmatprep.subr.mxu0 %v794
        %830 = vmatpush1.msra.mxu0 %v793
        %831 = vmatprep.subr.mxu0 %v796
        %832 = vmatpush1.msra.mxu0 %v795
        %833 = vmatprep.subr.mxu0 %v798
        %834 = vmatpush1.msra.mxu0 %v797
        %835 = vmatprep.subr.mxu0 %v800
        %836 = vmatpush1.msra.mxu0 %v799
        %837 = vmatprep.subr.mxu0 %v802
        %838 = vmatpush1.msra.mxu0 %v801
        %839 = vmatprep.subr.mxu0 %v804
        %840 = vmatpush1.msra.mxu0 %v803
        %841 = vmatprep.subr.mxu0 %v806
        %842 = vmatpush1.msra.mxu0 %v805
        %843 = vmatprep.subr.mxu0 %v808
        %844 = vmatpush1.msra.mxu0 %v807
        %845 = vmatprep.subr.mxu0 %v810
        %846 = vmatpush1.msra.mxu0 %v809
        %847 = vmatprep.subr.mxu0 0.0
        %848 = vmatpush1.msra.mxu0 0.0
        %849 = vmatprep.subr.mxu0 0.0
        %850 = vmatpush1.msra.mxu0 0.0
        %851 = vmatprep.subr.mxu0 0.0
        %852 = vmatpush1.msra.mxu0 0.0
        %853 = vmatprep.subr.mxu0 0.0
        %854 = vmatpush1.msra.mxu0 0.0
        %855 = vmatprep.subr.mxu0 0.0
        %856 = vmatpush1.msra.mxu0 0.0
        %857 = vmatprep.subr.mxu0 0.0
        %858 = vmatpush1.msra.mxu0 0.0
        %859 = vmatprep.subr.mxu0 0.0
        %860 = vmatpush1.msra.mxu0 0.0
        %861 = vmatprep.subr.mxu0 0.0
        %862 = vmatpush1.msra.mxu0 0.0
        %863 = vmatprep.subr.mxu0 0.0
        %864 = vmatpush1.msra.mxu0 0.0
        %865 = vmatprep.subr.mxu0 0.0
        %866 = vmatpush1.msra.mxu0 0.0
        %867 = vmatprep.subr.mxu0 0.0
        %868 = vmatpush1.msra.mxu0 0.0
        %869 = vmatprep.subr.mxu0 0.0
        %870 = vmatpush1.msra.mxu0 0.0
        %871 = vmatprep.subr.mxu0 0.0
        %872 = vmatpush1.msra.mxu0 0.0
        %873 = vmatprep.subr.mxu0 0.0
        %874 = vmatpush1.msra.mxu0 0.0
        %875 = vmatprep.subr.mxu0 0.0
        %876 = vmatpush1.msra.mxu0 0.0
        %877 = vmatprep.subr.mxu0 0.0
        %878 = vmatpush1.msra.mxu0 0.0
        %879 = vmatprep.subr.mxu0 0.0
        %880 = vmatpush1.msra.mxu0 0.0
        %881 = vmatprep.subr.mxu0 0.0
        %882 = vmatpush1.msra.mxu0 0.0
        %883 = vmatprep.subr.mxu0 0.0
        %884 = vmatpush1.msra.mxu0 0.0
        %885 = vmatprep.subr.mxu0 0.0
        %886 = vmatpush1.msra.mxu0 0.0
        %887 = vmatprep.mubr.f32.mxu0 0.0
        %888 = vmatmul.mubr.f32.gmra.mrb[0].mxu0 %v812
        %v889 = vpop.f32.mrb[0].mxu0
        %v890 = vadd.f32 0.0, %v889
        %v891 = vpop.f32.mrb[0].mxu0
        %v892 = vadd.f32 0.0, %v891
        %893 = vmatprep.mubr.f32.mxu0 0.0
        %894 = vmatmul.mubr.f32.gmra.mrb[0].mxu0 %v815
        %v895 = vpop.f32.mrb[0].mxu0
        %v896 = vadd.f32 0.0, %v895
        %v897 = vpop.f32.mrb[0].mxu0
        %v898 = vadd.f32 0.0, %v897
        %899 = vmatprep.mubr.f32.mxu0 0.0
        %900 = vmatmul.mubr.f32.gmra.mrb[0].mxu0 %v818
        %v901 = vpop.f32.mrb[0].mxu0
        %v902 = vadd.f32 0.0, %v901
        %v903 = vpop.f32.mrb[0].mxu0
        %v904 = vadd.f32 0.0, %v903
        %905 = vmatprep.mubr.f32.mxu0 0.0
        %906 = vmatmul.mubr.f32.gmra.mrb[0].mxu0 %v821
        %v907 = vpop.f32.mrb[0].mxu0
        %v908 = vadd.f32 0.0, %v907
        %v909 = vpop.f32.mrb[0].mxu0
        %v910 = vadd.f32 0.0, %v909
        %911 = vdwg.mxu0
        %v912 = vadd.f32 %v774, %v890
        %v913 = vadd.f32 %v775, %v892
        %v914 = vadd.f32 %v776, %v896
        %v915 = vadd.f32 %v777, %v898
        %v916 = vadd.f32 %v778, %v902
        %v917 = vadd.f32 %v779, %v904
        %v918 = vadd.f32 %v780, %v908
        %v919 = vadd.f32 %v781, %v910
        %v920 = vld [vmem:[%s383 + $0x4] sm:$0xff]
        %v921 = vld [vmem:[%s383 + $0xc] sm:$0xff]
        %v922 = vld [vmem:[%s383 + $0x14] sm:$0xff]
        %v923 = vld [vmem:[%s383 + $0x1c] sm:$0xf]
        %s924 = scalar_lea.vmem %s1, 768
        %v925 = vld [vmem:[%s924] sm:$0xff]
        %v926 = vld [vmem:[%s924 + $0x8] sm:$0xff]
        %v927 = vld [vmem:[%s924 + $0x10] sm:$0xff]
        %v928 = vld [vmem:[%s924 + $0x18] sm:$0xff]
        %v929 = vld [vmem:[%s924 + $0x20] sm:$0xff]
        %v930 = vld [vmem:[%s924 + $0x28] sm:$0xff]
        %v931 = vld [vmem:[%s924 + $0x30] sm:$0xff]
        %v932 = vld [vmem:[%s924 + $0x38] sm:$0xff]
        %v933 = vld [vmem:[%s924 + $0x40] sm:$0xff]
        %v934 = vld [vmem:[%s924 + $0x48] sm:$0xff]
        %v935 = vld [vmem:[%s924 + $0x50] sm:$0xff]
        %v936 = vld [vmem:[%s924 + $0x58] sm:$0xff]
        %v937 = vld [vmem:[%s924 + $0x60] sm:$0xff]
        %v938 = vld [vmem:[%s924 + $0x68] sm:$0xff]
        %v939 = vld [vmem:[%s924 + $0x70] sm:$0xff]
        %v940 = vld [vmem:[%s924 + $0x78] sm:$0xff]
        %v941 = vld [vmem:[%s924 + $0x80] sm:$0xff]
        %v942 = vld [vmem:[%s924 + $0x88] sm:$0xff]
        %v943 = vld [vmem:[%s924 + $0x90] sm:$0xff]
        %v944 = vld [vmem:[%s924 + $0x98] sm:$0xff]
        %v945 = vld [vmem:[%s924 + $0xa0] sm:$0xff]
        %v946 = vld [vmem:[%s924 + $0xa8] sm:$0xff]
        %v947 = vld [vmem:[%s924 + $0xb0] sm:$0xff]
        %v948 = vld [vmem:[%s924 + $0xb8] sm:$0xff]
        %v950 = vsel %vm441, %v920, 0
        %v953 = vsel %vm441, %v921, 0
        %v956 = vsel %vm441, %v922, 0
        %v959 = vsel %vm441, %v923, 0
        %961 = vmatprep.subr.mxu0 %v926
        %962 = vmatpush1.msra.mxu0 %v925
        %963 = vmatprep.subr.mxu0 %v928
        %964 = vmatpush1.msra.mxu0 %v927
        %965 = vmatprep.subr.mxu0 %v930
        %966 = vmatpush1.msra.mxu0 %v929
        %967 = vmatprep.subr.mxu0 %v932
        %968 = vmatpush1.msra.mxu0 %v931
        %969 = vmatprep.subr.mxu0 %v934
        %970 = vmatpush1.msra.mxu0 %v933
        %971 = vmatprep.subr.mxu0 %v936
        %972 = vmatpush1.msra.mxu0 %v935
        %973 = vmatprep.subr.mxu0 %v938
        %974 = vmatpush1.msra.mxu0 %v937
        %975 = vmatprep.subr.mxu0 %v940
        %976 = vmatpush1.msra.mxu0 %v939
        %977 = vmatprep.subr.mxu0 %v942
        %978 = vmatpush1.msra.mxu0 %v941
        %979 = vmatprep.subr.mxu0 %v944
        %980 = vmatpush1.msra.mxu0 %v943
        %981 = vmatprep.subr.mxu0 %v946
        %982 = vmatpush1.msra.mxu0 %v945
        %983 = vmatprep.subr.mxu0 %v948
        %984 = vmatpush1.msra.mxu0 %v947
        %985 = vmatprep.subr.mxu0 0.0
        %986 = vmatpush1.msra.mxu0 0.0
        %987 = vmatprep.subr.mxu0 0.0
        %988 = vmatpush1.msra.mxu0 0.0
        %989 = vmatprep.subr.mxu0 0.0
        %990 = vmatpush1.msra.mxu0 0.0
        %991 = vmatprep.subr.mxu0 0.0
        %992 = vmatpush1.msra.mxu0 0.0
        %993 = vmatprep.subr.mxu0 0.0
        %994 = vmatpush1.msra.mxu0 0.0
        %995 = vmatprep.subr.mxu0 0.0
        %996 = vmatpush1.msra.mxu0 0.0
        %997 = vmatprep.subr.mxu0 0.0
        %998 = vmatpush1.msra.mxu0 0.0
        %999 = vmatprep.subr.mxu0 0.0
        %1000 = vmatpush1.msra.mxu0 0.0
        %1001 = vmatprep.subr.mxu0 0.0
        %1002 = vmatpush1.msra.mxu0 0.0
        %1003 = vmatprep.subr.mxu0 0.0
        %1004 = vmatpush1.msra.mxu0 0.0
        %1005 = vmatprep.subr.mxu0 0.0
        %1006 = vmatpush1.msra.mxu0 0.0
        %1007 = vmatprep.subr.mxu0 0.0
        %1008 = vmatpush1.msra.mxu0 0.0
        %1009 = vmatprep.subr.mxu0 0.0
        %1010 = vmatpush1.msra.mxu0 0.0
        %1011 = vmatprep.subr.mxu0 0.0
        %1012 = vmatpush1.msra.mxu0 0.0
        %1013 = vmatprep.subr.mxu0 0.0
        %1014 = vmatpush1.msra.mxu0 0.0
        %1015 = vmatprep.subr.mxu0 0.0
        %1016 = vmatpush1.msra.mxu0 0.0
        %1017 = vmatprep.subr.mxu0 0.0
        %1018 = vmatpush1.msra.mxu0 0.0
        %1019 = vmatprep.subr.mxu0 0.0
        %1020 = vmatpush1.msra.mxu0 0.0
        %1021 = vmatprep.subr.mxu0 0.0
        %1022 = vmatpush1.msra.mxu0 0.0
        %1023 = vmatprep.subr.mxu0 0.0
        %1024 = vmatpush1.msra.mxu0 0.0
        %1025 = vmatprep.mubr.f32.mxu0 0.0
        %1026 = vmatmul.mubr.f32.gmra.mrb[0].mxu0 %v950
        %v1027 = vpop.f32.mrb[0].mxu0
        %v1028 = vadd.f32 0.0, %v1027
        %v1029 = vpop.f32.mrb[0].mxu0
        %v1030 = vadd.f32 0.0, %v1029
        %1031 = vmatprep.mubr.f32.mxu0 0.0
        %1032 = vmatmul.mubr.f32.gmra.mrb[0].mxu0 %v953
        %v1033 = vpop.f32.mrb[0].mxu0
        %v1034 = vadd.f32 0.0, %v1033
        %v1035 = vpop.f32.mrb[0].mxu0
        %v1036 = vadd.f32 0.0, %v1035
        %1037 = vmatprep.mubr.f32.mxu0 0.0
        %1038 = vmatmul.mubr.f32.gmra.mrb[0].mxu0 %v956
        %v1039 = vpop.f32.mrb[0].mxu0
        %v1040 = vadd.f32 0.0, %v1039
        %v1041 = vpop.f32.mrb[0].mxu0
        %v1042 = vadd.f32 0.0, %v1041
        %1043 = vmatprep.mubr.f32.mxu0 0.0
        %1044 = vmatmul.mubr.f32.gmra.mrb[0].mxu0 %v959
        %v1045 = vpop.f32.mrb[0].mxu0
        %v1046 = vadd.f32 0.0, %v1045
        %v1047 = vpop.f32.mrb[0].mxu0
        %v1048 = vadd.f32 0.0, %v1047
        %1049 = vdwg.mxu0
        %v1050 = vadd.f32 %v912, %v1028
        %v1051 = vadd.f32 %v913, %v1030
        %v1052 = vadd.f32 %v914, %v1034
        %v1053 = vadd.f32 %v915, %v1036
        %v1054 = vadd.f32 %v916, %v1040
        %v1055 = vadd.f32 %v917, %v1042
        %v1056 = vadd.f32 %v918, %v1046
        %v1057 = vadd.f32 %v919, %v1048
        %v1058 = vld [vmem:[%s2] sm:$0x3]
        %v1060 = vlaneseq
        %v1061 = vshrl.u32 %v1060, 7
        %v1062 = vsub.s32 0, %v1061
        %v1063 = vrot.slane %v1058, %v1062
        %v1064 = vlaneseq
        %v1065 = vshrl.u32 %v1064, 7
        %v1066 = vsub.s32 1, %v1065
        %v1067 = vrot.slane %v1058, %v1066
        %v1070 = vadd.f32 %v1050, %v1063
        %v1071 = vadd.f32 %v1051, %v1067
        %v1072 = vadd.f32 %v1052, %v1063
        %v1073 = vadd.f32 %v1053, %v1067
        %v1074 = vadd.f32 %v1054, %v1063
        %v1075 = vadd.f32 %v1055, %v1067
        %v1076 = vadd.f32 %v1056, %v1063
        %v1077 = vadd.f32 %v1057, %v1067
        %v1078 = vmax.f32 %v1070, 0.0
        %v1079 = vmax.f32 %v1071, 0.0
        %v1080 = vmax.f32 %v1072, 0.0
        %v1081 = vmax.f32 %v1073, 0.0
        %v1082 = vmax.f32 %v1074, 0.0
        %v1083 = vmax.f32 %v1075, 0.0
        %v1084 = vmax.f32 %v1076, 0.0
        %v1085 = vmax.f32 %v1077, 0.0
        %1086 = vst [vmem:[#allocation2] sm:$0xff] %v1078
        %vm1087 = vcmask 326656
        %1088 = vst.msk [vmem:[#allocation2 + $0x8] sm:$0xff] %vm1087, %v1079
        %1089 = vst [vmem:[#allocation2 + $0x10] sm:$0xff] %v1080
        %1090 = vst.msk [vmem:[#allocation2 + $0x18] sm:$0xff] %vm1087, %v1081
        %1091 = vst [vmem:[#allocation2 + $0x20] sm:$0xff] %v1082
        %1092 = vst.msk [vmem:[#allocation2 + $0x28] sm:$0xff] %vm1087, %v1083
        %1093 = vst [vmem:[#allocation2 + $0x30] sm:$0xf] %v1084
        %vm1094 = vcmask 322560
        %1095 = vst.msk [vmem:[#allocation2 + $0x38] sm:$0xf] %vm1094, %v1085
        %v1096 = vld [vmem:[#allocation2] ss:$8 sm:$0x3]
        %s1097 = scalar_lea.vmem [#allocation2], 1
        %v1098 = vld [vmem:[%s1097] ss:$8 sm:$0x3]
        %v1099 = vmax.f32 %v1096, %v1098
        %v1100 = vlaneseq
        %vm1101 = vcmp.ge.s32.totalorder %v1100, 0
        %vm1102 = vcmp.lt.s32.totalorder %v1100, 168
        %vm1103 = vmand %vm1101, %vm1102
        %1104 = vst.msk [vmem:[#allocation3] ss:$8 sm:$0x3] %vm1103, %v1099
        %1105 = vst.msk [vmem:[#allocation3] ss:$8 sm:$0x0] %vm1103, %v1099
        %s1106 = scalar_lea.vmem [#allocation2], 2
        %v1107 = vld [vmem:[%s1106] ss:$8 sm:$0x3]
        %s1108 = scalar_lea.vmem [#allocation2], 3
        %v1109 = vld [vmem:[%s1108] ss:$8 sm:$0x3]
        %v1110 = vmax.f32 %v1107, %v1109
        %s1111 = scalar_lea.vmem [#allocation3], 1
        %1112 = vst.msk [vmem:[%s1111] ss:$8 sm:$0x3] %vm1103, %v1110
        %1113 = vst.msk [vmem:[%s1111] ss:$8 sm:$0x0] %vm1103, %v1110
        %s1114 = scalar_lea.vmem [#allocation2], 4
        %v1115 = vld [vmem:[%s1114] ss:$8 sm:$0x3]
        %s1116 = scalar_lea.vmem [#allocation2], 5
        %v1117 = vld [vmem:[%s1116] ss:$8 sm:$0x3]
        %v1118 = vmax.f32 %v1115, %v1117
        %s1119 = scalar_lea.vmem [#allocation3], 2
        %1120 = vst.msk [vmem:[%s1119] ss:$8 sm:$0x3] %vm1103, %v1118
        %1121 = vst.msk [vmem:[%s1119] ss:$8 sm:$0x0] %vm1103, %v1118
        %s1122 = scalar_lea.vmem [#allocation2], 6
        %v1123 = vld [vmem:[%s1122] ss:$8 sm:$0x3]
        %s1124 = scalar_lea.vmem [#allocation2], 7
        %v1125 = vld [vmem:[%s1124] ss:$8 sm:$0x3]
        %v1126 = vmax.f32 %v1123, %v1125
        %s1127 = scalar_lea.vmem [#allocation3], 3
        %1128 = vst.msk [vmem:[%s1127] ss:$8 sm:$0x3] %vm1103, %v1126
        %1129 = vst.msk [vmem:[%s1127] ss:$8 sm:$0x0] %vm1103, %v1126
        %s1130 = scalar_lea.vmem [#allocation2], 16
        %v1131 = vld [vmem:[%s1130] ss:$8 sm:$0x3]
        %s1132 = scalar_lea.vmem [#allocation2], 17
        %v1133 = vld [vmem:[%s1132] ss:$8 sm:$0x3]
        %v1134 = vmax.f32 %v1131, %v1133
        %s1135 = scalar_lea.vmem [#allocation3], 4
        %1136 = vst.msk [vmem:[%s1135] ss:$8 sm:$0x3] %vm1103, %v1134
        %1137 = vst.msk [vmem:[%s1135] ss:$8 sm:$0x0] %vm1103, %v1134
        %s1138 = scalar_lea.vmem [#allocation2], 18
        %v1139 = vld [vmem:[%s1138] ss:$8 sm:$0x3]
        %s1140 = scalar_lea.vmem [#allocation2], 19
        %v1141 = vld [vmem:[%s1140] ss:$8 sm:$0x3]
        %v1142 = vmax.f32 %v1139, %v1141
        %s1143 = scalar_lea.vmem [#allocation3], 5
        %1144 = vst.msk [vmem:[%s1143] ss:$8 sm:$0x3] %vm1103, %v1142
        %1145 = vst.msk [vmem:[%s1143] ss:$8 sm:$0x0] %vm1103, %v1142
        %s1146 = scalar_lea.vmem [#allocation2], 20
        %v1147 = vld [vmem:[%s1146] ss:$8 sm:$0x3]
        %s1148 = scalar_lea.vmem [#allocation2], 21
        %v1149 = vld [vmem:[%s1148] ss:$8 sm:$0x3]
        %v1150 = vmax.f32 %v1147, %v1149
        %s1151 = scalar_lea.vmem [#allocation3], 6
        %1152 = vst.msk [vmem:[%s1151] ss:$8 sm:$0x3] %vm1103, %v1150
        %1153 = vst.msk [vmem:[%s1151] ss:$8 sm:$0x0] %vm1103, %v1150
        %s1154 = scalar_lea.vmem [#allocation2], 22
        %v1155 = vld [vmem:[%s1154] ss:$8 sm:$0x3]
        %s1156 = scalar_lea.vmem [#allocation2], 23
        %v1157 = vld [vmem:[%s1156] ss:$8 sm:$0x3]
        %v1158 = vmax.f32 %v1155, %v1157
        %s1159 = scalar_lea.vmem [#allocation3], 7
        %1160 = vst.msk [vmem:[%s1159] ss:$8 sm:$0x3] %vm1103, %v1158
        %1161 = vst.msk [vmem:[%s1159] ss:$8 sm:$0x0] %vm1103, %v1158
        %s1162 = scalar_lea.vmem [#allocation2], 32
        %v1163 = vld [vmem:[%s1162] ss:$8 sm:$0x3]
        %s1164 = scalar_lea.vmem [#allocation2], 33
        %v1165 = vld [vmem:[%s1164] ss:$8 sm:$0x3]
        %v1166 = vmax.f32 %v1163, %v1165
        %s1167 = scalar_lea.vmem [#allocation3], 16
        %1168 = vst.msk [vmem:[%s1167] ss:$8 sm:$0x3] %vm1103, %v1166
        %1169 = vst.msk [vmem:[%s1167] ss:$8 sm:$0x0] %vm1103, %v1166
        %s1170 = scalar_lea.vmem [#allocation2], 34
        %v1171 = vld [vmem:[%s1170] ss:$8 sm:$0x3]
        %s1172 = scalar_lea.vmem [#allocation2], 35
        %v1173 = vld [vmem:[%s1172] ss:$8 sm:$0x3]
        %v1174 = vmax.f32 %v1171, %v1173
        %s1175 = scalar_lea.vmem [#allocation3], 17
        %1176 = vst.msk [vmem:[%s1175] ss:$8 sm:$0x3] %vm1103, %v1174
        %1177 = vst.msk [vmem:[%s1175] ss:$8 sm:$0x0] %vm1103, %v1174
        %s1178 = scalar_lea.vmem [#allocation2], 36
        %v1179 = vld [vmem:[%s1178] ss:$8 sm:$0x3]
        %s1180 = scalar_lea.vmem [#allocation2], 37
        %v1181 = vld [vmem:[%s1180] ss:$8 sm:$0x3]
        %v1182 = vmax.f32 %v1179, %v1181
        %s1183 = scalar_lea.vmem [#allocation3], 18
        %1184 = vst.msk [vmem:[%s1183] ss:$8 sm:$0x3] %vm1103, %v1182
        %1185 = vst.msk [vmem:[%s1183] ss:$8 sm:$0x0] %vm1103, %v1182
        %s1186 = scalar_lea.vmem [#allocation2], 38
        %v1187 = vld [vmem:[%s1186] ss:$8 sm:$0x3]
        %s1188 = scalar_lea.vmem [#allocation2], 39
        %v1189 = vld [vmem:[%s1188] ss:$8 sm:$0x3]
        %v1190 = vmax.f32 %v1187, %v1189
        %s1191 = scalar_lea.vmem [#allocation3], 19
        %1192 = vst.msk [vmem:[%s1191] ss:$8 sm:$0x3] %vm1103, %v1190
        %1193 = vst.msk [vmem:[%s1191] ss:$8 sm:$0x0] %vm1103, %v1190
        %s1194 = scalar_lea.vmem [#allocation2], 48
        %v1195 = vld [vmem:[%s1194] ss:$8 sm:$0x3]
        %s1196 = scalar_lea.vmem [#allocation2], 49
        %v1197 = vld [vmem:[%s1196] ss:$8 sm:$0x3]
        %v1198 = vmax.f32 %v1195, %v1197
        %s1199 = scalar_lea.vmem [#allocation3], 20
        %1200 = vst.msk [vmem:[%s1199] ss:$8 sm:$0x3] %vm1103, %v1198
        %1201 = vst.msk [vmem:[%s1199] ss:$8 sm:$0x0] %vm1103, %v1198
        %s1202 = scalar_lea.vmem [#allocation2], 50
        %v1203 = vld [vmem:[%s1202] ss:$8 sm:$0x3]
        %s1204 = scalar_lea.vmem [#allocation2], 51
        %v1205 = vld [vmem:[%s1204] ss:$8 sm:$0x3]
        %v1206 = vmax.f32 %v1203, %v1205
        %s1207 = scalar_lea.vmem [#allocation3], 21
        %1208 = vst.msk [vmem:[%s1207] ss:$8 sm:$0x3] %vm1103, %v1206
        %1209 = vst.msk [vmem:[%s1207] ss:$8 sm:$0x0] %vm1103, %v1206
        %v1210 = vld [vmem:[#allocation3] sm:$0xff]
        %v1211 = vld [vmem:[#allocation3 + $0x10] sm:$0x3f]
        %1214 = vrot.lane.b32.xlu0 %v1210, 122
        %v1215 = vpop.permute.xlu0 %1214
        %1216 = vrot.lane.b32.xlu0 %v1211, 122
        %v1217 = vpop.permute.xlu0 %1216
        %v1220 = vmax.f32 %v1210, %v1215
        %v1221 = vmax.f32 %v1211, %v1217
        %vm1222 = vcmask 48128
        %1223 = vst.msk [vmem:[#allocation4] sm:$0xff] %vm1222, %v1220
        %vm1224 = vcmask 46080
        %1225 = vst.msk [vmem:[#allocation4 + $0x8] sm:$0x3f] %vm1224, %v1221
        %v1226 = vld [vmem:[#allocation3] sm:$0xff]
        %v1227 = vld [vmem:[#allocation3 + $0x10] sm:$0x3f]
        %1230 = vrot.lane.b32.xlu0 %v1226, 122
        %v1231 = vpop.permute.xlu0 %1230
        %1232 = vrot.lane.b32.xlu0 %v1227, 122
        %v1233 = vpop.permute.xlu0 %1232
        %v1236 = vmax.f32 %v1226, %v1231
        %v1237 = vmax.f32 %v1227, %v1233
        %1240 = vrot.lane.b32.xlu0 %v1236, 122
        %v1241 = vpop.permute.xlu0 %1240
        %1242 = vrot.lane.b32.xlu0 %v1237, 122
        %v1243 = vpop.permute.xlu0 %1242
        %vm1246 = vcmask 97328
        %1247 = vst.msk [vmem:[#allocation4] sm:$0xff] %vm1246, %v1241
        %vm1248 = vcmask 95280
        %1249 = vst.msk [vmem:[#allocation4 + $0x8] sm:$0x3f] %vm1248, %v1243
        %v1250 = vld [vmem:[#allocation3] sm:$0xff]
        %v1251 = vld [vmem:[#allocation3 + $0x10] sm:$0x3f]
        %1254 = vrot.lane.b32.xlu0 %v1250, 122
        %v1255 = vpop.permute.xlu0 %1254
        %1256 = vrot.lane.b32.xlu0 %v1251, 122
        %v1257 = vpop.permute.xlu0 %1256
        %v1260 = vmax.f32 %v1250, %v1255
        %v1261 = vmax.f32 %v1251, %v1257
        %1264 = vrot.lane.b32.xlu0 %v1260, 116
        %v1265 = vpop.permute.xlu0 %1264
        %1266 = vrot.lane.b32.xlu0 %v1261, 116
        %v1267 = vpop.permute.xlu0 %1266
        %vm1270 = vcmask 146528
        %1271 = vst.msk [vmem:[#allocation4] sm:$0xff] %vm1270, %v1265
        %vm1272 = vcmask 144480
        %1273 = vst.msk [vmem:[#allocation4 + $0x8] sm:$0x3f] %vm1272, %v1267
        %v1274 = vld [vmem:[#allocation3] sm:$0xff]
        %v1275 = vld [vmem:[#allocation3 + $0x10] sm:$0x3f]
        %1278 = vrot.lane.b32.xlu0 %v1274, 122
        %v1279 = vpop.permute.xlu0 %1278
        %1280 = vrot.lane.b32.xlu0 %v1275, 122
        %v1281 = vpop.permute.xlu0 %1280
        %v1284 = vmax.f32 %v1274, %v1279
        %v1285 = vmax.f32 %v1275, %v1281
        %1288 = vrot.lane.b32.xlu0 %v1284, 110
        %v1289 = vpop.permute.xlu0 %1288
        %1290 = vrot.lane.b32.xlu0 %v1285, 110
        %v1291 = vpop.permute.xlu0 %1290
        %vm1294 = vcmask 195728
        %1295 = vst.msk [vmem:[#allocation4] sm:$0xff] %vm1294, %v1289
        %vm1296 = vcmask 193680
        %1297 = vst.msk [vmem:[#allocation4 + $0x8] sm:$0x3f] %vm1296, %v1291
        %v1298 = vld [vmem:[#allocation3] sm:$0xff]
        %v1299 = vld [vmem:[#allocation3 + $0x10] sm:$0x3f]
        %1302 = vrot.lane.b32.xlu0 %v1298, 122
        %v1303 = vpop.permute.xlu0 %1302
        %1304 = vrot.lane.b32.xlu0 %v1299, 122
        %v1305 = vpop.permute.xlu0 %1304
        %v1308 = vmax.f32 %v1298, %v1303
        %v1309 = vmax.f32 %v1299, %v1305
        %1312 = vrot.lane.b32.xlu0 %v1308, 104
        %v1313 = vpop.permute.xlu0 %1312
        %1314 = vrot.lane.b32.xlu0 %v1309, 104
        %v1315 = vpop.permute.xlu0 %1314
        %vm1318 = vcmask 244928
        %1319 = vst.msk [vmem:[#allocation4] sm:$0xff] %vm1318, %v1313
        %vm1320 = vcmask 242880
        %1321 = vst.msk [vmem:[#allocation4 + $0x8] sm:$0x3f] %vm1320, %v1315
        %v1322 = vld [vmem:[#allocation3] sm:$0xff]
        %v1323 = vld [vmem:[#allocation3 + $0x10] sm:$0x3f]
        %1326 = vrot.lane.b32.xlu0 %v1322, 122
        %v1327 = vpop.permute.xlu0 %1326
        %1328 = vrot.lane.b32.xlu0 %v1323, 122
        %v1329 = vpop.permute.xlu0 %1328
        %v1332 = vmax.f32 %v1322, %v1327
        %v1333 = vmax.f32 %v1323, %v1329
        %1336 = vrot.lane.b32.xlu0 %v1332, 98
        %v1337 = vpop.permute.xlu0 %1336
        %1338 = vrot.lane.b32.xlu0 %v1333, 98
        %v1339 = vpop.permute.xlu0 %1338
        %vm1342 = vcmask 294128
        %1343 = vst.msk [vmem:[#allocation4] sm:$0xff] %vm1342, %v1337
        %vm1344 = vcmask 292080
        %1345 = vst.msk [vmem:[#allocation4 + $0x8] sm:$0x3f] %vm1344, %v1339
        %v1346 = vld [vmem:[#allocation3] sm:$0xff]
        %v1347 = vld [vmem:[#allocation3 + $0x10] sm:$0x3f]
        %1350 = vrot.lane.b32.xlu0 %v1346, 122
        %v1351 = vpop.permute.xlu0 %1350
        %1352 = vrot.lane.b32.xlu0 %v1347, 122
        %v1353 = vpop.permute.xlu0 %1352
        %v1356 = vmax.f32 %v1346, %v1351
        %v1357 = vmax.f32 %v1347, %v1353
        %1360 = vrot.lane.b32.xlu0 %v1356, 92
        %v1361 = vpop.permute.xlu0 %1360
        %1362 = vrot.lane.b32.xlu0 %v1357, 92
        %v1363 = vpop.permute.xlu0 %1362
        %vm1366 = vcmask 343328
        %1367 = vst.msk [vmem:[#allocation4] sm:$0xff] %vm1366, %v1361
        %vm1368 = vcmask 341280
        %1369 = vst.msk [vmem:[#allocation4 + $0x8] sm:$0x3f] %vm1368, %v1363
        %v1370 = vld [vmem:[#allocation3] sm:$0xff]
        %v1371 = vld [vmem:[#allocation3 + $0x10] sm:$0x3f]
        %1374 = vrot.lane.b32.xlu0 %v1370, 122
        %v1375 = vpop.permute.xlu0 %1374
        %1376 = vrot.lane.b32.xlu0 %v1371, 122
        %v1377 = vpop.permute.xlu0 %1376
        %v1380 = vmax.f32 %v1370, %v1375
        %v1381 = vmax.f32 %v1371, %v1377
        %1384 = vrot.lane.b32.xlu0 %v1380, 86
        %v1385 = vpop.permute.xlu0 %1384
        %1386 = vrot.lane.b32.xlu0 %v1381, 86
        %v1387 = vpop.permute.xlu0 %1386
        %vm1390 = vcmask 392528
        %1391 = vst.msk [vmem:[#allocation4] sm:$0xff] %vm1390, %v1385
        %vm1392 = vcmask 390480
        %1393 = vst.msk [vmem:[#allocation4 + $0x8] sm:$0x3f] %vm1392, %v1387
        %v1394 = vld [vmem:[#allocation3] sm:$0xff]
        %v1395 = vld [vmem:[#allocation3 + $0x10] sm:$0x3f]
        %1398 = vrot.lane.b32.xlu0 %v1394, 122
        %v1399 = vpop.permute.xlu0 %1398
        %1400 = vrot.lane.b32.xlu0 %v1395, 122
        %v1401 = vpop.permute.xlu0 %1400
        %v1404 = vmax.f32 %v1394, %v1399
        %v1405 = vmax.f32 %v1395, %v1401
        %1408 = vrot.lane.b32.xlu0 %v1404, 80
        %v1409 = vpop.permute.xlu0 %1408
        %1410 = vrot.lane.b32.xlu0 %v1405, 80
        %v1411 = vpop.permute.xlu0 %1410
        %vm1414 = vcmask 441728
        %1415 = vst.msk [vmem:[#allocation4] sm:$0xff] %vm1414, %v1409
        %vm1416 = vcmask 439680
        %1417 = vst.msk [vmem:[#allocation4 + $0x8] sm:$0x3f] %vm1416, %v1411
        %v1418 = vld [vmem:[#allocation3] sm:$0xff]
        %v1419 = vld [vmem:[#allocation3 + $0x10] sm:$0x3f]
        %1422 = vrot.lane.b32.xlu0 %v1418, 122
        %v1423 = vpop.permute.xlu0 %1422
        %1424 = vrot.lane.b32.xlu0 %v1419, 122
        %v1425 = vpop.permute.xlu0 %1424
        %v1428 = vmax.f32 %v1418, %v1423
        %v1429 = vmax.f32 %v1419, %v1425
        %1432 = vrot.lane.b32.xlu0 %v1428, 74
        %v1433 = vpop.permute.xlu0 %1432
        %1434 = vrot.lane.b32.xlu0 %v1429, 74
        %v1435 = vpop.permute.xlu0 %1434
        %vm1438 = vcmask 490928
        %1439 = vst.msk [vmem:[#allocation4] sm:$0xff] %vm1438, %v1433
        %vm1440 = vcmask 488880
        %1441 = vst.msk [vmem:[#allocation4 + $0x8] sm:$0x3f] %vm1440, %v1435
        %v1442 = vld [vmem:[#allocation3] sm:$0xff]
        %v1443 = vld [vmem:[#allocation3 + $0x10] sm:$0x3f]
        %v1444 = vld [vmem:[#allocation3 + $0x8] sm:$0xff]
        %v1445 = vld [vmem:[#allocation3 + $0x18] sm:$0x3f]
        %1450 = vrot.lane.b32.xlu0 %v1442, 122
        %v1451 = vpop.permute.xlu0 %1450
        %1452 = vrot.lane.b32.xlu0 %v1444, 122
        %v1453 = vpop.permute.xlu0 %1452
        %1454 = vrot.lane.b32.xlu0 %v1443, 122
        %v1455 = vpop.permute.xlu0 %1454
        %1456 = vrot.lane.b32.xlu0 %v1445, 122
        %v1457 = vpop.permute.xlu0 %1456
        %vm1458 = vcmask 998400
        %v1459 = vsel %vm1458, %v1451, %v1453
        %v1460 = vsel %vm1458, %v1455, %v1457
        %v1463 = vmax.f32 %v1442, %v1459
        %v1464 = vmax.f32 %v1443, %v1460
        %1467 = vrot.lane.b32.xlu0 %v1463, 68
        %v1468 = vpop.permute.xlu0 %1467
        %1469 = vrot.lane.b32.xlu0 %v1464, 68
        %v1470 = vpop.permute.xlu0 %1469
        %vm1473 = vcmask 540128
        %1474 = vst.msk [vmem:[#allocation4] sm:$0xff] %vm1473, %v1468
        %vm1475 = vcmask 538080
        %1476 = vst.msk [vmem:[#allocation4 + $0x8] sm:$0x3f] %vm1475, %v1470
        %v1477 = vld [vmem:[#allocation3 + $0x8] sm:$0xff]
        %v1478 = vld [vmem:[#allocation3 + $0x18] sm:$0x3f]
        %1481 = vrot.lane.b32.xlu0 %v1477, 122
        %v1482 = vpop.permute.xlu0 %1481
        %1483 = vrot.lane.b32.xlu0 %v1478, 122
        %v1484 = vpop.permute.xlu0 %1483
        %v1487 = vmax.f32 %v1477, %v1482
        %v1488 = vmax.f32 %v1478, %v1484
        %1491 = vrot.lane.b32.xlu0 %v1487, 62
        %v1492 = vpop.permute.xlu0 %1491
        %1493 = vrot.lane.b32.xlu0 %v1488, 62
        %v1494 = vpop.permute.xlu0 %1493
        %vm1497 = vcmask 589328
        %1498 = vst.msk [vmem:[#allocation4] sm:$0xff] %vm1497, %v1492
        %vm1499 = vcmask 587280
        %1500 = vst.msk [vmem:[#allocation4 + $0x8] sm:$0x3f] %vm1499, %v1494
        %v1501 = vld [vmem:[#allocation3 + $0x8] sm:$0xff]
        %v1502 = vld [vmem:[#allocation3 + $0x18] sm:$0x3f]
        %1505 = vrot.lane.b32.xlu0 %v1501, 122
        %v1506 = vpop.permute.xlu0 %1505
        %1507 = vrot.lane.b32.xlu0 %v1502, 122
        %v1508 = vpop.permute.xlu0 %1507
        %v1511 = vmax.f32 %v1501, %v1506
        %v1512 = vmax.f32 %v1502, %v1508
        %1515 = vrot.lane.b32.xlu0 %v1511, 56
        %v1516 = vpop.permute.xlu0 %1515
        %1517 = vrot.lane.b32.xlu0 %v1512, 56
        %v1518 = vpop.permute.xlu0 %1517
        %vm1521 = vcmask 638528
        %1522 = vst.msk [vmem:[#allocation4] sm:$0xff] %vm1521, %v1516
        %vm1523 = vcmask 636480
        %1524 = vst.msk [vmem:[#allocation4 + $0x8] sm:$0x3f] %vm1523, %v1518
        %v1525 = vld [vmem:[#allocation3 + $0x8] sm:$0xff]
        %v1526 = vld [vmem:[#allocation3 + $0x18] sm:$0x3f]
        %1529 = vrot.lane.b32.xlu0 %v1525, 122
        %v1530 = vpop.permute.xlu0 %1529
        %1531 = vrot.lane.b32.xlu0 %v1526, 122
        %v1532 = vpop.permute.xlu0 %1531
        %v1535 = vmax.f32 %v1525, %v1530
        %v1536 = vmax.f32 %v1526, %v1532
        %1539 = vrot.lane.b32.xlu0 %v1535, 50
        %v1540 = vpop.permute.xlu0 %1539
        %1541 = vrot.lane.b32.xlu0 %v1536, 50
        %v1542 = vpop.permute.xlu0 %1541
        %vm1545 = vcmask 687728
        %1546 = vst.msk [vmem:[#allocation4] sm:$0xff] %vm1545, %v1540
        %vm1547 = vcmask 685680
        %1548 = vst.msk [vmem:[#allocation4 + $0x8] sm:$0x3f] %vm1547, %v1542
        %v1549 = vld [vmem:[#allocation4] sm:$0xff]
        %v1550 = vld [vmem:[#allocation4 + $0x8] sm:$0x3]
        %v1551 = vld [vmem:[%s3] sm:$0xff]
        %v1552 = vld [vmem:[%s3 + $0x8] sm:$0xff]
        %v1553 = vld [vmem:[%s3 + $0x10] sm:$0xff]
        %v1554 = vld [vmem:[%s3 + $0x18] sm:$0xff]
        %v1555 = vld [vmem:[%s3 + $0x20] sm:$0xff]
        %v1556 = vld [vmem:[%s3 + $0x28] sm:$0xff]
        %v1557 = vld [vmem:[%s3 + $0x30] sm:$0xff]
        %v1558 = vld [vmem:[%s3 + $0x38] sm:$0xff]
        %v1559 = vld [vmem:[%s3 + $0x40] sm:$0xff]
        %v1560 = vld [vmem:[%s3 + $0x48] sm:$0xff]
        %v1561 = vld [vmem:[%s3 + $0x50] sm:$0xff]
        %v1562 = vld [vmem:[%s3 + $0x58] sm:$0xff]
        %v1563 = vld [vmem:[%s3 + $0x60] sm:$0xff]
        %v1564 = vld [vmem:[%s3 + $0x68] sm:$0xff]
        %v1565 = vld [vmem:[%s3 + $0x70] sm:$0xff]
        %v1566 = vld [vmem:[%s3 + $0x78] sm:$0xff]
        %v1567 = vld [vmem:[%s3 + $0x80] sm:$0xff]
        %v1568 = vld [vmem:[%s3 + $0x88] sm:$0xff]
        %v1569 = vld [vmem:[%s3 + $0x90] sm:$0xff]
        %v1570 = vld [vmem:[%s3 + $0x98] sm:$0xff]
        %v1571 = vld [vmem:[%s3 + $0xa0] sm:$0xf]
        %v1572 = vld [vmem:[%s3 + $0xa8] sm:$0xf]
        %v1573 = vld [vmem:[#allocation4 + $0x1] sm:$0xff]
        %v1574 = vld [vmem:[#allocation4 + $0x9] sm:$0x3]
        %s1575 = scalar_lea.vmem %s3, 176
        %v1576 = vld [vmem:[%s1575] sm:$0xff]
        %v1577 = vld [vmem:[%s1575 + $0x8] sm:$0xff]
        %v1578 = vld [vmem:[%s1575 + $0x10] sm:$0xff]
        %v1579 = vld [vmem:[%s1575 + $0x18] sm:$0xff]
        %v1580 = vld [vmem:[%s1575 + $0x20] sm:$0xff]
        %v1581 = vld [vmem:[%s1575 + $0x28] sm:$0xff]
        %v1582 = vld [vmem:[%s1575 + $0x30] sm:$0xff]
        %v1583 = vld [vmem:[%s1575 + $0x38] sm:$0xff]
        %v1584 = vld [vmem:[%s1575 + $0x40] sm:$0xff]
        %v1585 = vld [vmem:[%s1575 + $0x48] sm:$0xff]
        %v1586 = vld [vmem:[%s1575 + $0x50] sm:$0xff]
        %v1587 = vld [vmem:[%s1575 + $0x58] sm:$0xff]
        %v1588 = vld [vmem:[%s1575 + $0x60] sm:$0xff]
        %v1589 = vld [vmem:[%s1575 + $0x68] sm:$0xff]
        %v1590 = vld [vmem:[%s1575 + $0x70] sm:$0xff]
        %v1591 = vld [vmem:[%s1575 + $0x78] sm:$0xff]
        %v1592 = vld [vmem:[%s1575 + $0x80] sm:$0xff]
        %v1593 = vld [vmem:[%s1575 + $0x88] sm:$0xff]
        %v1594 = vld [vmem:[%s1575 + $0x90] sm:$0xff]
        %v1595 = vld [vmem:[%s1575 + $0x98] sm:$0xff]
        %v1596 = vld [vmem:[%s1575 + $0xa0] sm:$0xf]
        %v1597 = vld [vmem:[%s1575 + $0xa8] sm:$0xf]
        %vm1598 = vcmask 687104
        %v1600 = vsel %vm1598, %v1573, 0
        %v1603 = vsel %vm1598, %v1574, 0
        %vm1605 = vcmask 1043456
        %v1607 = vsel %vm1605, %v1596, 0
        %v1610 = vsel %vm1605, %v1597, 0
        %1612 = vmatprep.subr.mxu0 %v1577
        %1613 = vmatpush1.msra.mxu0 %v1576
        %1614 = vmatprep.subr.mxu0 %v1579
        %1615 = vmatpush1.msra.mxu0 %v1578
        %1616 = vmatprep.subr.mxu0 %v1581
        %1617 = vmatpush1.msra.mxu0 %v1580
        %1618 = vmatprep.subr.mxu0 %v1583
        %1619 = vmatpush1.msra.mxu0 %v1582
        %1620 = vmatprep.subr.mxu0 %v1585
        %1621 = vmatpush1.msra.mxu0 %v1584
        %1622 = vmatprep.subr.mxu0 %v1587
        %1623 = vmatpush1.msra.mxu0 %v1586
        %1624 = vmatprep.subr.mxu0 %v1589
        %1625 = vmatpush1.msra.mxu0 %v1588
        %1626 = vmatprep.subr.mxu0 %v1591
        %1627 = vmatpush1.msra.mxu0 %v1590
        %1628 = vmatprep.subr.mxu0 %v1593
        %1629 = vmatpush1.msra.mxu0 %v1592
        %1630 = vmatprep.subr.mxu0 %v1595
        %1631 = vmatpush1.msra.mxu0 %v1594
        %1632 = vmatprep.subr.mxu0 %v1610
        %1633 = vmatpush1.msra.mxu0 %v1607
        %1634 = vmatprep.subr.mxu0 0.0
        %1635 = vmatpush1.msra.mxu0 0.0
        %1636 = vmatprep.subr.mxu0 0.0
        %1637 = vmatpush1.msra.mxu0 0.0
        %1638 = vmatprep.subr.mxu0 0.0
        %1639 = vmatpush1.msra.mxu0 0.0
        %1640 = vmatprep.subr.mxu0 0.0
        %1641 = vmatpush1.msra.mxu0 0.0
        %1642 = vmatprep.subr.mxu0 0.0
        %1643 = vmatpush1.msra.mxu0 0.0
        %1644 = vmatprep.subr.mxu0 0.0
        %1645 = vmatpush1.msra.mxu0 0.0
        %1646 = vmatprep.subr.mxu0 0.0
        %1647 = vmatpush1.msra.mxu0 0.0
        %1648 = vmatprep.subr.mxu0 0.0
        %1649 = vmatpush1.msra.mxu0 0.0
        %1650 = vmatprep.subr.mxu0 0.0
        %1651 = vmatpush1.msra.mxu0 0.0
        %1652 = vmatprep.subr.mxu0 0.0
        %1653 = vmatpush1.msra.mxu0 0.0
        %1654 = vmatprep.subr.mxu0 0.0
        %1655 = vmatpush1.msra.mxu0 0.0
        %1656 = vmatprep.subr.mxu0 0.0
        %1657 = vmatpush1.msra.mxu0 0.0
        %1658 = vmatprep.subr.mxu0 0.0
        %1659 = vmatpush1.msra.mxu0 0.0
        %1660 = vmatprep.subr.mxu0 0.0
        %1661 = vmatpush1.msra.mxu0 0.0
        %1662 = vmatprep.subr.mxu0 0.0
        %1663 = vmatpush1.msra.mxu0 0.0
        %1664 = vmatprep.subr.mxu0 0.0
        %1665 = vmatpush1.msra.mxu0 0.0
        %1666 = vmatprep.subr.mxu0 0.0
        %1667 = vmatpush1.msra.mxu0 0.0
        %1668 = vmatprep.subr.mxu0 0.0
        %1669 = vmatpush1.msra.mxu0 0.0
        %1670 = vmatprep.subr.mxu0 0.0
        %1671 = vmatpush1.msra.mxu0 0.0
        %1672 = vmatprep.subr.mxu0 0.0
        %1673 = vmatpush1.msra.mxu0 0.0
        %1674 = vmatprep.subr.mxu0 0.0
        %1675 = vmatpush1.msra.mxu0 0.0
        %1676 = vmatprep.mubr.f32.mxu0 0.0
        %1677 = vmatmul.mubr.f32.gmra.mrb[0].mxu0 %v1600
        %v1678 = vpop.f32.mrb[0].mxu0
        %v1679 = vadd.f32 0.0, %v1678
        %v1680 = vpop.f32.mrb[0].mxu0
        %v1681 = vadd.f32 0.0, %v1680
        %1682 = vmatprep.mubr.f32.mxu0 0.0
        %1683 = vmatmul.mubr.f32.gmra.mrb[0].mxu0 %v1603
        %v1684 = vpop.f32.mrb[0].mxu0
        %v1685 = vadd.f32 0.0, %v1684
        %v1686 = vpop.f32.mrb[0].mxu0
        %v1687 = vadd.f32 0.0, %v1686
        %1688 = vdwg.mxu0
        %v1690 = vsel %vm1598, %v1549, 0
        %v1693 = vsel %vm1598, %v1550, 0
        %v1696 = vsel %vm1605, %v1571, 0
        %v1699 = vsel %vm1605, %v1572, 0
        %1701 = vmatprep.subr.mxu0 %v1552
        %1702 = vmatpush1.msra.mxu0 %v1551
        %1703 = vmatprep.subr.mxu0 %v1554
        %1704 = vmatpush1.msra.mxu0 %v1553
        %1705 = vmatprep.subr.mxu0 %v1556
        %1706 = vmatpush1.msra.mxu0 %v1555
        %1707 = vmatprep.subr.mxu0 %v1558
        %1708 = vmatpush1.msra.mxu0 %v1557
        %1709 = vmatprep.subr.mxu0 %v1560
        %1710 = vmatpush1.msra.mxu0 %v1559
        %1711 = vmatprep.subr.mxu0 %v1562
        %1712 = vmatpush1.msra.mxu0 %v1561
        %1713 = vmatprep.subr.mxu0 %v1564
        %1714 = vmatpush1.msra.mxu0 %v1563
        %1715 = vmatprep.subr.mxu0 %v1566
        %1716 = vmatpush1.msra.mxu0 %v1565
        %1717 = vmatprep.subr.mxu0 %v1568
        %1718 = vmatpush1.msra.mxu0 %v1567
        %1719 = vmatprep.subr.mxu0 %v1570
        %1720 = vmatpush1.msra.mxu0 %v1569
        %1721 = vmatprep.subr.mxu0 %v1699
        %1722 = vmatpush1.msra.mxu0 %v1696
        %1723 = vmatprep.subr.mxu0 0.0
        %1724 = vmatpush1.msra.mxu0 0.0
        %1725 = vmatprep.subr.mxu0 0.0
        %1726 = vmatpush1.msra.mxu0 0.0
        %1727 = vmatprep.subr.mxu0 0.0
        %1728 = vmatpush1.msra.mxu0 0.0
        %1729 = vmatprep.subr.mxu0 0.0
        %1730 = vmatpush1.msra.mxu0 0.0
        %1731 = vmatprep.subr.mxu0 0.0
        %1732 = vmatpush1.msra.mxu0 0.0
        %1733 = vmatprep.subr.mxu0 0.0
        %1734 = vmatpush1.msra.mxu0 0.0
        %1735 = vmatprep.subr.mxu0 0.0
        %1736 = vmatpush1.msra.mxu0 0.0
        %1737 = vmatprep.subr.mxu0 0.0
        %1738 = vmatpush1.msra.mxu0 0.0
        %1739 = vmatprep.subr.mxu0 0.0
        %1740 = vmatpush1.msra.mxu0 0.0
        %1741 = vmatprep.subr.mxu0 0.0
        %1742 = vmatpush1.msra.mxu0 0.0
        %1743 = vmatprep.subr.mxu0 0.0
        %1744 = vmatpush1.msra.mxu0 0.0
        %1745 = vmatprep.subr.mxu0 0.0
        %1746 = vmatpush1.msra.mxu0 0.0
        %1747 = vmatprep.subr.mxu0 0.0
        %1748 = vmatpush1.msra.mxu0 0.0
        %1749 = vmatprep.subr.mxu0 0.0
        %1750 = vmatpush1.msra.mxu0 0.0
        %1751 = vmatprep.subr.mxu0 0.0
        %1752 = vmatpush1.msra.mxu0 0.0
        %1753 = vmatprep.subr.mxu0 0.0
        %1754 = vmatpush1.msra.mxu0 0.0
        %1755 = vmatprep.subr.mxu0 0.0
        %1756 = vmatpush1.msra.mxu0 0.0
        %1757 = vmatprep.subr.mxu0 0.0
        %1758 = vmatpush1.msra.mxu0 0.0
        %1759 = vmatprep.subr.mxu0 0.0
        %1760 = vmatpush1.msra.mxu0 0.0
        %1761 = vmatprep.subr.mxu0 0.0
        %1762 = vmatpush1.msra.mxu0 0.0
        %1763 = vmatprep.subr.mxu0 0.0
        %1764 = vmatpush1.msra.mxu0 0.0
        %1765 = vmatprep.mubr.f32.mxu0 0.0
        %1766 = vmatmul.mubr.f32.gmra.mrb[0].mxu0 %v1690
        %v1767 = vpop.f32.mrb[0].mxu0
        %v1768 = vadd.f32 %v1679, %v1767
        %v1769 = vpop.f32.mrb[0].mxu0
        %v1770 = vadd.f32 %v1681, %v1769
        %1771 = vmatprep.mubr.f32.mxu0 0.0
        %1772 = vmatmul.mubr.f32.gmra.mrb[0].mxu0 %v1693
        %v1773 = vpop.f32.mrb[0].mxu0
        %v1774 = vadd.f32 %v1685, %v1773
        %v1775 = vpop.f32.mrb[0].mxu0
        %v1776 = vadd.f32 %v1687, %v1775
        %1777 = vdwg.mxu0
        %v1778 = vld [vmem:[#allocation4 + $0x2] sm:$0xff]
        %v1779 = vld [vmem:[#allocation4 + $0xa] sm:$0x3]
        %s1780 = scalar_lea.vmem %s3, 352
        %v1781 = vld [vmem:[%s1780] sm:$0xff]
        %v1782 = vld [vmem:[%s1780 + $0x8] sm:$0xff]
        %v1783 = vld [vmem:[%s1780 + $0x10] sm:$0xff]
        %v1784 = vld [vmem:[%s1780 + $0x18] sm:$0xff]
        %v1785 = vld [vmem:[%s1780 + $0x20] sm:$0xff]
        %v1786 = vld [vmem:[%s1780 + $0x28] sm:$0xff]
        %v1787 = vld [vmem:[%s1780 + $0x30] sm:$0xff]
        %v1788 = vld [vmem:[%s1780 + $0x38] sm:$0xff]
        %v1789 = vld [vmem:[%s1780 + $0x40] sm:$0xff]
        %v1790 = vld [vmem:[%s1780 + $0x48] sm:$0xff]
        %v1791 = vld [vmem:[%s1780 + $0x50] sm:$0xff]
        %v1792 = vld [vmem:[%s1780 + $0x58] sm:$0xff]
        %v1793 = vld [vmem:[%s1780 + $0x60] sm:$0xff]
        %v1794 = vld [vmem:[%s1780 + $0x68] sm:$0xff]
        %v1795 = vld [vmem:[%s1780 + $0x70] sm:$0xff]
        %v1796 = vld [vmem:[%s1780 + $0x78] sm:$0xff]
        %v1797 = vld [vmem:[%s1780 + $0x80] sm:$0xff]
        %v1798 = vld [vmem:[%s1780 + $0x88] sm:$0xff]
        %v1799 = vld [vmem:[%s1780 + $0x90] sm:$0xff]
        %v1800 = vld [vmem:[%s1780 + $0x98] sm:$0xff]
        %v1801 = vld [vmem:[%s1780 + $0xa0] sm:$0xf]
        %v1802 = vld [vmem:[%s1780 + $0xa8] sm:$0xf]
        %v1804 = vsel %vm1598, %v1778, 0
        %v1807 = vsel %vm1598, %v1779, 0
        %v1810 = vsel %vm1605, %v1801, 0
        %v1813 = vsel %vm1605, %v1802, 0
        %1815 = vmatprep.subr.mxu0 %v1782
        %1816 = vmatpush1.msra.mxu0 %v1781
        %1817 = vmatprep.subr.mxu0 %v1784
        %1818 = vmatpush1.msra.mxu0 %v1783
        %1819 = vmatprep.subr.mxu0 %v1786
        %1820 = vmatpush1.msra.mxu0 %v1785
        %1821 = vmatprep.subr.mxu0 %v1788
        %1822 = vmatpush1.msra.mxu0 %v1787
        %1823 = vmatprep.subr.mxu0 %v1790
        %1824 = vmatpush1.msra.mxu0 %v1789
        %1825 = vmatprep.subr.mxu0 %v1792
        %1826 = vmatpush1.msra.mxu0 %v1791
        %1827 = vmatprep.subr.mxu0 %v1794
        %1828 = vmatpush1.msra.mxu0 %v1793
        %1829 = vmatprep.subr.mxu0 %v1796
        %1830 = vmatpush1.msra.mxu0 %v1795
        %1831 = vmatprep.subr.mxu0 %v1798
        %1832 = vmatpush1.msra.mxu0 %v1797
        %1833 = vmatprep.subr.mxu0 %v1800
        %1834 = vmatpush1.msra.mxu0 %v1799
        %1835 = vmatprep.subr.mxu0 %v1813
        %1836 = vmatpush1.msra.mxu0 %v1810
        %1837 = vmatprep.subr.mxu0 0.0
        %1838 = vmatpush1.msra.mxu0 0.0
        %1839 = vmatprep.subr.mxu0 0.0
        %1840 = vmatpush1.msra.mxu0 0.0
        %1841 = vmatprep.subr.mxu0 0.0
        %1842 = vmatpush1.msra.mxu0 0.0
        %1843 = vmatprep.subr.mxu0 0.0
        %1844 = vmatpush1.msra.mxu0 0.0
        %1845 = vmatprep.subr.mxu0 0.0
        %1846 = vmatpush1.msra.mxu0 0.0
        %1847 = vmatprep.subr.mxu0 0.0
        %1848 = vmatpush1.msra.mxu0 0.0
        %1849 = vmatprep.subr.mxu0 0.0
        %1850 = vmatpush1.msra.mxu0 0.0
        %1851 = vmatprep.subr.mxu0 0.0
        %1852 = vmatpush1.msra.mxu0 0.0
        %1853 = vmatprep.subr.mxu0 0.0
        %1854 = vmatpush1.msra.mxu0 0.0
        %1855 = vmatprep.subr.mxu0 0.0
        %1856 = vmatpush1.msra.mxu0 0.0
        %1857 = vmatprep.subr.mxu0 0.0
        %1858 = vmatpush1.msra.mxu0 0.0
        %1859 = vmatprep.subr.mxu0 0.0
        %1860 = vmatpush1.msra.mxu0 0.0
        %1861 = vmatprep.subr.mxu0 0.0
        %1862 = vmatpush1.msra.mxu0 0.0
        %1863 = vmatprep.subr.mxu0 0.0
        %1864 = vmatpush1.msra.mxu0 0.0
        %1865 = vmatprep.subr.mxu0 0.0
        %1866 = vmatpush1.msra.mxu0 0.0
        %1867 = vmatprep.subr.mxu0 0.0
        %1868 = vmatpush1.msra.mxu0 0.0
        %1869 = vmatprep.subr.mxu0 0.0
        %1870 = vmatpush1.msra.mxu0 0.0
        %1871 = vmatprep.subr.mxu0 0.0
        %1872 = vmatpush1.msra.mxu0 0.0
        %1873 = vmatprep.subr.mxu0 0.0
        %1874 = vmatpush1.msra.mxu0 0.0
        %1875 = vmatprep.subr.mxu0 0.0
        %1876 = vmatpush1.msra.mxu0 0.0
        %1877 = vmatprep.subr.mxu0 0.0
        %1878 = vmatpush1.msra.mxu0 0.0
        %1879 = vmatprep.mubr.f32.mxu0 0.0
        %1880 = vmatmul.mubr.f32.gmra.mrb[0].mxu0 %v1804
        %v1881 = vpop.f32.mrb[0].mxu0
        %v1882 = vadd.f32 0.0, %v1881
        %v1883 = vpop.f32.mrb[0].mxu0
        %v1884 = vadd.f32 0.0, %v1883
        %1885 = vmatprep.mubr.f32.mxu0 0.0
        %1886 = vmatmul.mubr.f32.gmra.mrb[0].mxu0 %v1807
        %v1887 = vpop.f32.mrb[0].mxu0
        %v1888 = vadd.f32 0.0, %v1887
        %v1889 = vpop.f32.mrb[0].mxu0
        %v1890 = vadd.f32 0.0, %v1889
        %1891 = vdwg.mxu0
        %v1892 = vadd.f32 %v1768, %v1882
        %v1893 = vadd.f32 %v1770, %v1884
        %v1894 = vadd.f32 %v1774, %v1888
        %v1895 = vadd.f32 %v1776, %v1890
        %v1896 = vld [vmem:[#allocation4 + $0x3] sm:$0xff]
        %v1897 = vld [vmem:[#allocation4 + $0xb] sm:$0x3]
        %s1898 = scalar_lea.vmem %s3, 528
        %v1899 = vld [vmem:[%s1898] sm:$0xff]
        %v1900 = vld [vmem:[%s1898 + $0x8] sm:$0xff]
        %v1901 = vld [vmem:[%s1898 + $0x10] sm:$0xff]
        %v1902 = vld [vmem:[%s1898 + $0x18] sm:$0xff]
        %v1903 = vld [vmem:[%s1898 + $0x20] sm:$0xff]
        %v1904 = vld [vmem:[%s1898 + $0x28] sm:$0xff]
        %v1905 = vld [vmem:[%s1898 + $0x30] sm:$0xff]
        %v1906 = vld [vmem:[%s1898 + $0x38] sm:$0xff]
        %v1907 = vld [vmem:[%s1898 + $0x40] sm:$0xff]
        %v1908 = vld [vmem:[%s1898 + $0x48] sm:$0xff]
        %v1909 = vld [vmem:[%s1898 + $0x50] sm:$0xff]
        %v1910 = vld [vmem:[%s1898 + $0x58] sm:$0xff]
        %v1911 = vld [vmem:[%s1898 + $0x60] sm:$0xff]
        %v1912 = vld [vmem:[%s1898 + $0x68] sm:$0xff]
        %v1913 = vld [vmem:[%s1898 + $0x70] sm:$0xff]
        %v1914 = vld [vmem:[%s1898 + $0x78] sm:$0xff]
        %v1915 = vld [vmem:[%s1898 + $0x80] sm:$0xff]
        %v1916 = vld [vmem:[%s1898 + $0x88] sm:$0xff]
        %v1917 = vld [vmem:[%s1898 + $0x90] sm:$0xff]
        %v1918 = vld [vmem:[%s1898 + $0x98] sm:$0xff]
        %v1919 = vld [vmem:[%s1898 + $0xa0] sm:$0xf]
        %v1920 = vld [vmem:[%s1898 + $0xa8] sm:$0xf]
        %v1922 = vsel %vm1598, %v1896, 0
        %v1925 = vsel %vm1598, %v1897, 0
        %v1928 = vsel %vm1605, %v1919, 0
        %v1931 = vsel %vm1605, %v1920, 0
        %1933 = vmatprep.subr.mxu0 %v1900
        %1934 = vmatpush1.msra.mxu0 %v1899
        %1935 = vmatprep.subr.mxu0 %v1902
        %1936 = vmatpush1.msra.mxu0 %v1901
        %1937 = vmatprep.subr.mxu0 %v1904
        %1938 = vmatpush1.msra.mxu0 %v1903
        %1939 = vmatprep.subr.mxu0 %v1906
        %1940 = vmatpush1.msra.mxu0 %v1905
        %1941 = vmatprep.subr.mxu0 %v1908
        %1942 = vmatpush1.msra.mxu0 %v1907
        %1943 = vmatprep.subr.mxu0 %v1910
        %1944 = vmatpush1.msra.mxu0 %v1909
        %1945 = vmatprep.subr.mxu0 %v1912
        %1946 = vmatpush1.msra.mxu0 %v1911
        %1947 = vmatprep.subr.mxu0 %v1914
        %1948 = vmatpush1.msra.mxu0 %v1913
        %1949 = vmatprep.subr.mxu0 %v1916
        %1950 = vmatpush1.msra.mxu0 %v1915
        %1951 = vmatprep.subr.mxu0 %v1918
        %1952 = vmatpush1.msra.mxu0 %v1917
        %1953 = vmatprep.subr.mxu0 %v1931
        %1954 = vmatpush1.msra.mxu0 %v1928
        %1955 = vmatprep.subr.mxu0 0.0
        %1956 = vmatpush1.msra.mxu0 0.0
        %1957 = vmatprep.subr.mxu0 0.0
        %1958 = vmatpush1.msra.mxu0 0.0
        %1959 = vmatprep.subr.mxu0 0.0
        %1960 = vmatpush1.msra.mxu0 0.0
        %1961 = vmatprep.subr.mxu0 0.0
        %1962 = vmatpush1.msra.mxu0 0.0
        %1963 = vmatprep.subr.mxu0 0.0
        %1964 = vmatpush1.msra.mxu0 0.0
        %1965 = vmatprep.subr.mxu0 0.0
        %1966 = vmatpush1.msra.mxu0 0.0
        %1967 = vmatprep.subr.mxu0 0.0
        %1968 = vmatpush1.msra.mxu0 0.0
        %1969 = vmatprep.subr.mxu0 0.0
        %1970 = vmatpush1.msra.mxu0 0.0
        %1971 = vmatprep.subr.mxu0 0.0
        %1972 = vmatpush1.msra.mxu0 0.0
        %1973 = vmatprep.subr.mxu0 0.0
        %1974 = vmatpush1.msra.mxu0 0.0
        %1975 = vmatprep.subr.mxu0 0.0
        %1976 = vmatpush1.msra.mxu0 0.0
        %1977 = vmatprep.subr.mxu0 0.0
        %1978 = vmatpush1.msra.mxu0 0.0
        %1979 = vmatprep.subr.mxu0 0.0
        %1980 = vmatpush1.msra.mxu0 0.0
        %1981 = vmatprep.subr.mxu0 0.0
        %1982 = vmatpush1.msra.mxu0 0.0
        %1983 = vmatprep.subr.mxu0 0.0
        %1984 = vmatpush1.msra.mxu0 0.0
        %1985 = vmatprep.subr.mxu0 0.0
        %1986 = vmatpush1.msra.mxu0 0.0
        %1987 = vmatprep.subr.mxu0 0.0
        %1988 = vmatpush1.msra.mxu0 0.0
        %1989 = vmatprep.subr.mxu0 0.0
        %1990 = vmatpush1.msra.mxu0 0.0
        %1991 = vmatprep.subr.mxu0 0.0
        %1992 = vmatpush1.msra.mxu0 0.0
        %1993 = vmatprep.subr.mxu0 0.0
        %1994 = vmatpush1.msra.mxu0 0.0
        %1995 = vmatprep.subr.mxu0 0.0
        %1996 = vmatpush1.msra.mxu0 0.0
        %1997 = vmatprep.mubr.f32.mxu0 0.0
        %1998 = vmatmul.mubr.f32.gmra.mrb[0].mxu0 %v1922
        %v1999 = vpop.f32.mrb[0].mxu0
        %v2000 = vadd.f32 0.0, %v1999
        %v2001 = vpop.f32.mrb[0].mxu0
        %v2002 = vadd.f32 0.0, %v2001
        %2003 = vmatprep.mubr.f32.mxu0 0.0
        %2004 = vmatmul.mubr.f32.gmra.mrb[0].mxu0 %v1925
        %v2005 = vpop.f32.mrb[0].mxu0
        %v2006 = vadd.f32 0.0, %v2005
        %v2007 = vpop.f32.mrb[0].mxu0
        %v2008 = vadd.f32 0.0, %v2007
        %2009 = vdwg.mxu0
        %v2010 = vadd.f32 %v1892, %v2000
        %v2011 = vadd.f32 %v1893, %v2002
        %v2012 = vadd.f32 %v1894, %v2006
        %v2013 = vadd.f32 %v1895, %v2008
        %v2014 = vld [vmem:[#allocation4 + $0x4] sm:$0xff]
        %v2015 = vld [vmem:[#allocation4 + $0xc] sm:$0x3]
        %s2016 = scalar_lea.vmem %s3, 704
        %v2017 = vld [vmem:[%s2016] sm:$0xff]
        %v2018 = vld [vmem:[%s2016 + $0x8] sm:$0xff]
        %v2019 = vld [vmem:[%s2016 + $0x10] sm:$0xff]
        %v2020 = vld [vmem:[%s2016 + $0x18] sm:$0xff]
        %v2021 = vld [vmem:[%s2016 + $0x20] sm:$0xff]
        %v2022 = vld [vmem:[%s2016 + $0x28] sm:$0xff]
        %v2023 = vld [vmem:[%s2016 + $0x30] sm:$0xff]
        %v2024 = vld [vmem:[%s2016 + $0x38] sm:$0xff]
        %v2025 = vld [vmem:[%s2016 + $0x40] sm:$0xff]
        %v2026 = vld [vmem:[%s2016 + $0x48] sm:$0xff]
        %v2027 = vld [vmem:[%s2016 + $0x50] sm:$0xff]
        %v2028 = vld [vmem:[%s2016 + $0x58] sm:$0xff]
        %v2029 = vld [vmem:[%s2016 + $0x60] sm:$0xff]
        %v2030 = vld [vmem:[%s2016 + $0x68] sm:$0xff]
        %v2031 = vld [vmem:[%s2016 + $0x70] sm:$0xff]
        %v2032 = vld [vmem:[%s2016 + $0x78] sm:$0xff]
        %v2033 = vld [vmem:[%s2016 + $0x80] sm:$0xff]
        %v2034 = vld [vmem:[%s2016 + $0x88] sm:$0xff]
        %v2035 = vld [vmem:[%s2016 + $0x90] sm:$0xff]
        %v2036 = vld [vmem:[%s2016 + $0x98] sm:$0xff]
        %v2037 = vld [vmem:[%s2016 + $0xa0] sm:$0xf]
        %v2038 = vld [vmem:[%s2016 + $0xa8] sm:$0xf]
        %v2040 = vsel %vm1598, %v2014, 0
        %v2043 = vsel %vm1598, %v2015, 0
        %v2046 = vsel %vm1605, %v2037, 0
        %v2049 = vsel %vm1605, %v2038, 0
        %2051 = vmatprep.subr.mxu0 %v2018
        %2052 = vmatpush1.msra.mxu0 %v2017
        %2053 = vmatprep.subr.mxu0 %v2020
        %2054 = vmatpush1.msra.mxu0 %v2019
        %2055 = vmatprep.subr.mxu0 %v2022
        %2056 = vmatpush1.msra.mxu0 %v2021
        %2057 = vmatprep.subr.mxu0 %v2024
        %2058 = vmatpush1.msra.mxu0 %v2023
        %2059 = vmatprep.subr.mxu0 %v2026
        %2060 = vmatpush1.msra.mxu0 %v2025
        %2061 = vmatprep.subr.mxu0 %v2028
        %2062 = vmatpush1.msra.mxu0 %v2027
        %2063 = vmatprep.subr.mxu0 %v2030
        %2064 = vmatpush1.msra.mxu0 %v2029
        %2065 = vmatprep.subr.mxu0 %v2032
        %2066 = vmatpush1.msra.mxu0 %v2031
        %2067 = vmatprep.subr.mxu0 %v2034
        %2068 = vmatpush1.msra.mxu0 %v2033
        %2069 = vmatprep.subr.mxu0 %v2036
        %2070 = vmatpush1.msra.mxu0 %v2035
        %2071 = vmatprep.subr.mxu0 %v2049
        %2072 = vmatpush1.msra.mxu0 %v2046
        %2073 = vmatprep.subr.mxu0 0.0
        %2074 = vmatpush1.msra.mxu0 0.0
        %2075 = vmatprep.subr.mxu0 0.0
        %2076 = vmatpush1.msra.mxu0 0.0
        %2077 = vmatprep.subr.mxu0 0.0
        %2078 = vmatpush1.msra.mxu0 0.0
        %2079 = vmatprep.subr.mxu0 0.0
        %2080 = vmatpush1.msra.mxu0 0.0
        %2081 = vmatprep.subr.mxu0 0.0
        %2082 = vmatpush1.msra.mxu0 0.0
        %2083 = vmatprep.subr.mxu0 0.0
        %2084 = vmatpush1.msra.mxu0 0.0
        %2085 = vmatprep.subr.mxu0 0.0
        %2086 = vmatpush1.msra.mxu0 0.0
        %2087 = vmatprep.subr.mxu0 0.0
        %2088 = vmatpush1.msra.mxu0 0.0
        %2089 = vmatprep.subr.mxu0 0.0
        %2090 = vmatpush1.msra.mxu0 0.0
        %2091 = vmatprep.subr.mxu0 0.0
        %2092 = vmatpush1.msra.mxu0 0.0
        %2093 = vmatprep.subr.mxu0 0.0
        %2094 = vmatpush1.msra.mxu0 0.0
        %2095 = vmatprep.subr.mxu0 0.0
        %2096 = vmatpush1.msra.mxu0 0.0
        %2097 = vmatprep.subr.mxu0 0.0
        %2098 = vmatpush1.msra.mxu0 0.0
        %2099 = vmatprep.subr.mxu0 0.0
        %2100 = vmatpush1.msra.mxu0 0.0
        %2101 = vmatprep.subr.mxu0 0.0
        %2102 = vmatpush1.msra.mxu0 0.0
        %2103 = vmatprep.subr.mxu0 0.0
        %2104 = vmatpush1.msra.mxu0 0.0
        %2105 = vmatprep.subr.mxu0 0.0
        %2106 = vmatpush1.msra.mxu0 0.0
        %2107 = vmatprep.subr.mxu0 0.0
        %2108 = vmatpush1.msra.mxu0 0.0
        %2109 = vmatprep.subr.mxu0 0.0
        %2110 = vmatpush1.msra.mxu0 0.0
        %2111 = vmatprep.subr.mxu0 0.0
        %2112 = vmatpush1.msra.mxu0 0.0
        %2113 = vmatprep.subr.mxu0 0.0
        %2114 = vmatpush1.msra.mxu0 0.0
        %2115 = vmatprep.mubr.f32.mxu0 0.0
        %2116 = vmatmul.mubr.f32.gmra.mrb[0].mxu0 %v2040
        %v2117 = vpop.f32.mrb[0].mxu0
        %v2118 = vadd.f32 0.0, %v2117
        %v2119 = vpop.f32.mrb[0].mxu0
        %v2120 = vadd.f32 0.0, %v2119
        %2121 = vmatprep.mubr.f32.mxu0 0.0
        %2122 = vmatmul.mubr.f32.gmra.mrb[0].mxu0 %v2043
        %v2123 = vpop.f32.mrb[0].mxu0
        %v2124 = vadd.f32 0.0, %v2123
        %v2125 = vpop.f32.mrb[0].mxu0
        %v2126 = vadd.f32 0.0, %v2125
        %2127 = vdwg.mxu0
        %v2128 = vadd.f32 %v2010, %v2118
        %v2129 = vadd.f32 %v2011, %v2120
        %v2130 = vadd.f32 %v2012, %v2124
        %v2131 = vadd.f32 %v2013, %v2126
        %v2132 = vld [vmem:[%s4] sm:$0x3]
        %v2134 = vlaneseq
        %v2135 = vshrl.u32 %v2134, 7
        %v2136 = vsub.s32 0, %v2135
        %v2137 = vrot.slane %v2132, %v2136
        %v2138 = vlaneseq
        %v2139 = vshrl.u32 %v2138, 7
        %v2140 = vsub.s32 1, %v2139
        %v2141 = vrot.slane %v2132, %v2140
        %v2144 = vadd.f32 %v2128, %v2137
        %v2145 = vadd.f32 %v2129, %v2141
        %v2146 = vadd.f32 %v2130, %v2137
        %v2147 = vadd.f32 %v2131, %v2141
        %v2148 = vmax.f32 %v2144, 0.0
        %v2149 = vmax.f32 %v2145, 0.0
        %v2150 = vmax.f32 %v2146, 0.0
        %v2151 = vmax.f32 %v2147, 0.0
        %2152 = vst [vmem:[#allocation5] sm:$0xff] %v2148
        %vm2153 = vcmask 261120
        %2154 = vst.msk [vmem:[#allocation5 + $0x8] sm:$0xff] %vm2153, %v2149
        %2155 = vst [vmem:[#allocation5 + $0x10] sm:$0x3] %v2150
        %vm2156 = vcmask 254976
        %2157 = vst.msk [vmem:[#allocation5 + $0x18] sm:$0x3] %vm2156, %v2151
        %v2158 = vld [vmem:[#allocation5] ss:$8 sm:$0x3]
        %s2159 = scalar_lea.vmem [#allocation5], 1
        %v2160 = vld [vmem:[%s2159] ss:$8 sm:$0x3]
        %v2161 = vmax.f32 %v2158, %v2160
        %vm2162 = vcmp.lt.s32.totalorder %v1100, 160
        %vm2163 = vmand %vm1101, %vm2162
        %2164 = vst.msk [vmem:[#allocation6] ss:$8 sm:$0x3] %vm2163, %v2161
        %2165 = vst.msk [vmem:[#allocation6] ss:$8 sm:$0x0] %vm2163, %v2161
        %s2166 = scalar_lea.vmem [#allocation5], 2
        %v2167 = vld [vmem:[%s2166] ss:$8 sm:$0x3]
        %s2168 = scalar_lea.vmem [#allocation5], 3
        %v2169 = vld [vmem:[%s2168] ss:$8 sm:$0x3]
        %v2170 = vmax.f32 %v2167, %v2169
        %s2171 = scalar_lea.vmem [#allocation6], 1
        %2172 = vst.msk [vmem:[%s2171] ss:$8 sm:$0x3] %vm2163, %v2170
        %2173 = vst.msk [vmem:[%s2171] ss:$8 sm:$0x0] %vm2163, %v2170
        %s2174 = scalar_lea.vmem [#allocation5], 4
        %v2175 = vld [vmem:[%s2174] ss:$8 sm:$0x3]
        %s2176 = scalar_lea.vmem [#allocation5], 5
        %v2177 = vld [vmem:[%s2176] ss:$8 sm:$0x3]
        %v2178 = vmax.f32 %v2175, %v2177
        %s2179 = scalar_lea.vmem [#allocation6], 2
        %2180 = vst.msk [vmem:[%s2179] ss:$8 sm:$0x3] %vm2163, %v2178
        %2181 = vst.msk [vmem:[%s2179] ss:$8 sm:$0x0] %vm2163, %v2178
        %s2182 = scalar_lea.vmem [#allocation5], 6
        %v2183 = vld [vmem:[%s2182] ss:$8 sm:$0x3]
        %s2184 = scalar_lea.vmem [#allocation5], 7
        %v2185 = vld [vmem:[%s2184] ss:$8 sm:$0x3]
        %v2186 = vmax.f32 %v2183, %v2185
        %s2187 = scalar_lea.vmem [#allocation6], 3
        %2188 = vst.msk [vmem:[%s2187] ss:$8 sm:$0x3] %vm2163, %v2186
        %2189 = vst.msk [vmem:[%s2187] ss:$8 sm:$0x0] %vm2163, %v2186
        %s2190 = scalar_lea.vmem [#allocation5], 16
        %v2191 = vld [vmem:[%s2190] ss:$8 sm:$0x3]
        %s2192 = scalar_lea.vmem [#allocation5], 17
        %v2193 = vld [vmem:[%s2192] ss:$8 sm:$0x3]
        %v2194 = vmax.f32 %v2191, %v2193
        %s2195 = scalar_lea.vmem [#allocation6], 4
        %2196 = vst.msk [vmem:[%s2195] ss:$8 sm:$0x3] %vm2163, %v2194
        %2197 = vst.msk [vmem:[%s2195] ss:$8 sm:$0x0] %vm2163, %v2194
        %v2198 = vld [vmem:[#allocation6] sm:$0x1f]
        %2200 = vrot.lane.b32.xlu0 %v2198, 112
        %v2201 = vpop.permute.xlu0 %2200
        %v2203 = vmax.f32 %v2198, %v2201
        %vm2204 = vcmask 126976
        %2205 = vst.msk [vmem:[#allocation7] sm:$0x1f] %vm2204, %v2203
        %v2206 = vld [vmem:[#allocation6] sm:$0x1f]
        %2208 = vrot.lane.b32.xlu0 %v2206, 112
        %v2209 = vpop.permute.xlu0 %2208
        %v2211 = vmax.f32 %v2206, %v2209
        %2213 = vrot.lane.b32.xlu0 %v2211, 112
        %v2214 = vpop.permute.xlu0 %2213
        %vm2216 = vcmask 258176
        %2217 = vst.msk [vmem:[#allocation7] sm:$0x1f] %vm2216, %v2214
        %v2218 = vld [vmem:[#allocation6] sm:$0x1f]
        %2220 = vrot.lane.b32.xlu0 %v2218, 112
        %v2221 = vpop.permute.xlu0 %2220
        %v2223 = vmax.f32 %v2218, %v2221
        %2225 = vrot.lane.b32.xlu0 %v2223, 96
        %v2226 = vpop.permute.xlu0 %2225
        %vm2228 = vcmask 389376
        %2229 = vst.msk [vmem:[#allocation7] sm:$0x1f] %vm2228, %v2226
        %v2230 = vld [vmem:[#allocation6] sm:$0x1f]
        %2232 = vrot.lane.b32.xlu0 %v2230, 112
        %v2233 = vpop.permute.xlu0 %2232
        %v2235 = vmax.f32 %v2230, %v2233
        %2237 = vrot.lane.b32.xlu0 %v2235, 80
        %v2238 = vpop.permute.xlu0 %2237
        %vm2240 = vcmask 520576
        %2241 = vst.msk [vmem:[#allocation7] sm:$0x1f] %vm2240, %v2238
        %v2242 = vld [vmem:[#allocation6 + $0x8] sm:$0x1f]
        %2244 = vrot.lane.b32.xlu0 %v2242, 112
        %v2245 = vpop.permute.xlu0 %2244
        %v2247 = vmax.f32 %v2242, %v2245
        %2249 = vrot.lane.b32.xlu0 %v2247, 64
        %v2250 = vpop.permute.xlu0 %2249
        %vm2252 = vcmask 651776
        %2253 = vst.msk [vmem:[#allocation7] sm:$0x1f] %vm2252, %v2250
        %v2254 = vld [vmem:[#allocation7] sm:$0x1]
        %vm2255 = vcmp.lt.s32.totalorder %v1100, 80
        %vm2256 = vmand %vm1101, %vm2255
        %2257 = vst.msk [vmem:[#allocation8] sm:$0x1] %vm2256, %v2254
        %v2258 = vld [vmem:[#allocation7 + $0x1] sm:$0x1]
        %v2261 = vunpack.c.l.s4 1966171168
        %v2262 = vunpack.c.0.s8 %v2261
        %v2263 = vlaneseq
        %v2264 = vshrl.u32 %v2263, 7
        %v2265 = vsub.s32 %v2262, %v2264
        %v2266 = vrot.slane %v2258, %v2265
        %v2268 = vunpack.c.l.s4 1966171168
        %v2269 = vunpack.c.0.s8 %v2268
        %v2270 = vlaneseq
        %v2271 = vshrl.u32 %v2270, 7
        %v2272 = vsub.s32 %v2269, %v2271
        %v2273 = vrot.slane %v2266, %v2272
        %2274 = vrot.lane.b32.xlu0 %v2273, 80
        %v2275 = vpop.permute.xlu0 %2274
        %v2276 = vrot.slane %v2275, 7
        %vm2277 = vcmask 654336
        %v2278 = vsel %vm2277, %v2276, %v2275
        %vm2280 = vcmp.ge.s32.totalorder %v1100, 80
        %vm2281 = vmand %vm2280, %vm2162
        %2282 = vst.msk [vmem:[#allocation8] sm:$0x3] %vm2281, %v2278
        %v2283 = vld [vmem:[#allocation7 + $0x2] sm:$0x1]
        %v2286 = vunpack.c.l.s4 1966171168
        %v2287 = vunpack.c.0.s8 %v2286
        %v2288 = vlaneseq
        %v2289 = vshrl.u32 %v2288, 7
        %v2290 = vsub.s32 %v2287, %v2289
        %v2291 = vrot.slane %v2283, %v2290
        %v2293 = vunpack.c.l.s4 1966171168
        %v2294 = vunpack.c.0.s8 %v2293
        %v2295 = vlaneseq
        %v2296 = vshrl.u32 %v2295, 7
        %v2297 = vsub.s32 %v2294, %v2296
        %v2298 = vrot.slane %v2291, %v2297
        %2299 = vrot.lane.b32.xlu0 %v2298, 32
        %v2300 = vpop.permute.xlu0 %2299
        %vm2302 = vcmp.ge.s32.totalorder %v1100, 32
        %vm2303 = vcmp.lt.s32.totalorder %v1100, 112
        %vm2304 = vmand %vm2302, %vm2303
        %2305 = vst.msk [vmem:[#allocation8 + $0x1] sm:$0x1] %vm2304, %v2300
        %v2306 = vld [vmem:[#allocation7 + $0x3] sm:$0x1]
        %v2309 = vunpack.c.l.s4 1966171168
        %v2310 = vunpack.c.0.s8 %v2309
        %v2311 = vlaneseq
        %v2312 = vshrl.u32 %v2311, 7
        %v2313 = vsub.s32 %v2310, %v2312
        %v2314 = vrot.slane %v2306, %v2313
        %v2316 = vunpack.c.l.s4 1966171168
        %v2317 = vunpack.c.0.s8 %v2316
        %v2318 = vlaneseq
        %v2319 = vshrl.u32 %v2318, 7
        %v2320 = vsub.s32 %v2317, %v2319
        %v2321 = vrot.slane %v2314, %v2320
        %2322 = vrot.lane.b32.xlu0 %v2321, 112
        %v2323 = vpop.permute.xlu0 %2322
        %v2324 = vrot.slane %v2323, 7
        %vm2325 = vcmask 916480
        %v2326 = vsel %vm2325, %v2324, %v2323
        %vm2328 = vcmp.ge.s32.totalorder %v1100, 112
        %vm2329 = vcmp.lt.s32.totalorder %v1100, 192
        %vm2330 = vmand %vm2328, %vm2329
        %2331 = vst.msk [vmem:[#allocation8 + $0x1] sm:$0x3] %vm2330, %v2326
        %v2332 = vld [vmem:[#allocation7 + $0x4] sm:$0x1]
        %v2335 = vunpack.c.l.s4 1966171168
        %v2336 = vunpack.c.0.s8 %v2335
        %v2337 = vlaneseq
        %v2338 = vshrl.u32 %v2337, 7
        %v2339 = vsub.s32 %v2336, %v2338
        %v2340 = vrot.slane %v2332, %v2339
        %v2342 = vunpack.c.l.s4 1966171168
        %v2343 = vunpack.c.0.s8 %v2342
        %v2344 = vlaneseq
        %v2345 = vshrl.u32 %v2344, 7
        %v2346 = vsub.s32 %v2343, %v2345
        %v2347 = vrot.slane %v2340, %v2346
        %2348 = vrot.lane.b32.xlu0 %v2347, 64
        %v2349 = vpop.permute.xlu0 %2348
        %v2350 = vrot.slane %v2349, 7
        %vm2351 = vcmask 523264
        %v2352 = vsel %vm2351, %v2350, %v2349
        %vm2354 = vcmp.ge.s32.totalorder %v1100, 64
        %vm2355 = vcmp.lt.s32.totalorder %v1100, 144
        %vm2356 = vmand %vm2354, %vm2355
        %2357 = vst.msk [vmem:[#allocation8 + $0x2] sm:$0x3] %vm2356, %v2352
        %v2358 = vld [vmem:[#allocation8] sm:$0xf]
        %v2359 = vld [vmem:[%s5] sm:$0xff]
        %v2360 = vld [vmem:[%s5 + $0x8] sm:$0xff]
        %v2361 = vld [vmem:[%s5 + $0x10] sm:$0xff]
        %v2362 = vld [vmem:[%s5 + $0x18] sm:$0xff]
        %v2363 = vld [vmem:[%s5 + $0x20] sm:$0xff]
        %v2364 = vld [vmem:[%s5 + $0x28] sm:$0xff]
        %v2365 = vld [vmem:[%s5 + $0x30] sm:$0xff]
        %v2366 = vld [vmem:[%s5 + $0x38] sm:$0xff]
        %v2367 = vld [vmem:[%s5 + $0x40] sm:$0xff]
        %v2368 = vld [vmem:[%s5 + $0x48] sm:$0xff]
        %v2369 = vld [vmem:[%s5 + $0x50] sm:$0xff]
        %v2370 = vld [vmem:[%s5 + $0x58] sm:$0xff]
        %v2371 = vld [vmem:[%s5 + $0x60] sm:$0xff]
        %v2372 = vld [vmem:[%s5 + $0x68] sm:$0xff]
        %v2373 = vld [vmem:[%s5 + $0x70] sm:$0xff]
        %v2374 = vld [vmem:[%s5 + $0x78] sm:$0xff]
        %v2375 = vld [vmem:[%s5 + $0x80] sm:$0xff]
        %v2376 = vld [vmem:[%s5 + $0x88] sm:$0xff]
        %v2377 = vld [vmem:[%s5 + $0x90] sm:$0xff]
        %v2378 = vld [vmem:[%s5 + $0x98] sm:$0xff]
        %v2379 = vld [vmem:[%s5 + $0xa0] sm:$0xff]
        %v2380 = vld [vmem:[%s5 + $0xa8] sm:$0xff]
        %v2381 = vld [vmem:[%s5 + $0xb0] sm:$0xff]
        %v2382 = vld [vmem:[%s5 + $0xb8] sm:$0xff]
        %v2383 = vld [vmem:[%s5 + $0xc0] sm:$0xff]
        %v2384 = vld [vmem:[%s5 + $0xc8] sm:$0xff]
        %v2385 = vld [vmem:[%s5 + $0xd0] sm:$0xff]
        %v2386 = vld [vmem:[%s5 + $0xd8] sm:$0xff]
        %v2387 = vld [vmem:[%s5 + $0xe0] sm:$0xff]
        %v2388 = vld [vmem:[%s5 + $0xe8] sm:$0xff]
        %v2389 = vld [vmem:[%s5 + $0xf0] sm:$0xff]
        %v2390 = vld [vmem:[%s5 + $0xf8] sm:$0xff]
        %v2391 = vld [vmem:[%s5 + $0x100] sm:$0xff]
        %v2392 = vld [vmem:[%s5 + $0x108] sm:$0xff]
        %v2393 = vld [vmem:[%s5 + $0x110] sm:$0xff]
        %v2394 = vld [vmem:[%s5 + $0x118] sm:$0xff]
        %v2395 = vld [vmem:[%s5 + $0x120] sm:$0xff]
        %v2396 = vld [vmem:[%s5 + $0x128] sm:$0xff]
        %v2397 = vld [vmem:[%s5 + $0x130] sm:$0xff]
        %v2398 = vld [vmem:[%s5 + $0x138] sm:$0xff]
        %v2399 = vld [vmem:[%s5 + $0x140] sm:$0xff]
        %v2400 = vld [vmem:[%s5 + $0x148] sm:$0xff]
        %v2401 = vld [vmem:[%s5 + $0x150] sm:$0xff]
        %v2402 = vld [vmem:[%s5 + $0x158] sm:$0xff]
        %v2403 = vld [vmem:[%s5 + $0x160] sm:$0xff]
        %v2404 = vld [vmem:[%s5 + $0x168] sm:$0xff]
        %v2405 = vld [vmem:[%s5 + $0x170] sm:$0xff]
        %v2406 = vld [vmem:[%s5 + $0x178] sm:$0xff]
        %v2407 = vld [vmem:[%s5 + $0x180] sm:$0xff]
        %v2408 = vld [vmem:[%s5 + $0x188] sm:$0xff]
        %v2409 = vld [vmem:[%s6] sm:$0x1]
        %v2411 = vlaneseq
        %v2412 = vshrl.u32 %v2411, 7
        %v2413 = vsub.s32 0, %v2412
        %v2414 = vrot.slane %v2358, %v2413
        %v2415 = vlaneseq
        %v2416 = vshrl.u32 %v2415, 7
        %v2417 = vsub.s32 1, %v2416
        %v2418 = vrot.slane %v2358, %v2417
        %v2419 = vlaneseq
        %v2420 = vshrl.u32 %v2419, 7
        %v2421 = vsub.s32 2, %v2420
        %v2422 = vrot.slane %v2358, %v2421
        %v2423 = vlaneseq
        %v2424 = vshrl.u32 %v2423, 7
        %v2425 = vsub.s32 3, %v2424
        %v2426 = vrot.slane %v2358, %v2425
        %vm2430 = vcmask 130048
        %v2431 = vsel %vm2430, %v2426, 0
        %2433 = vmatprep.subr.mxu0 0.0
        %2434 = vmatpush1.msra.mxu0 %v2359
        %2435 = vmatprep.subr.mxu0 0.0
        %2436 = vmatpush1.msra.mxu0 %v2360
        %2437 = vmatprep.subr.mxu0 0.0
        %2438 = vmatpush1.msra.mxu0 %v2361
        %2439 = vmatprep.subr.mxu0 0.0
        %2440 = vmatpush1.msra.mxu0 %v2362
        %2441 = vmatprep.subr.mxu0 0.0
        %2442 = vmatpush1.msra.mxu0 %v2363
        %2443 = vmatprep.subr.mxu0 0.0
        %2444 = vmatpush1.msra.mxu0 %v2364
        %2445 = vmatprep.subr.mxu0 0.0
        %2446 = vmatpush1.msra.mxu0 %v2365
        %2447 = vmatprep.subr.mxu0 0.0
        %2448 = vmatpush1.msra.mxu0 %v2366
        %2449 = vmatprep.subr.mxu0 0.0
        %2450 = vmatpush1.msra.mxu0 %v2367
        %2451 = vmatprep.subr.mxu0 0.0
        %2452 = vmatpush1.msra.mxu0 %v2368
        %2453 = vmatprep.subr.mxu0 0.0
        %2454 = vmatpush1.msra.mxu0 %v2369
        %2455 = vmatprep.subr.mxu0 0.0
        %2456 = vmatpush1.msra.mxu0 %v2370
        %2457 = vmatprep.subr.mxu0 0.0
        %2458 = vmatpush1.msra.mxu0 %v2371
        %2459 = vmatprep.subr.mxu0 0.0
        %2460 = vmatpush1.msra.mxu0 %v2372
        %2461 = vmatprep.subr.mxu0 0.0
        %2462 = vmatpush1.msra.mxu0 %v2373
        %2463 = vmatprep.subr.mxu0 0.0
        %2464 = vmatpush1.msra.mxu0 %v2374
        %2465 = vmatprep.subr.mxu0 0.0
        %2466 = vmatpush1.msra.mxu0 %v2375
        %2467 = vmatprep.subr.mxu0 0.0
        %2468 = vmatpush1.msra.mxu0 %v2376
        %2469 = vmatprep.subr.mxu0 0.0
        %2470 = vmatpush1.msra.mxu0 %v2377
        %2471 = vmatprep.subr.mxu0 0.0
        %2472 = vmatpush1.msra.mxu0 %v2378
        %2473 = vmatprep.subr.mxu0 0.0
        %2474 = vmatpush1.msra.mxu0 %v2379
        %2475 = vmatprep.subr.mxu0 0.0
        %2476 = vmatpush1.msra.mxu0 %v2380
        %2477 = vmatprep.subr.mxu0 0.0
        %2478 = vmatpush1.msra.mxu0 %v2381
        %2479 = vmatprep.subr.mxu0 0.0
        %2480 = vmatpush1.msra.mxu0 %v2382
        %2481 = vmatprep.subr.mxu0 0.0
        %2482 = vmatpush1.msra.mxu0 %v2383
        %2483 = vmatprep.subr.mxu0 0.0
        %2484 = vmatpush1.msra.mxu0 %v2384
        %2485 = vmatprep.subr.mxu0 0.0
        %2486 = vmatpush1.msra.mxu0 %v2385
        %2487 = vmatprep.subr.mxu0 0.0
        %2488 = vmatpush1.msra.mxu0 %v2386
        %2489 = vmatprep.subr.mxu0 0.0
        %2490 = vmatpush1.msra.mxu0 %v2387
        %2491 = vmatprep.subr.mxu0 0.0
        %2492 = vmatpush1.msra.mxu0 %v2388
        %2493 = vmatprep.subr.mxu0 0.0
        %2494 = vmatpush1.msra.mxu0 %v2389
        %2495 = vmatprep.subr.mxu0 0.0
        %2496 = vmatpush1.msra.mxu0 %v2390
        %2497 = vmatprep.mubr.f32.mxu0 %v2418
        %2498 = vmatmul.mubr.f32.gmra.mrb[0].mxu0 %v2414
        %v2499 = vpop.f32.mrb[0].mxu0
        %v2500 = vadd.f32 %v2409, %v2499
        %v2501 = vpop.f32.mrb[0].mxu0
        %2502 = vdwg.mxu0
        %2503 = vmatprep.subr.mxu0 0.0
        %2504 = vmatpush1.msra.mxu0 %v2391
        %2505 = vmatprep.subr.mxu0 0.0
        %2506 = vmatpush1.msra.mxu0 %v2392
        %2507 = vmatprep.subr.mxu0 0.0
        %2508 = vmatpush1.msra.mxu0 %v2393
        %2509 = vmatprep.subr.mxu0 0.0
        %2510 = vmatpush1.msra.mxu0 %v2394
        %2511 = vmatprep.subr.mxu0 0.0
        %2512 = vmatpush1.msra.mxu0 %v2395
        %2513 = vmatprep.subr.mxu0 0.0
        %2514 = vmatpush1.msra.mxu0 %v2396
        %2515 = vmatprep.subr.mxu0 0.0
        %2516 = vmatpush1.msra.mxu0 %v2397
        %2517 = vmatprep.subr.mxu0 0.0
        %2518 = vmatpush1.msra.mxu0 %v2398
        %2519 = vmatprep.subr.mxu0 0.0
        %2520 = vmatpush1.msra.mxu0 %v2399
        %2521 = vmatprep.subr.mxu0 0.0
        %2522 = vmatpush1.msra.mxu0 %v2400
        %2523 = vmatprep.subr.mxu0 0.0
        %2524 = vmatpush1.msra.mxu0 %v2401
        %2525 = vmatprep.subr.mxu0 0.0
        %2526 = vmatpush1.msra.mxu0 %v2402
        %2527 = vmatprep.subr.mxu0 0.0
        %2528 = vmatpush1.msra.mxu0 %v2403
        %2529 = vmatprep.subr.mxu0 0.0
        %2530 = vmatpush1.msra.mxu0 %v2404
        %2531 = vmatprep.subr.mxu0 0.0
        %2532 = vmatpush1.msra.mxu0 %v2405
        %2533 = vmatprep.subr.mxu0 0.0
        %2534 = vmatpush1.msra.mxu0 %v2406
        %2535 = vmatprep.subr.mxu0 0.0
        %2536 = vmatpush1.msra.mxu0 %v2407
        %2537 = vmatprep.subr.mxu0 0.0
        %2538 = vmatpush1.msra.mxu0 %v2408
        %2539 = vmatprep.subr.mxu0 0.0
        %2540 = vmatpush1.msra.mxu0 0.0
        %2541 = vmatprep.subr.mxu0 0.0
        %2542 = vmatpush1.msra.mxu0 0.0
        %2543 = vmatprep.subr.mxu0 0.0
        %2544 = vmatpush1.msra.mxu0 0.0
        %2545 = vmatprep.subr.mxu0 0.0
        %2546 = vmatpush1.msra.mxu0 0.0
        %2547 = vmatprep.subr.mxu0 0.0
        %2548 = vmatpush1.msra.mxu0 0.0
        %2549 = vmatprep.subr.mxu0 0.0
        %2550 = vmatpush1.msra.mxu0 0.0
        %2551 = vmatprep.subr.mxu0 0.0
        %2552 = vmatpush1.msra.mxu0 0.0
        %2553 = vmatprep.subr.mxu0 0.0
        %2554 = vmatpush1.msra.mxu0 0.0
        %2555 = vmatprep.subr.mxu0 0.0
        %2556 = vmatpush1.msra.mxu0 0.0
        %2557 = vmatprep.subr.mxu0 0.0
        %2558 = vmatpush1.msra.mxu0 0.0
        %2559 = vmatprep.subr.mxu0 0.0
        %2560 = vmatpush1.msra.mxu0 0.0
        %2561 = vmatprep.subr.mxu0 0.0
        %2562 = vmatpush1.msra.mxu0 0.0
        %2563 = vmatprep.subr.mxu0 0.0
        %2564 = vmatpush1.msra.mxu0 0.0
        %2565 = vmatprep.subr.mxu0 0.0
        %2566 = vmatpush1.msra.mxu0 0.0
        %2567 = vmatprep.mubr.f32.mxu0 %v2431
        %2568 = vmatmul.mubr.f32.gmra.mrb[0].mxu0 %v2422
        %v2569 = vpop.f32.mrb[0].mxu0
        %v2570 = vadd.f32 %v2500, %v2569
        %v2571 = vpop.f32.mrb[0].mxu0
        %2572 = vdwg.mxu0
        %v2573 = vmax.f32 %v2570, 0.0
        %v2574 = vld [vmem:[%s7] sm:$0xff]
        %v2575 = vld [vmem:[%s7 + $0x8] sm:$0xff]
        %v2576 = vld [vmem:[%s7 + $0x10] sm:$0xff]
        %v2577 = vld [vmem:[%s7 + $0x18] sm:$0xff]
        %v2578 = vld [vmem:[%s7 + $0x20] sm:$0xff]
        %v2579 = vld [vmem:[%s7 + $0x28] sm:$0xff]
        %v2580 = vld [vmem:[%s7 + $0x30] sm:$0xff]
        %v2581 = vld [vmem:[%s7 + $0x38] sm:$0xff]
        %v2582 = vld [vmem:[%s7 + $0x40] sm:$0xff]
        %v2583 = vld [vmem:[%s7 + $0x48] sm:$0xff]
        %v2584 = vld [vmem:[%s7 + $0x50] sm:$0xff]
        %v2585 = vld [vmem:[%s7 + $0x58] sm:$0xff]
        %v2586 = vld [vmem:[%s7 + $0x60] sm:$0xff]
        %v2587 = vld [vmem:[%s7 + $0x68] sm:$0xff]
        %v2588 = vld [vmem:[%s7 + $0x70] sm:$0xff]
        %v2589 = vld [vmem:[%s8] sm:$0x1]
        %vm2590 = vcmask 982016
        %v2592 = vsel %vm2590, %v2573, 0
        %2594 = vmatprep.subr.mxu0 0.0
        %2595 = vmatpush1.msra.mxu0 %v2574
        %2596 = vmatprep.subr.mxu0 0.0
        %2597 = vmatpush1.msra.mxu0 %v2575
        %2598 = vmatprep.subr.mxu0 0.0
        %2599 = vmatpush1.msra.mxu0 %v2576
        %2600 = vmatprep.subr.mxu0 0.0
        %2601 = vmatpush1.msra.mxu0 %v2577
        %2602 = vmatprep.subr.mxu0 0.0
        %2603 = vmatpush1.msra.mxu0 %v2578
        %2604 = vmatprep.subr.mxu0 0.0
        %2605 = vmatpush1.msra.mxu0 %v2579
        %2606 = vmatprep.subr.mxu0 0.0
        %2607 = vmatpush1.msra.mxu0 %v2580
        %2608 = vmatprep.subr.mxu0 0.0
        %2609 = vmatpush1.msra.mxu0 %v2581
        %2610 = vmatprep.subr.mxu0 0.0
        %2611 = vmatpush1.msra.mxu0 %v2582
        %2612 = vmatprep.subr.mxu0 0.0
        %2613 = vmatpush1.msra.mxu0 %v2583
        %2614 = vmatprep.subr.mxu0 0.0
        %2615 = vmatpush1.msra.mxu0 %v2584
        %2616 = vmatprep.subr.mxu0 0.0
        %2617 = vmatpush1.msra.mxu0 %v2585
        %2618 = vmatprep.subr.mxu0 0.0
        %2619 = vmatpush1.msra.mxu0 %v2586
        %2620 = vmatprep.subr.mxu0 0.0
        %2621 = vmatpush1.msra.mxu0 %v2587
        %2622 = vmatprep.subr.mxu0 0.0
        %2623 = vmatpush1.msra.mxu0 %v2588
        %2624 = vmatprep.subr.mxu0 0.0
        %2625 = vmatpush1.msra.mxu0 0.0
        %2626 = vmatprep.subr.mxu0 0.0
        %2627 = vmatpush1.msra.mxu0 0.0
        %2628 = vmatprep.subr.mxu0 0.0
        %2629 = vmatpush1.msra.mxu0 0.0
        %2630 = vmatprep.subr.mxu0 0.0
        %2631 = vmatpush1.msra.mxu0 0.0
        %2632 = vmatprep.subr.mxu0 0.0
        %2633 = vmatpush1.msra.mxu0 0.0
        %2634 = vmatprep.subr.mxu0 0.0
        %2635 = vmatpush1.msra.mxu0 0.0
        %2636 = vmatprep.subr.mxu0 0.0
        %2637 = vmatpush1.msra.mxu0 0.0
        %2638 = vmatprep.subr.mxu0 0.0
        %2639 = vmatpush1.msra.mxu0 0.0
        %2640 = vmatprep.subr.mxu0 0.0
        %2641 = vmatpush1.msra.mxu0 0.0
        %2642 = vmatprep.subr.mxu0 0.0
        %2643 = vmatpush1.msra.mxu0 0.0
        %2644 = vmatprep.subr.mxu0 0.0
        %2645 = vmatpush1.msra.mxu0 0.0
        %2646 = vmatprep.subr.mxu0 0.0
        %2647 = vmatpush1.msra.mxu0 0.0
        %2648 = vmatprep.subr.mxu0 0.0
        %2649 = vmatpush1.msra.mxu0 0.0
        %2650 = vmatprep.subr.mxu0 0.0
        %2651 = vmatpush1.msra.mxu0 0.0
        %2652 = vmatprep.subr.mxu0 0.0
        %2653 = vmatpush1.msra.mxu0 0.0
        %2654 = vmatprep.subr.mxu0 0.0
        %2655 = vmatpush1.msra.mxu0 0.0
        %2656 = vmatprep.subr.mxu0 0.0
        %2657 = vmatpush1.msra.mxu0 0.0
        %2658 = vmatprep.mubr.f32.mxu0 0.0
        %2659 = vmatmul.mubr.f32.gmra.mrb[0].mxu0 %v2592
        %v2660 = vpop.f32.mrb[0].mxu0
        %v2661 = vadd.f32 %v2589, %v2660
        %v2662 = vpop.f32.mrb[0].mxu0
        %2663 = vdwg.mxu0
        %v2664 = vmax.f32 %v2661, 0.0
        %v2665 = vld [vmem:[%s9] sm:$0xff]
        %v2666 = vld [vmem:[%s9 + $0x8] sm:$0xff]
        %v2667 = vld [vmem:[%s9 + $0x10] sm:$0xff]
        %v2668 = vld [vmem:[%s9 + $0x18] sm:$0xff]
        %v2669 = vld [vmem:[%s9 + $0x20] sm:$0xff]
        %v2670 = vld [vmem:[%s9 + $0x28] sm:$0xff]
        %v2671 = vld [vmem:[%s9 + $0x30] sm:$0xff]
        %v2672 = vld [vmem:[%s9 + $0x38] sm:$0xff]
        %v2673 = vld [vmem:[%s9 + $0x40] sm:$0xff]
        %v2674 = vld [vmem:[%s9 + $0x48] sm:$0xff]
        %v2675 = vld [vmem:[%s9 + $0x50] sm:$0xf]
        %v2676 = vld [vmem:[%s10] sm:$0x1]
        %v2678 = vsel %vm1598, %v2664, 0
        %v2681 = vsel %vm1605, %v2675, 0
        %2683 = vmatprep.subr.mxu0 0.0
        %2684 = vmatpush1.msra.mxu0 %v2665
        %2685 = vmatprep.subr.mxu0 0.0
        %2686 = vmatpush1.msra.mxu0 %v2666
        %2687 = vmatprep.subr.mxu0 0.0
        %2688 = vmatpush1.msra.mxu0 %v2667
        %2689 = vmatprep.subr.mxu0 0.0
        %2690 = vmatpush1.msra.mxu0 %v2668
        %2691 = vmatprep.subr.mxu0 0.0
        %2692 = vmatpush1.msra.mxu0 %v2669
        %2693 = vmatprep.subr.mxu0 0.0
        %2694 = vmatpush1.msra.mxu0 %v2670
        %2695 = vmatprep.subr.mxu0 0.0
        %2696 = vmatpush1.msra.mxu0 %v2671
        %2697 = vmatprep.subr.mxu0 0.0
        %2698 = vmatpush1.msra.mxu0 %v2672
        %2699 = vmatprep.subr.mxu0 0.0
        %2700 = vmatpush1.msra.mxu0 %v2673
        %2701 = vmatprep.subr.mxu0 0.0
        %2702 = vmatpush1.msra.mxu0 %v2674
        %2703 = vmatprep.subr.mxu0 0.0
        %2704 = vmatpush1.msra.mxu0 %v2681
        %2705 = vmatprep.subr.mxu0 0.0
        %2706 = vmatpush1.msra.mxu0 0.0
        %2707 = vmatprep.subr.mxu0 0.0
        %2708 = vmatpush1.msra.mxu0 0.0
        %2709 = vmatprep.subr.mxu0 0.0
        %2710 = vmatpush1.msra.mxu0 0.0
        %2711 = vmatprep.subr.mxu0 0.0
        %2712 = vmatpush1.msra.mxu0 0.0
        %2713 = vmatprep.subr.mxu0 0.0
        %2714 = vmatpush1.msra.mxu0 0.0
        %2715 = vmatprep.subr.mxu0 0.0
        %2716 = vmatpush1.msra.mxu0 0.0
        %2717 = vmatprep.subr.mxu0 0.0
        %2718 = vmatpush1.msra.mxu0 0.0
        %2719 = vmatprep.subr.mxu0 0.0
        %2720 = vmatpush1.msra.mxu0 0.0
        %2721 = vmatprep.subr.mxu0 0.0
        %2722 = vmatpush1.msra.mxu0 0.0
        %2723 = vmatprep.subr.mxu0 0.0
        %2724 = vmatpush1.msra.mxu0 0.0
        %2725 = vmatprep.subr.mxu0 0.0
        %2726 = vmatpush1.msra.mxu0 0.0
        %2727 = vmatprep.subr.mxu0 0.0
        %2728 = vmatpush1.msra.mxu0 0.0
        %2729 = vmatprep.subr.mxu0 0.0
        %2730 = vmatpush1.msra.mxu0 0.0
        %2731 = vmatprep.subr.mxu0 0.0
        %2732 = vmatpush1.msra.mxu0 0.0
        %2733 = vmatprep.subr.mxu0 0.0
        %2734 = vmatpush1.msra.mxu0 0.0
        %2735 = vmatprep.subr.mxu0 0.0
        %2736 = vmatpush1.msra.mxu0 0.0
        %2737 = vmatprep.subr.mxu0 0.0
        %2738 = vmatpush1.msra.mxu0 0.0
        %2739 = vmatprep.subr.mxu0 0.0
        %2740 = vmatpush1.msra.mxu0 0.0
        %2741 = vmatprep.subr.mxu0 0.0
        %2742 = vmatpush1.msra.mxu0 0.0
        %2743 = vmatprep.subr.mxu0 0.0
        %2744 = vmatpush1.msra.mxu0 0.0
        %2745 = vmatprep.subr.mxu0 0.0
        %2746 = vmatpush1.msra.mxu0 0.0
        %2747 = vmatprep.mubr.f32.mxu0 0.0
        %2748 = vmatmul.mubr.f32.gmra.mrb[0].mxu0 %v2678
        %v2749 = vpop.f32.mrb[0].mxu0
        %v2750 = vadd.f32 %v2676, %v2749
        %v2751 = vpop.f32.mrb[0].mxu0
        %2752 = vdwg.mxu0
        %vm2753 = vcmask 73728
        %2754 = vst.msk [vmem:[%s378] sm:$0x1] %vm2753, %v2750
        %s2755 = sand.u32 %s269, 1
        %s2756 = scalar_lea.sflag [#allocation10], %s2755
        %s2757 = sand.u32 %s269, 1
        %s2758 = scalar_lea.vmem [#allocation9], %s2757
        // Predicated region
        $region65: #{simple_cnn_forward.1} parent=63 // pred_check
          %p2759 = pneg %p279
        $region66: #{simple_cnn_forward.1} parent=63 // pred_check_branch
          %2761 = sbr.rel (%p2759) target = $region68
        $region67: #{simple_cnn_forward.1} parent=63 // pred_region
          %s2763 = ssub.s32 16, 16
          %2764 = vsyncadd %s2756, %s2763
          %s2765 = smul.addr %s25, 16
          %s2766 = scalar_lea.hbm %s11, %s2765
          %s2768 = sshll.u32 %s2758, 4
          %s2769 = int_to_ptr.vmem [resolvable:$true] %s2768
          %2771 = dma.vmem_to_hbm [thread:$0]  %s2769, 16, %s2766, %s2756
        $region68: #{simple_cnn_forward.1} parent=63 // pred_fallthru
          _
      $region64: #{simple_cnn_forward.1} parent=5 // pred_fallthru
        _
      %p2772 = scmp.le.s32.totalorder 2, %s20
      // Predicated region
      $region69: #{simple_cnn_forward.1} parent=5 // pred_check
        %p2773 = pneg %p2772
      $region70: #{simple_cnn_forward.1} parent=5 // pred_check_branch
        %2775 = sbr.rel (%p2773) target = $region72
      $region71: #{simple_cnn_forward.1} parent=5 // pred_region
        %s2776 = ssub.s32 %s20, 2
        // Predicated region
        $region73: #{simple_cnn_forward.1} parent=71 // pred_check
          %p2777 = pneg %p285
        $region74: #{simple_cnn_forward.1} parent=71 // pred_check_branch
          %2779 = sbr.rel (%p2777) target = $region76
        $region75: #{simple_cnn_forward.1} parent=71 // pred_region
          %s2780 = sand.u32 %s270, 1
          %s2781 = scalar_lea.sflag [#allocation10], %s2780
          %s2782 = sand.u32 %s270, 1
          %s2783 = scalar_lea.vmem [#allocation9], %s2782
          %2784 = dma.done %s2781, 16
        $region76: #{simple_cnn_forward.1} parent=71 // pred_fallthru
          _
      $region72: #{simple_cnn_forward.1} parent=5 // pred_fallthru
        _
    $region6: #{simple_cnn_forward.1} parent=1 // loop_footer
      %s24 = sadd.s32 1, %s20
    $region7: #{simple_cnn_forward.1} parent=1 // loop_footer_branch
      %19 = sbr.rel target = $region3
    $region8: #{simple_cnn_forward.1} parent=1 // loop_exit
      _
    %2785 = vsyncpa [#allocation10], 1
    %s2786 = scalar_lea.sflag [#allocation10], 1
    %2787 = vsyncpa %s2786, 1

</llo_original>
